<compile_context>
chip_gen: v7x
topology: tpu7x:2x2x1
jax: 0.10.0
libtpu: 0.0.40
codegen_flags: <defaults>
</compile_context>

<pallas_src>
import jax
import jax.numpy as jnp
from jax.experimental import pallas as pl
from jax.experimental.pallas import tpu as pltpu


IN_FEATURES = 28 * 28
LAYER_DIMS = [(784, 128), (128, 64), (64, 12), (12, 4),
              (4, 12), (12, 64), (64, 128), (128, 784)]
# Activation after each nn.Linear of the original module.
ACTS = ["relu", "relu", "relu", "none", "relu", "relu", "relu", "sigmoid"]


def _make_kernel(acts, n_layers):
    """Kernel closure: rest = (w1, b1, ..., wN, bN, o_ref)."""
    def ae_kernel(x_ref, *rest):
        o_ref = rest[-1]
        prm = rest[:-1]
        h = x_ref[...]                                   # bf16 [TB, 784]
        for i in range(n_layers):
            w = prm[2 * i][...]                          # bf16 [in, out]
            b = prm[2 * i + 1][...]                      # f32  [1, out]
            # bf16 MXU inputs, f32 accumulation; bias/activation in f32.
            h = jnp.dot(h.astype(jnp.bfloat16), w,
                        preferred_element_type=jnp.float32) + b
            a = acts[i]
            if a == "relu":
                h = jnp.maximum(h, 0.0)
            elif a == "sigmoid":
                h = jax.nn.sigmoid(h)
            # "none": identity
        o_ref[...] = h.astype(o_ref.dtype)
    return ae_kernel


def fuse_params(params):
    """Fold layer 3 (12->4, no activation) into layer 4 (4->12, ReLU).

    (x@W4 + b4)@W5 + b5 == x@(W4@W5) + (b4@W5 + b5); fused weight computed in
    f32 (cast to bf16 later in the wrapper).
    """
    layers = [(W.astype(jnp.float32), b.astype(jnp.float32)) for (W, b) in params]
    (W4, b4), (W5, b5) = layers[3], layers[4]
    W45 = W4 @ W5                       # [12, 12]
    b45 = b4 @ W5 + b5                  # [1, 12]
    fused = layers[:3] + [(W45, b45)] + layers[5:]
    acts = ["relu", "relu", "relu", "relu", "relu", "relu", "sigmoid"]
    return fused, acts


def _pick_tb(batch, target):
    """Pick a batch tile.

    Prefer an exact divisor of `batch` (no pad/slice HBM passes), among those
    prefer >= 2 tiles (v7x 2-TC sharding) and reject tiny tiles; otherwise
    fall back to padding.  Returns (tb, padded_batch).
    """
    target = max(8, min(target, ((batch + 7) // 8) * 8))
    target = (target // 8) * 8
    if batch % 8 == 0:
        divs = [t for t in range(8, target + 1, 8) if batch % t == 0]
        good = [t for t in divs if t >= min(128, batch)]
        if good:
            multi = [t for t in good if batch // t >= 2]
            tb = max(multi) if multi else max(good)
            return tb, batch
    b_pad = pl.cdiv(batch, target) * target
    return target, b_pad


def autoencoder_forward(x, params, *, tb=1024, out_dtype=None, fuse_bottleneck=True):
    """x: [B, 784] float32. params: list of 8 (W [in,out], b [1,out]) f32 pairs."""
    B, F = x.shape
    assert F == IN_FEATURES
    out_dtype = x.dtype if out_dtype is None else out_dtype

    if fuse_bottleneck:
        layers, acts = fuse_params(params)
    else:
        layers = [(W.astype(jnp.float32), b.astype(jnp.float32)) for (W, b) in params]
        acts = list(ACTS)

    tb, b_pad = _pick_tb(B, tb)
    n_tiles = b_pad // tb

    # Stream the input in bf16 — the first matmul consumes bf16 anyway.
    x_bf = x.astype(jnp.bfloat16)
    if b_pad != B:
        x_bf = jnp.pad(x_bf, ((0, b_pad - B), (0, 0)))   # fallback path only

    flat = []
    for W, b in layers:
        flat.append(W.astype(jnp.bfloat16))              # bf16 MXU weights
        flat.append(b.astype(jnp.float32))               # f32 biases

    # Untiled VMEM residents: fetched once, not pipelined/double-buffered.
    resident = pl.BlockSpec(memory_space=pltpu.MemorySpace.VMEM)
    in_specs = [pl.BlockSpec((tb, F), lambda i: (i, 0))] + [resident] * len(flat)
    out_specs = pl.BlockSpec((tb, F), lambda i: (i, 0))

    kernel = _make_kernel(tuple(acts), len(layers))
    out = pl.pallas_call(
        kernel,
        out_shape=jax.ShapeDtypeStruct((b_pad, F), out_dtype),
        grid=(n_tiles,),
        in_specs=in_specs,
        out_specs=out_specs,
        compiler_params=pltpu.CompilerParams(
            dimension_semantics=("parallel",),   # megacore / v7x 2-TC sharding
            vmem_limit_bytes=48 * 1024 * 1024,   # safe on v7x 64 MiB, ample on v5e/v6e
        ),
    )(x_bf, *flat)
    return out if b_pad == B else out[:B]


def init_params(key):
    """nn.Linear-style U(-1/sqrt(fan_in), 1/sqrt(fan_in)) init; W stored [in,out]."""
    params = []
    for fan_in, fan_out in LAYER_DIMS:
        key, kw, kb = jax.random.split(key, 3)
        bound = 1.0 / jnp.sqrt(float(fan_in))
        W = jax.random.uniform(kw, (fan_in, fan_out), jnp.float32, -bound, bound)
        b = jax.random.uniform(kb, (1, fan_out), jnp.float32, -bound, bound)
        params.append((W, b))
    return params


def reference_forward(x, layers, acts, *, bf16_matmul=True):
    h = x.astype(jnp.float32)
    for i, (W, b) in enumerate(layers):
        if bf16_matmul:
            h = jnp.dot(h.astype(jnp.bfloat16), W.astype(jnp.bfloat16),
                        preferred_element_type=jnp.float32) + b
        else:
            h = h @ W + b
        if acts[i] == "relu":
            h = jnp.maximum(h, 0.0)
        elif acts[i] == "sigmoid":
            h = jax.nn.sigmoid(h)
    return h


if __name__ == "__main__":
    key = jax.random.PRNGKey(0)
    key, kx = jax.random.split(key)

    # B=256 divides evenly -> no pad/slice; _pick_tb chooses tb=128 (2 tiles,
    # exercises the parallel batch grid and the divisor path).
    B = 256
    x = jax.random.uniform(kx, (B, IN_FEATURES), jnp.float32)
    params = init_params(key)

    out = jax.block_until_ready(autoencoder_forward(x, params))
    assert out.shape == (B, IN_FEATURES)
    assert out.dtype == x.dtype

    fused_layers, fused_acts = fuse_params(params)
    ref_bf16 = reference_forward(x, fused_layers, fused_acts, bf16_matmul=True)
    ref_f32 = reference_forward(x, params, ACTS, bf16_matmul=False)
    assert float(jnp.max(jnp.abs(out - ref_bf16))) < 2e-3   # same math as kernel
    assert float(jnp.max(jnp.abs(out - ref_f32))) < 5e-2    # bf16-weight tolerance

    print("KERNEL_OK")
</pallas_src>

<mosaic_0001>
module attributes {stable_mosaic.version = 11 : i64} {
  func.func @ae_kernel(%arg0: i32, %arg1: memref<128x784xbf16, #tpu.memory_space<vmem>>, %arg2: memref<784x128xbf16, #tpu.memory_space<vmem>>, %arg3: memref<1x128xf32, #tpu.memory_space<vmem>>, %arg4: memref<128x64xbf16, #tpu.memory_space<vmem>>, %arg5: memref<1x64xf32, #tpu.memory_space<vmem>>, %arg6: memref<64x12xbf16, #tpu.memory_space<vmem>>, %arg7: memref<1x12xf32, #tpu.memory_space<vmem>>, %arg8: memref<12x12xbf16, #tpu.memory_space<vmem>>, %arg9: memref<1x12xf32, #tpu.memory_space<vmem>>, %arg10: memref<12x64xbf16, #tpu.memory_space<vmem>>, %arg11: memref<1x64xf32, #tpu.memory_space<vmem>>, %arg12: memref<64x128xbf16, #tpu.memory_space<vmem>>, %arg13: memref<1x128xf32, #tpu.memory_space<vmem>>, %arg14: memref<128x784xbf16, #tpu.memory_space<vmem>>, %arg15: memref<1x784xf32, #tpu.memory_space<vmem>>, %arg16: memref<128x784xf32, #tpu.memory_space<vmem>>) attributes {dimension_semantics = [#tpu.dimension_semantics<parallel>], iteration_bounds = array<i64: 2>, scalar_prefetch = 0 : i64, scratch_operands = 0 : i64, tpu.core_type = #tpu.core_type<tc>, window_params = [{transform_indices = @transform_0, window_bounds = array<i64: 128, 784>}, {pipeline_mode = #tpu.pipeline_mode<synchronous>, transform_indices = @transform_1, window_bounds = array<i64: 784, 128>}, {pipeline_mode = #tpu.pipeline_mode<synchronous>, transform_indices = @transform_2, window_bounds = array<i64: 1, 128>}, {pipeline_mode = #tpu.pipeline_mode<synchronous>, transform_indices = @transform_3, window_bounds = array<i64: 128, 64>}, {pipeline_mode = #tpu.pipeline_mode<synchronous>, transform_indices = @transform_4, window_bounds = array<i64: 1, 64>}, {pipeline_mode = #tpu.pipeline_mode<synchronous>, transform_indices = @transform_5, window_bounds = array<i64: 64, 12>}, {pipeline_mode = #tpu.pipeline_mode<synchronous>, transform_indices = @transform_6, window_bounds = array<i64: 1, 12>}, {pipeline_mode = #tpu.pipeline_mode<synchronous>, transform_indices = @transform_7, window_bounds = array<i64: 12, 12>}, {pipeline_mode = #tpu.pipeline_mode<synchronous>, transform_indices = @transform_8, window_bounds = array<i64: 1, 12>}, {pipeline_mode = #tpu.pipeline_mode<synchronous>, transform_indices = @transform_9, window_bounds = array<i64: 12, 64>}, {pipeline_mode = #tpu.pipeline_mode<synchronous>, transform_indices = @transform_10, window_bounds = array<i64: 1, 64>}, {pipeline_mode = #tpu.pipeline_mode<synchronous>, transform_indices = @transform_11, window_bounds = array<i64: 64, 128>}, {pipeline_mode = #tpu.pipeline_mode<synchronous>, transform_indices = @transform_12, window_bounds = array<i64: 1, 128>}, {pipeline_mode = #tpu.pipeline_mode<synchronous>, transform_indices = @transform_13, window_bounds = array<i64: 128, 784>}, {pipeline_mode = #tpu.pipeline_mode<synchronous>, transform_indices = @transform_14, window_bounds = array<i64: 1, 784>}, {transform_indices = @transform_15, window_bounds = array<i64: 128, 784>}]} {
    %c0 = arith.constant 0 : index
    %c0_0 = arith.constant 0 : index
    %0 = vector.load %arg1[%c0, %c0_0] : memref<128x784xbf16, #tpu.memory_space<vmem>>, vector<128x784xbf16>
    %c0_1 = arith.constant 0 : index
    %c0_2 = arith.constant 0 : index
    %1 = vector.load %arg2[%c0_1, %c0_2] : memref<784x128xbf16, #tpu.memory_space<vmem>>, vector<784x128xbf16>
    %c0_3 = arith.constant 0 : index
    %c0_4 = arith.constant 0 : index
    %2 = vector.load %arg3[%c0_3, %c0_4] : memref<1x128xf32, #tpu.memory_space<vmem>>, vector<1x128xf32>
    %cst = arith.constant dense<0.000000e+00> : vector<128x128xf32>
    %3 = tpu.matmul %0, %1, %cst {dimension_numbers = #tpu.dot_dimension_numbers<[1], [0], [0], [1], [0, 0, 1, 1], [], []>} : vector<128x784xbf16>, vector<784x128xbf16>, vector<128x128xf32> -> vector<128x128xf32>
    %4 = vector.broadcast %2 : vector<1x128xf32> to vector<128x128xf32>
    %5 = arith.addf %3, %4 : vector<128x128xf32>
    %cst_5 = arith.constant 0.000000e+00 : f32
    %6 = vector.broadcast %cst_5 : f32 to vector<128x128xf32>
    %7 = arith.maximumf %5, %6 : vector<128x128xf32>
    %c0_6 = arith.constant 0 : index
    %c0_7 = arith.constant 0 : index
    %8 = vector.load %arg4[%c0_6, %c0_7] : memref<128x64xbf16, #tpu.memory_space<vmem>>, vector<128x64xbf16>
    %c0_8 = arith.constant 0 : index
    %c0_9 = arith.constant 0 : index
    %9 = vector.load %arg5[%c0_8, %c0_9] : memref<1x64xf32, #tpu.memory_space<vmem>>, vector<1x64xf32>
    %10 = arith.truncf %7 : vector<128x128xf32> to vector<128x128xbf16>
    %cst_10 = arith.constant dense<0.000000e+00> : vector<128x64xf32>
    %11 = tpu.matmul %10, %8, %cst_10 {dimension_numbers = #tpu.dot_dimension_numbers<[1], [0], [0], [1], [0, 0, 1, 1], [], []>} : vector<128x128xbf16>, vector<128x64xbf16>, vector<128x64xf32> -> vector<128x64xf32>
    %12 = vector.broadcast %9 : vector<1x64xf32> to vector<128x64xf32>
    %13 = arith.addf %11, %12 : vector<128x64xf32>
    %cst_11 = arith.constant 0.000000e+00 : f32
    %14 = vector.broadcast %cst_11 : f32 to vector<128x64xf32>
    %15 = arith.maximumf %13, %14 : vector<128x64xf32>
    %c0_12 = arith.constant 0 : index
    %c0_13 = arith.constant 0 : index
    %16 = vector.load %arg6[%c0_12, %c0_13] : memref<64x12xbf16, #tpu.memory_space<vmem>>, vector<64x12xbf16>
    %c0_14 = arith.constant 0 : index
    %c0_15 = arith.constant 0 : index
    %17 = vector.load %arg7[%c0_14, %c0_15] : memref<1x12xf32, #tpu.memory_space<vmem>>, vector<1x12xf32>
    %18 = arith.truncf %15 : vector<128x64xf32> to vector<128x64xbf16>
    %cst_16 = arith.constant dense<0.000000e+00> : vector<128x12xf32>
    %19 = tpu.matmul %18, %16, %cst_16 {dimension_numbers = #tpu.dot_dimension_numbers<[1], [0], [0], [1], [0, 0, 1, 1], [], []>} : vector<128x64xbf16>, vector<64x12xbf16>, vector<128x12xf32> -> vector<128x12xf32>
    %20 = vector.broadcast %17 : vector<1x12xf32> to vector<128x12xf32>
    %21 = arith.addf %19, %20 : vector<128x12xf32>
    %cst_17 = arith.constant 0.000000e+00 : f32
    %22 = vector.broadcast %cst_17 : f32 to vector<128x12xf32>
    %23 = arith.maximumf %21, %22 : vector<128x12xf32>
    %c0_18 = arith.constant 0 : index
    %c0_19 = arith.constant 0 : index
    %24 = vector.load %arg8[%c0_18, %c0_19] : memref<12x12xbf16, #tpu.memory_space<vmem>>, vector<12x12xbf16>
    %c0_20 = arith.constant 0 : index
    %c0_21 = arith.constant 0 : index
    %25 = vector.load %arg9[%c0_20, %c0_21] : memref<1x12xf32, #tpu.memory_space<vmem>>, vector<1x12xf32>
    %26 = arith.truncf %23 : vector<128x12xf32> to vector<128x12xbf16>
    %cst_22 = arith.constant dense<0.000000e+00> : vector<128x12xf32>
    %27 = tpu.matmul %26, %24, %cst_22 {dimension_numbers = #tpu.dot_dimension_numbers<[1], [0], [0], [1], [0, 0, 1, 1], [], []>} : vector<128x12xbf16>, vector<12x12xbf16>, vector<128x12xf32> -> vector<128x12xf32>
    %28 = vector.broadcast %25 : vector<1x12xf32> to vector<128x12xf32>
    %29 = arith.addf %27, %28 : vector<128x12xf32>
    %cst_23 = arith.constant 0.000000e+00 : f32
    %30 = vector.broadcast %cst_23 : f32 to vector<128x12xf32>
    %31 = arith.maximumf %29, %30 : vector<128x12xf32>
    %c0_24 = arith.constant 0 : index
    %c0_25 = arith.constant 0 : index
    %32 = vector.load %arg10[%c0_24, %c0_25] : memref<12x64xbf16, #tpu.memory_space<vmem>>, vector<12x64xbf16>
    %c0_26 = arith.constant 0 : index
    %c0_27 = arith.constant 0 : index
    %33 = vector.load %arg11[%c0_26, %c0_27] : memref<1x64xf32, #tpu.memory_space<vmem>>, vector<1x64xf32>
    %34 = arith.truncf %31 : vector<128x12xf32> to vector<128x12xbf16>
    %cst_28 = arith.constant dense<0.000000e+00> : vector<128x64xf32>
    %35 = tpu.matmul %34, %32, %cst_28 {dimension_numbers = #tpu.dot_dimension_numbers<[1], [0], [0], [1], [0, 0, 1, 1], [], []>} : vector<128x12xbf16>, vector<12x64xbf16>, vector<128x64xf32> -> vector<128x64xf32>
    %36 = vector.broadcast %33 : vector<1x64xf32> to vector<128x64xf32>
    %37 = arith.addf %35, %36 : vector<128x64xf32>
    %cst_29 = arith.constant 0.000000e+00 : f32
    %38 = vector.broadcast %cst_29 : f32 to vector<128x64xf32>
    %39 = arith.maximumf %37, %38 : vector<128x64xf32>
    %c0_30 = arith.constant 0 : index
    %c0_31 = arith.constant 0 : index
    %40 = vector.load %arg12[%c0_30, %c0_31] : memref<64x128xbf16, #tpu.memory_space<vmem>>, vector<64x128xbf16>
    %c0_32 = arith.constant 0 : index
    %c0_33 = arith.constant 0 : index
    %41 = vector.load %arg13[%c0_32, %c0_33] : memref<1x128xf32, #tpu.memory_space<vmem>>, vector<1x128xf32>
    %42 = arith.truncf %39 : vector<128x64xf32> to vector<128x64xbf16>
    %cst_34 = arith.constant dense<0.000000e+00> : vector<128x128xf32>
    %43 = tpu.matmul %42, %40, %cst_34 {dimension_numbers = #tpu.dot_dimension_numbers<[1], [0], [0], [1], [0, 0, 1, 1], [], []>} : vector<128x64xbf16>, vector<64x128xbf16>, vector<128x128xf32> -> vector<128x128xf32>
    %44 = vector.broadcast %41 : vector<1x128xf32> to vector<128x128xf32>
    %45 = arith.addf %43, %44 : vector<128x128xf32>
    %cst_35 = arith.constant 0.000000e+00 : f32
    %46 = vector.broadcast %cst_35 : f32 to vector<128x128xf32>
    %47 = arith.maximumf %45, %46 : vector<128x128xf32>
    %c0_36 = arith.constant 0 : index
    %c0_37 = arith.constant 0 : index
    %48 = vector.load %arg14[%c0_36, %c0_37] : memref<128x784xbf16, #tpu.memory_space<vmem>>, vector<128x784xbf16>
    %c0_38 = arith.constant 0 : index
    %c0_39 = arith.constant 0 : index
    %49 = vector.load %arg15[%c0_38, %c0_39] : memref<1x784xf32, #tpu.memory_space<vmem>>, vector<1x784xf32>
    %50 = arith.truncf %47 : vector<128x128xf32> to vector<128x128xbf16>
    %cst_40 = arith.constant dense<0.000000e+00> : vector<128x784xf32>
    %51 = tpu.matmul %50, %48, %cst_40 {dimension_numbers = #tpu.dot_dimension_numbers<[1], [0], [0], [1], [0, 0, 1, 1], [], []>} : vector<128x128xbf16>, vector<128x784xbf16>, vector<128x784xf32> -> vector<128x784xf32>
    %52 = vector.broadcast %49 : vector<1x784xf32> to vector<128x784xf32>
    %53 = arith.addf %51, %52 : vector<128x784xf32>
    %54 = arith.negf %53 : vector<128x784xf32>
    %55 = math.exp %54 : vector<128x784xf32>
    %cst_41 = arith.constant 1.000000e+00 : f32
    %56 = vector.broadcast %cst_41 : f32 to vector<128x784xf32>
    %57 = arith.addf %56, %55 : vector<128x784xf32>
    %58 = arith.divf %56, %57 : vector<128x784xf32>
    %c0_42 = arith.constant 0 : index
    %c0_43 = arith.constant 0 : index
    %59 = vector.load %arg16[%c0_42, %c0_43] : memref<128x784xf32, #tpu.memory_space<vmem>>, vector<128x784xf32>
    tpu.vector_store %arg16[%c0_42, %c0_43], %58 {strides = array<i32>} : memref<128x784xf32, #tpu.memory_space<vmem>>, vector<128x784xf32>,
    return
  }
  func.func @transform_0(%arg0: i32) -> (i32, i32) {
    %c0_i32 = arith.constant 0 : i32
    %c0_i32_0 = arith.constant 0 : i32
    return %arg0, %c0_i32 : i32, i32
  }
  func.func @transform_1(%arg0: i32) -> (i32, i32) {
    %c0_i32 = arith.constant 0 : i32
    %c0_i32_0 = arith.constant 0 : i32
    %c0_i32_1 = arith.constant 0 : i32
    return %c0_i32, %c0_i32_0 : i32, i32
  }
  func.func @transform_2(%arg0: i32) -> (i32, i32) {
    %c0_i32 = arith.constant 0 : i32
    %c0_i32_0 = arith.constant 0 : i32
    %c0_i32_1 = arith.constant 0 : i32
    return %c0_i32, %c0_i32_0 : i32, i32
  }
  func.func @transform_3(%arg0: i32) -> (i32, i32) {
    %c0_i32 = arith.constant 0 : i32
    %c0_i32_0 = arith.constant 0 : i32
    %c0_i32_1 = arith.constant 0 : i32
    return %c0_i32, %c0_i32_0 : i32, i32
  }
  func.func @transform_4(%arg0: i32) -> (i32, i32) {
    %c0_i32 = arith.constant 0 : i32
    %c0_i32_0 = arith.constant 0 : i32
    %c0_i32_1 = arith.constant 0 : i32
    return %c0_i32, %c0_i32_0 : i32, i32
  }
  func.func @transform_5(%arg0: i32) -> (i32, i32) {
    %c0_i32 = arith.constant 0 : i32
    %c0_i32_0 = arith.constant 0 : i32
    %c0_i32_1 = arith.constant 0 : i32
    return %c0_i32, %c0_i32_0 : i32, i32
  }
  func.func @transform_6(%arg0: i32) -> (i32, i32) {
    %c0_i32 = arith.constant 0 : i32
    %c0_i32_0 = arith.constant 0 : i32
    %c0_i32_1 = arith.constant 0 : i32
    return %c0_i32, %c0_i32_0 : i32, i32
  }
  func.func @transform_7(%arg0: i32) -> (i32, i32) {
    %c0_i32 = arith.constant 0 : i32
    %c0_i32_0 = arith.constant 0 : i32
    %c0_i32_1 = arith.constant 0 : i32
    return %c0_i32, %c0_i32_0 : i32, i32
  }
  func.func @transform_8(%arg0: i32) -> (i32, i32) {
    %c0_i32 = arith.constant 0 : i32
    %c0_i32_0 = arith.constant 0 : i32
    %c0_i32_1 = arith.constant 0 : i32
    return %c0_i32, %c0_i32_0 : i32, i32
  }
  func.func @transform_9(%arg0: i32) -> (i32, i32) {
    %c0_i32 = arith.constant 0 : i32
    %c0_i32_0 = arith.constant 0 : i32
    %c0_i32_1 = arith.constant 0 : i32
    return %c0_i32, %c0_i32_0 : i32, i32
  }
  func.func @transform_10(%arg0: i32) -> (i32, i32) {
    %c0_i32 = arith.constant 0 : i32
    %c0_i32_0 = arith.constant 0 : i32
    %c0_i32_1 = arith.constant 0 : i32
    return %c0_i32, %c0_i32_0 : i32, i32
  }
  func.func @transform_11(%arg0: i32) -> (i32, i32) {
    %c0_i32 = arith.constant 0 : i32
    %c0_i32_0 = arith.constant 0 : i32
    %c0_i32_1 = arith.constant 0 : i32
    return %c0_i32, %c0_i32_0 : i32, i32
  }
  func.func @transform_12(%arg0: i32) -> (i32, i32) {
    %c0_i32 = arith.constant 0 : i32
    %c0_i32_0 = arith.constant 0 : i32
    %c0_i32_1 = arith.constant 0 : i32
    return %c0_i32, %c0_i32_0 : i32, i32
  }
  func.func @transform_13(%arg0: i32) -> (i32, i32) {
    %c0_i32 = arith.constant 0 : i32
    %c0_i32_0 = arith.constant 0 : i32
    %c0_i32_1 = arith.constant 0 : i32
    return %c0_i32, %c0_i32_0 : i32, i32
  }
  func.func @transform_14(%arg0: i32) -> (i32, i32) {
    %c0_i32 = arith.constant 0 : i32
    %c0_i32_0 = arith.constant 0 : i32
    %c0_i32_1 = arith.constant 0 : i32
    return %c0_i32, %c0_i32_0 : i32, i32
  }
  func.func @transform_15(%arg0: i32) -> (i32, i32) {
    %c0_i32 = arith.constant 0 : i32
    %c0_i32_0 = arith.constant 0 : i32
    return %arg0, %c0_i32 : i32, i32
  }
}

</mosaic_0001>

<llo_original>
// kernel: tpu_custom_call.1
$region0: #{tpu_custom_call.1}
  #allocation0 [shape = 'u32[]', space=smem, size = 0x4, offset = 0x4, fixed_abs, tag = 'smem constant byte address 0x4 - core index']
  #allocation1 [shape = 'u32[144,128]{1,0:T(1,128)}', space=vmem, size = 0x12000, scoped, tag = 'internal scratch']
  %s0 = inlined_call_operand.vmem [shape: bf16[256,784], index: 0, kind: input, shape index: {}]
  %s1 = inlined_call_operand.vmem [shape: bf16[784,128], index: 1, kind: input, shape index: {}]
  %s2 = inlined_call_operand.vmem [shape: f32[1,128], index: 2, kind: input, shape index: {}]
  %s3 = inlined_call_operand.vmem [shape: bf16[128,64], index: 3, kind: input, shape index: {}]
  %s4 = inlined_call_operand.vmem [shape: f32[1,64], index: 4, kind: input, shape index: {}]
  %s5 = inlined_call_operand.vmem [shape: bf16[64,12], index: 5, kind: input, shape index: {}]
  %s6 = inlined_call_operand.vmem [shape: f32[1,12], index: 6, kind: input, shape index: {}]
  %s7 = inlined_call_operand.vmem [shape: bf16[12,12], index: 7, kind: input, shape index: {}]
  %s8 = inlined_call_operand.vmem [shape: f32[1,12], index: 8, kind: input, shape index: {}]
  %s9 = inlined_call_operand.vmem [shape: bf16[12,64], index: 9, kind: input, shape index: {}]
  %s10 = inlined_call_operand.vmem [shape: f32[1,64], index: 10, kind: input, shape index: {}]
  %s11 = inlined_call_operand.vmem [shape: bf16[64,128], index: 11, kind: input, shape index: {}]
  %s12 = inlined_call_operand.vmem [shape: f32[1,128], index: 12, kind: input, shape index: {}]
  %s13 = inlined_call_operand.vmem [shape: bf16[128,784], index: 13, kind: input, shape index: {}]
  %s14 = inlined_call_operand.vmem [shape: f32[1,784], index: 14, kind: input, shape index: {}]
  %s15 = inlined_call_operand.vmem [shape: f32[256,784], index: 15, kind: output, shape index: {}]
  %s16 = sld [smem:[#allocation0]]
  $region93: #{tpu_custom_call.1} parent=0
    _
  %s18 = ssub.s32 1, %s16
  %s19 = scalar_select 0, %s18, %s16
  loop: start=0, step=1, limit=4
  $region2: #{tpu_custom_call.1} parent=0 // loop_pre_header
    _
  $region3: #{tpu_custom_call.1} parent=0 // loop_header
    %s21 = sphi 0, %s25
    %p22 = scmp.ge.s32.totalorder %s21, 4
    %s31 = sphi 0, %s33
    %s34 = sphi 0, %s31
    %s35 = sphi 0, %s34
    %s51 = sphi 0, %s35
    %s55 = sphi 0, %s55
    %s57 = sphi 0, %s55
    %s58 = sphi 0, %s57
    %s72 = sphi 0, %s58
    %s76 = sphi 0, %s76
    %s78 = sphi 0, %s76
    %s79 = sphi 0, %s78
    %s93 = sphi 0, %s79
    %s97 = sphi 0, %s97
    %s99 = sphi 0, %s97
    %s100 = sphi 0, %s99
    %s114 = sphi 0, %s100
    %s118 = sphi 0, %s118
    %s120 = sphi 0, %s118
    %s121 = sphi 0, %s120
    %s135 = sphi 0, %s121
    %s139 = sphi 0, %s139
    %s141 = sphi 0, %s139
    %s142 = sphi 0, %s141
    %s156 = sphi 0, %s142
    %s160 = sphi 0, %s160
    %s162 = sphi 0, %s160
    %s163 = sphi 0, %s162
    %s177 = sphi 0, %s163
    %s181 = sphi 0, %s181
    %s183 = sphi 0, %s181
    %s184 = sphi 0, %s183
    %s198 = sphi 0, %s184
    %s202 = sphi 0, %s202
    %s204 = sphi 0, %s202
    %s205 = sphi 0, %s204
    %s219 = sphi 0, %s205
    %s223 = sphi 0, %s223
    %s225 = sphi 0, %s223
    %s226 = sphi 0, %s225
    %s240 = sphi 0, %s226
    %s244 = sphi 0, %s244
    %s246 = sphi 0, %s244
    %s247 = sphi 0, %s246
    %s261 = sphi 0, %s247
    %s265 = sphi 0, %s265
    %s267 = sphi 0, %s265
    %s268 = sphi 0, %s267
    %s282 = sphi 0, %s268
    %s286 = sphi 0, %s286
    %s288 = sphi 0, %s286
    %s289 = sphi 0, %s288
    %s303 = sphi 0, %s289
    %s307 = sphi 0, %s307
    %s309 = sphi 0, %s307
    %s310 = sphi 0, %s309
    %s324 = sphi 0, %s310
    %s328 = sphi 0, %s328
    %s330 = sphi 0, %s328
    %s331 = sphi 0, %s330
    %s345 = sphi 0, %s331
    %s351 = sphi 0, %s353
    %s354 = sphi 0, %s351
    %s355 = sphi 0, %s354
    %s371 = sphi 0, %s355
  $region4: #{tpu_custom_call.1} parent=0 // loop_header_branch
    %24 = sbr.rel (%p22) target = $region8
  $region5: #{tpu_custom_call.1} parent=0 // loop_body
    %s26 = ssub.s32 %s21, 1
    %s27 = ssub.s32 %s21, 2
    %s28 = sadd.s32 %s21, 1
    %s29 = ssub.s32 %s21, %s28
    %p30 = scmp.eq.s32.totalorder %s29, 0
    %s32 = sadd.s32 %s31, 1
    %s33 = scalar_select %p30, %s31, %s32
    %p36 = pneg %p30
    %p37 = scmp.eq.s32.totalorder %s21, 1
    %p38 = por %p36, %p37
    %p39 = scmp.ne.s32.totalorder %s31, %s34
    %p40 = scmp.eq.s32.totalorder %s21, 0
    %p41 = por %p39, %p40
    %p42 = scmp.ne.s32.totalorder %s31, %s34
    %p43 = scmp.eq.s32.totalorder %s26, 1
    %p44 = por %p42, %p43
    %p45 = scmp.ne.s32.totalorder %s34, %s35
    %p46 = scmp.eq.s32.totalorder %s26, 0
    %p47 = por %p45, %p46
    %p48 = scmp.ne.s32.totalorder %s34, %s35
    %p49 = scmp.eq.s32.totalorder %s27, 1
    %p50 = por %p48, %p49
    %p52 = scmp.ne.s32.totalorder %s35, %s51
    %p53 = scmp.eq.s32.totalorder %s27, 0
    %p54 = por %p52, %p53
    %s56 = sadd.s32 %s55, 1
    %p59 = scmp.eq.s32.totalorder %s21, 1
    %p60 = scmp.ne.s32.totalorder %s55, %s57
    %p61 = scmp.eq.s32.totalorder %s21, 0
    %p62 = por %p60, %p61
    %p63 = scmp.ne.s32.totalorder %s55, %s57
    %p64 = scmp.eq.s32.totalorder %s26, 1
    %p65 = por %p63, %p64
    %p66 = scmp.ne.s32.totalorder %s57, %s58
    %p67 = scmp.eq.s32.totalorder %s26, 0
    %p68 = por %p66, %p67
    %p69 = scmp.ne.s32.totalorder %s57, %s58
    %p70 = scmp.eq.s32.totalorder %s27, 1
    %p71 = por %p69, %p70
    %p73 = scmp.ne.s32.totalorder %s58, %s72
    %p74 = scmp.eq.s32.totalorder %s27, 0
    %p75 = por %p73, %p74
    %s77 = sadd.s32 %s76, 1
    %p80 = scmp.eq.s32.totalorder %s21, 1
    %p81 = scmp.ne.s32.totalorder %s76, %s78
    %p82 = scmp.eq.s32.totalorder %s21, 0
    %p83 = por %p81, %p82
    %p84 = scmp.ne.s32.totalorder %s76, %s78
    %p85 = scmp.eq.s32.totalorder %s26, 1
    %p86 = por %p84, %p85
    %p87 = scmp.ne.s32.totalorder %s78, %s79
    %p88 = scmp.eq.s32.totalorder %s26, 0
    %p89 = por %p87, %p88
    %p90 = scmp.ne.s32.totalorder %s78, %s79
    %p91 = scmp.eq.s32.totalorder %s27, 1
    %p92 = por %p90, %p91
    %p94 = scmp.ne.s32.totalorder %s79, %s93
    %p95 = scmp.eq.s32.totalorder %s27, 0
    %p96 = por %p94, %p95
    %s98 = sadd.s32 %s97, 1
    %p101 = scmp.eq.s32.totalorder %s21, 1
    %p102 = scmp.ne.s32.totalorder %s97, %s99
    %p103 = scmp.eq.s32.totalorder %s21, 0
    %p104 = por %p102, %p103
    %p105 = scmp.ne.s32.totalorder %s97, %s99
    %p106 = scmp.eq.s32.totalorder %s26, 1
    %p107 = por %p105, %p106
    %p108 = scmp.ne.s32.totalorder %s99, %s100
    %p109 = scmp.eq.s32.totalorder %s26, 0
    %p110 = por %p108, %p109
    %p111 = scmp.ne.s32.totalorder %s99, %s100
    %p112 = scmp.eq.s32.totalorder %s27, 1
    %p113 = por %p111, %p112
    %p115 = scmp.ne.s32.totalorder %s100, %s114
    %p116 = scmp.eq.s32.totalorder %s27, 0
    %p117 = por %p115, %p116
    %s119 = sadd.s32 %s118, 1
    %p122 = scmp.eq.s32.totalorder %s21, 1
    %p123 = scmp.ne.s32.totalorder %s118, %s120
    %p124 = scmp.eq.s32.totalorder %s21, 0
    %p125 = por %p123, %p124
    %p126 = scmp.ne.s32.totalorder %s118, %s120
    %p127 = scmp.eq.s32.totalorder %s26, 1
    %p128 = por %p126, %p127
    %p129 = scmp.ne.s32.totalorder %s120, %s121
    %p130 = scmp.eq.s32.totalorder %s26, 0
    %p131 = por %p129, %p130
    %p132 = scmp.ne.s32.totalorder %s120, %s121
    %p133 = scmp.eq.s32.totalorder %s27, 1
    %p134 = por %p132, %p133
    %p136 = scmp.ne.s32.totalorder %s121, %s135
    %p137 = scmp.eq.s32.totalorder %s27, 0
    %p138 = por %p136, %p137
    %s140 = sadd.s32 %s139, 1
    %p143 = scmp.eq.s32.totalorder %s21, 1
    %p144 = scmp.ne.s32.totalorder %s139, %s141
    %p145 = scmp.eq.s32.totalorder %s21, 0
    %p146 = por %p144, %p145
    %p147 = scmp.ne.s32.totalorder %s139, %s141
    %p148 = scmp.eq.s32.totalorder %s26, 1
    %p149 = por %p147, %p148
    %p150 = scmp.ne.s32.totalorder %s141, %s142
    %p151 = scmp.eq.s32.totalorder %s26, 0
    %p152 = por %p150, %p151
    %p153 = scmp.ne.s32.totalorder %s141, %s142
    %p154 = scmp.eq.s32.totalorder %s27, 1
    %p155 = por %p153, %p154
    %p157 = scmp.ne.s32.totalorder %s142, %s156
    %p158 = scmp.eq.s32.totalorder %s27, 0
    %p159 = por %p157, %p158
    %s161 = sadd.s32 %s160, 1
    %p164 = scmp.eq.s32.totalorder %s21, 1
    %p165 = scmp.ne.s32.totalorder %s160, %s162
    %p166 = scmp.eq.s32.totalorder %s21, 0
    %p167 = por %p165, %p166
    %p168 = scmp.ne.s32.totalorder %s160, %s162
    %p169 = scmp.eq.s32.totalorder %s26, 1
    %p170 = por %p168, %p169
    %p171 = scmp.ne.s32.totalorder %s162, %s163
    %p172 = scmp.eq.s32.totalorder %s26, 0
    %p173 = por %p171, %p172
    %p174 = scmp.ne.s32.totalorder %s162, %s163
    %p175 = scmp.eq.s32.totalorder %s27, 1
    %p176 = por %p174, %p175
    %p178 = scmp.ne.s32.totalorder %s163, %s177
    %p179 = scmp.eq.s32.totalorder %s27, 0
    %p180 = por %p178, %p179
    %s182 = sadd.s32 %s181, 1
    %p185 = scmp.eq.s32.totalorder %s21, 1
    %p186 = scmp.ne.s32.totalorder %s181, %s183
    %p187 = scmp.eq.s32.totalorder %s21, 0
    %p188 = por %p186, %p187
    %p189 = scmp.ne.s32.totalorder %s181, %s183
    %p190 = scmp.eq.s32.totalorder %s26, 1
    %p191 = por %p189, %p190
    %p192 = scmp.ne.s32.totalorder %s183, %s184
    %p193 = scmp.eq.s32.totalorder %s26, 0
    %p194 = por %p192, %p193
    %p195 = scmp.ne.s32.totalorder %s183, %s184
    %p196 = scmp.eq.s32.totalorder %s27, 1
    %p197 = por %p195, %p196
    %p199 = scmp.ne.s32.totalorder %s184, %s198
    %p200 = scmp.eq.s32.totalorder %s27, 0
    %p201 = por %p199, %p200
    %s203 = sadd.s32 %s202, 1
    %p206 = scmp.eq.s32.totalorder %s21, 1
    %p207 = scmp.ne.s32.totalorder %s202, %s204
    %p208 = scmp.eq.s32.totalorder %s21, 0
    %p209 = por %p207, %p208
    %p210 = scmp.ne.s32.totalorder %s202, %s204
    %p211 = scmp.eq.s32.totalorder %s26, 1
    %p212 = por %p210, %p211
    %p213 = scmp.ne.s32.totalorder %s204, %s205
    %p214 = scmp.eq.s32.totalorder %s26, 0
    %p215 = por %p213, %p214
    %p216 = scmp.ne.s32.totalorder %s204, %s205
    %p217 = scmp.eq.s32.totalorder %s27, 1
    %p218 = por %p216, %p217
    %p220 = scmp.ne.s32.totalorder %s205, %s219
    %p221 = scmp.eq.s32.totalorder %s27, 0
    %p222 = por %p220, %p221
    %s224 = sadd.s32 %s223, 1
    %p227 = scmp.eq.s32.totalorder %s21, 1
    %p228 = scmp.ne.s32.totalorder %s223, %s225
    %p229 = scmp.eq.s32.totalorder %s21, 0
    %p230 = por %p228, %p229
    %p231 = scmp.ne.s32.totalorder %s223, %s225
    %p232 = scmp.eq.s32.totalorder %s26, 1
    %p233 = por %p231, %p232
    %p234 = scmp.ne.s32.totalorder %s225, %s226
    %p235 = scmp.eq.s32.totalorder %s26, 0
    %p236 = por %p234, %p235
    %p237 = scmp.ne.s32.totalorder %s225, %s226
    %p238 = scmp.eq.s32.totalorder %s27, 1
    %p239 = por %p237, %p238
    %p241 = scmp.ne.s32.totalorder %s226, %s240
    %p242 = scmp.eq.s32.totalorder %s27, 0
    %p243 = por %p241, %p242
    %s245 = sadd.s32 %s244, 1
    %p248 = scmp.eq.s32.totalorder %s21, 1
    %p249 = scmp.ne.s32.totalorder %s244, %s246
    %p250 = scmp.eq.s32.totalorder %s21, 0
    %p251 = por %p249, %p250
    %p252 = scmp.ne.s32.totalorder %s244, %s246
    %p253 = scmp.eq.s32.totalorder %s26, 1
    %p254 = por %p252, %p253
    %p255 = scmp.ne.s32.totalorder %s246, %s247
    %p256 = scmp.eq.s32.totalorder %s26, 0
    %p257 = por %p255, %p256
    %p258 = scmp.ne.s32.totalorder %s246, %s247
    %p259 = scmp.eq.s32.totalorder %s27, 1
    %p260 = por %p258, %p259
    %p262 = scmp.ne.s32.totalorder %s247, %s261
    %p263 = scmp.eq.s32.totalorder %s27, 0
    %p264 = por %p262, %p263
    %s266 = sadd.s32 %s265, 1
    %p269 = scmp.eq.s32.totalorder %s21, 1
    %p270 = scmp.ne.s32.totalorder %s265, %s267
    %p271 = scmp.eq.s32.totalorder %s21, 0
    %p272 = por %p270, %p271
    %p273 = scmp.ne.s32.totalorder %s265, %s267
    %p274 = scmp.eq.s32.totalorder %s26, 1
    %p275 = por %p273, %p274
    %p276 = scmp.ne.s32.totalorder %s267, %s268
    %p277 = scmp.eq.s32.totalorder %s26, 0
    %p278 = por %p276, %p277
    %p279 = scmp.ne.s32.totalorder %s267, %s268
    %p280 = scmp.eq.s32.totalorder %s27, 1
    %p281 = por %p279, %p280
    %p283 = scmp.ne.s32.totalorder %s268, %s282
    %p284 = scmp.eq.s32.totalorder %s27, 0
    %p285 = por %p283, %p284
    %s287 = sadd.s32 %s286, 1
    %p290 = scmp.eq.s32.totalorder %s21, 1
    %p291 = scmp.ne.s32.totalorder %s286, %s288
    %p292 = scmp.eq.s32.totalorder %s21, 0
    %p293 = por %p291, %p292
    %p294 = scmp.ne.s32.totalorder %s286, %s288
    %p295 = scmp.eq.s32.totalorder %s26, 1
    %p296 = por %p294, %p295
    %p297 = scmp.ne.s32.totalorder %s288, %s289
    %p298 = scmp.eq.s32.totalorder %s26, 0
    %p299 = por %p297, %p298
    %p300 = scmp.ne.s32.totalorder %s288, %s289
    %p301 = scmp.eq.s32.totalorder %s27, 1
    %p302 = por %p300, %p301
    %p304 = scmp.ne.s32.totalorder %s289, %s303
    %p305 = scmp.eq.s32.totalorder %s27, 0
    %p306 = por %p304, %p305
    %s308 = sadd.s32 %s307, 1
    %p311 = scmp.eq.s32.totalorder %s21, 1
    %p312 = scmp.ne.s32.totalorder %s307, %s309
    %p313 = scmp.eq.s32.totalorder %s21, 0
    %p314 = por %p312, %p313
    %p315 = scmp.ne.s32.totalorder %s307, %s309
    %p316 = scmp.eq.s32.totalorder %s26, 1
    %p317 = por %p315, %p316
    %p318 = scmp.ne.s32.totalorder %s309, %s310
    %p319 = scmp.eq.s32.totalorder %s26, 0
    %p320 = por %p318, %p319
    %p321 = scmp.ne.s32.totalorder %s309, %s310
    %p322 = scmp.eq.s32.totalorder %s27, 1
    %p323 = por %p321, %p322
    %p325 = scmp.ne.s32.totalorder %s310, %s324
    %p326 = scmp.eq.s32.totalorder %s27, 0
    %p327 = por %p325, %p326
    %s329 = sadd.s32 %s328, 1
    %p332 = scmp.eq.s32.totalorder %s21, 1
    %p333 = scmp.ne.s32.totalorder %s328, %s330
    %p334 = scmp.eq.s32.totalorder %s21, 0
    %p335 = por %p333, %p334
    %p336 = scmp.ne.s32.totalorder %s328, %s330
    %p337 = scmp.eq.s32.totalorder %s26, 1
    %p338 = por %p336, %p337
    %p339 = scmp.ne.s32.totalorder %s330, %s331
    %p340 = scmp.eq.s32.totalorder %s26, 0
    %p341 = por %p339, %p340
    %p342 = scmp.ne.s32.totalorder %s330, %s331
    %p343 = scmp.eq.s32.totalorder %s27, 1
    %p344 = por %p342, %p343
    %p346 = scmp.ne.s32.totalorder %s331, %s345
    %p347 = scmp.eq.s32.totalorder %s27, 0
    %p348 = por %p346, %p347
    %s349 = ssub.s32 %s21, %s28
    %p350 = scmp.eq.s32.totalorder %s349, 0
    %s352 = sadd.s32 %s351, 1
    %s353 = scalar_select %p350, %s351, %s352
    %p356 = pneg %p350
    %p357 = scmp.eq.s32.totalorder %s21, 1
    %p358 = por %p356, %p357
    %p359 = scmp.ne.s32.totalorder %s351, %s354
    %p360 = scmp.eq.s32.totalorder %s21, 0
    %p361 = por %p359, %p360
    %p362 = scmp.ne.s32.totalorder %s351, %s354
    %p363 = scmp.eq.s32.totalorder %s26, 1
    %p364 = por %p362, %p363
    %p365 = scmp.ne.s32.totalorder %s354, %s355
    %p366 = scmp.eq.s32.totalorder %s26, 0
    %p367 = por %p365, %p366
    %p368 = scmp.ne.s32.totalorder %s354, %s355
    %p369 = scmp.eq.s32.totalorder %s27, 1
    %p370 = por %p368, %p369
    %p372 = scmp.ne.s32.totalorder %s355, %s371
    %p373 = scmp.eq.s32.totalorder %s27, 0
    %p374 = por %p372, %p373
    %p375 = scmp.le.s32.totalorder 1, %s21
    %p376 = scmp.lt.s32.totalorder %s21, 3
    %p377 = pnand %p375, %p376
    %p378 = pneg %p377
    // Predicated region
    $region9: #{tpu_custom_call.1} parent=5 // pred_check
      _
    $region10: #{tpu_custom_call.1} parent=5 // pred_check_branch
      %380 = sbr.rel (%p377) target = $region12
    $region11: #{tpu_custom_call.1} parent=5 // pred_region
      %s381 = ssub.s32 %s21, 1
      // Predicated region
      $region13: #{tpu_custom_call.1} parent=11 // pred_check
        %p382 = pneg %p68
      $region14: #{tpu_custom_call.1} parent=11 // pred_check_branch
        %384 = sbr.rel (%p382) target = $region16
      $region15: #{tpu_custom_call.1} parent=11 // pred_region
        _
      $region16: #{tpu_custom_call.1} parent=11 // pred_fallthru
        _
      // Predicated region
      $region17: #{tpu_custom_call.1} parent=11 // pred_check
        %p385 = pneg %p89
      $region18: #{tpu_custom_call.1} parent=11 // pred_check_branch
        %387 = sbr.rel (%p385) target = $region20
      $region19: #{tpu_custom_call.1} parent=11 // pred_region
        _
      $region20: #{tpu_custom_call.1} parent=11 // pred_fallthru
        _
      // Predicated region
      $region21: #{tpu_custom_call.1} parent=11 // pred_check
        %p388 = pneg %p110
      $region22: #{tpu_custom_call.1} parent=11 // pred_check_branch
        %390 = sbr.rel (%p388) target = $region24
      $region23: #{tpu_custom_call.1} parent=11 // pred_region
        _
      $region24: #{tpu_custom_call.1} parent=11 // pred_fallthru
        _
      // Predicated region
      $region25: #{tpu_custom_call.1} parent=11 // pred_check
        %p391 = pneg %p131
      $region26: #{tpu_custom_call.1} parent=11 // pred_check_branch
        %393 = sbr.rel (%p391) target = $region28
      $region27: #{tpu_custom_call.1} parent=11 // pred_region
        _
      $region28: #{tpu_custom_call.1} parent=11 // pred_fallthru
        _
      // Predicated region
      $region29: #{tpu_custom_call.1} parent=11 // pred_check
        %p394 = pneg %p152
      $region30: #{tpu_custom_call.1} parent=11 // pred_check_branch
        %396 = sbr.rel (%p394) target = $region32
      $region31: #{tpu_custom_call.1} parent=11 // pred_region
        _
      $region32: #{tpu_custom_call.1} parent=11 // pred_fallthru
        _
      // Predicated region
      $region33: #{tpu_custom_call.1} parent=11 // pred_check
        %p397 = pneg %p173
      $region34: #{tpu_custom_call.1} parent=11 // pred_check_branch
        %399 = sbr.rel (%p397) target = $region36
      $region35: #{tpu_custom_call.1} parent=11 // pred_region
        _
      $region36: #{tpu_custom_call.1} parent=11 // pred_fallthru
        _
      // Predicated region
      $region37: #{tpu_custom_call.1} parent=11 // pred_check
        %p400 = pneg %p194
      $region38: #{tpu_custom_call.1} parent=11 // pred_check_branch
        %402 = sbr.rel (%p400) target = $region40
      $region39: #{tpu_custom_call.1} parent=11 // pred_region
        _
      $region40: #{tpu_custom_call.1} parent=11 // pred_fallthru
        _
      // Predicated region
      $region41: #{tpu_custom_call.1} parent=11 // pred_check
        %p403 = pneg %p215
      $region42: #{tpu_custom_call.1} parent=11 // pred_check_branch
        %405 = sbr.rel (%p403) target = $region44
      $region43: #{tpu_custom_call.1} parent=11 // pred_region
        _
      $region44: #{tpu_custom_call.1} parent=11 // pred_fallthru
        _
      // Predicated region
      $region45: #{tpu_custom_call.1} parent=11 // pred_check
        %p406 = pneg %p236
      $region46: #{tpu_custom_call.1} parent=11 // pred_check_branch
        %408 = sbr.rel (%p406) target = $region48
      $region47: #{tpu_custom_call.1} parent=11 // pred_region
        _
      $region48: #{tpu_custom_call.1} parent=11 // pred_fallthru
        _
      // Predicated region
      $region49: #{tpu_custom_call.1} parent=11 // pred_check
        %p409 = pneg %p257
      $region50: #{tpu_custom_call.1} parent=11 // pred_check_branch
        %411 = sbr.rel (%p409) target = $region52
      $region51: #{tpu_custom_call.1} parent=11 // pred_region
        _
      $region52: #{tpu_custom_call.1} parent=11 // pred_fallthru
        _
      // Predicated region
      $region53: #{tpu_custom_call.1} parent=11 // pred_check
        %p412 = pneg %p278
      $region54: #{tpu_custom_call.1} parent=11 // pred_check_branch
        %414 = sbr.rel (%p412) target = $region56
      $region55: #{tpu_custom_call.1} parent=11 // pred_region
        _
      $region56: #{tpu_custom_call.1} parent=11 // pred_fallthru
        _
      // Predicated region
      $region57: #{tpu_custom_call.1} parent=11 // pred_check
        %p415 = pneg %p299
      $region58: #{tpu_custom_call.1} parent=11 // pred_check_branch
        %417 = sbr.rel (%p415) target = $region60
      $region59: #{tpu_custom_call.1} parent=11 // pred_region
        _
      $region60: #{tpu_custom_call.1} parent=11 // pred_fallthru
        _
      // Predicated region
      $region61: #{tpu_custom_call.1} parent=11 // pred_check
        %p418 = pneg %p320
      $region62: #{tpu_custom_call.1} parent=11 // pred_check_branch
        %420 = sbr.rel (%p418) target = $region64
      $region63: #{tpu_custom_call.1} parent=11 // pred_region
        _
      $region64: #{tpu_custom_call.1} parent=11 // pred_fallthru
        _
      // Predicated region
      $region65: #{tpu_custom_call.1} parent=11 // pred_check
        %p421 = pneg %p341
      $region66: #{tpu_custom_call.1} parent=11 // pred_check_branch
        %423 = sbr.rel (%p421) target = $region68
      $region67: #{tpu_custom_call.1} parent=11 // pred_region
        _
      $region68: #{tpu_custom_call.1} parent=11 // pred_fallthru
        _
    $region12: #{tpu_custom_call.1} parent=5 // pred_fallthru
      _
    %p424 = scmp.lt.s32.totalorder %s21, 2
    // Predicated region
    $region69: #{tpu_custom_call.1} parent=5 // pred_check
      %p425 = pneg %p424
    $region70: #{tpu_custom_call.1} parent=5 // pred_check_branch
      %427 = sbr.rel (%p425) target = $region72
    $region71: #{tpu_custom_call.1} parent=5 // pred_region
      // Predicated region
      $region73: #{tpu_custom_call.1} parent=71 // pred_check
        %p428 = pneg %p41
      $region74: #{tpu_custom_call.1} parent=71 // pred_check_branch
        %430 = sbr.rel (%p428) target = $region76
      $region75: #{tpu_custom_call.1} parent=71 // pred_region
        %s431 = smul.u32 16, %s21
        %p432 = scmp.lt.s32.totalorder %s431, 31
        %s433 = scalar_select %p432, %s431, 31
        %s434 = smul.addr %s433, 7
        %s435 = smul.addr %s434, 4
        %s436 = scalar_lea.vmem %s0, %s435
        %s437 = smul.u32 16, %s21
      $region76: #{tpu_custom_call.1} parent=71 // pred_fallthru
        _
    $region72: #{tpu_custom_call.1} parent=5 // pred_fallthru
      _
    %p438 = scmp.le.s32.totalorder 1, %s21
    %p439 = scmp.lt.s32.totalorder %s21, 3
    %p440 = pnand %p438, %p439
    %p441 = pneg %p440
    // Predicated region
    $region77: #{tpu_custom_call.1} parent=5 // pred_check
      _
    $region78: #{tpu_custom_call.1} parent=5 // pred_check_branch
      %443 = sbr.rel (%p440) target = $region80
    $region79: #{tpu_custom_call.1} parent=5 // pred_region
      %s444 = ssub.s32 %s21, 1
      %s445 = smul.u32 16, %s26
      %p446 = scmp.lt.s32.totalorder %s445, 31
      %s447 = scalar_select %p446, %s445, 31
      %s448 = smul.addr %s447, 7
      %s449 = smul.addr %s448, 4
      %s450 = scalar_lea.vmem %s0, %s449
      %p451 = pneg %p47
      %p452 = pneg %p44
      %p453 = pneg %p68
      %p454 = pneg %p65
      %p455 = pneg %p89
      %p456 = pneg %p86
      %p457 = pneg %p110
      %p458 = pneg %p107
      %p459 = pneg %p131
      %p460 = pneg %p128
      %p461 = pneg %p152
      %p462 = pneg %p149
      %p463 = pneg %p173
      %p464 = pneg %p170
      %p465 = pneg %p194
      %p466 = pneg %p191
      %p467 = pneg %p215
      %p468 = pneg %p212
      %p469 = pneg %p236
      %p470 = pneg %p233
      %p471 = pneg %p257
      %p472 = pneg %p254
      %p473 = pneg %p278
      %p474 = pneg %p275
      %p475 = pneg %p299
      %p476 = pneg %p296
      %p477 = pneg %p320
      %p478 = pneg %p317
      %p479 = pneg %p341
      %p480 = pneg %p338
      %p481 = pneg %p367
      %p482 = pneg %p364
      %s483 = smul.u32 16, %s26
      %p484 = scmp.lt.s32.totalorder %s483, 31
      %s485 = scalar_select %p484, %s483, 31
      %s486 = smul.addr %s485, 7
      %s487 = smul.addr %s486, 8
      %s488 = scalar_lea.vmem %s15, %s487
      %s489 = smul.u32 16, %s26
      %p490 = scmp.lt.s32.totalorder %s489, 31
      %s491 = scalar_select %p490, %s489, 31
      %s492 = smul.addr %s491, 7
      %s493 = smul.addr %s492, 4
      %s494 = scalar_lea.vmem %s0, %s493
      %s495 = smul.u32 16, %s26
      %s496 = smul.u32 16, %s26
      %p497 = scmp.lt.s32.totalorder %s496, 31
      %s498 = scalar_select %p497, %s496, 31
      %s499 = smul.addr %s498, 7
      %s500 = smul.addr %s499, 8
      %s501 = scalar_lea.vmem %s15, %s500
      %s502 = smul.u32 16, %s26
      %v504 = vld [vmem:[%s494] sm:$0xff]
      %v505 = vld [vmem:[%s494 + $0x8] sm:$0xff]
      %v506 = vld [vmem:[%s494 + $0x10] sm:$0xff]
      %v507 = vld [vmem:[%s494 + $0x18] sm:$0xf]
      %v508 = vld [vmem:[%s494 + $0x1c] sm:$0xff]
      %v509 = vld [vmem:[%s494 + $0x24] sm:$0xff]
      %v510 = vld [vmem:[%s494 + $0x2c] sm:$0xff]
      %v511 = vld [vmem:[%s494 + $0x34] sm:$0xf]
      %v512 = vld [vmem:[%s494 + $0x38] sm:$0xff]
      %v513 = vld [vmem:[%s494 + $0x40] sm:$0xff]
      %v514 = vld [vmem:[%s494 + $0x48] sm:$0xff]
      %v515 = vld [vmem:[%s494 + $0x50] sm:$0xf]
      %v516 = vld [vmem:[%s494 + $0x54] sm:$0xff]
      %v517 = vld [vmem:[%s494 + $0x5c] sm:$0xff]
      %v518 = vld [vmem:[%s494 + $0x64] sm:$0xff]
      %v519 = vld [vmem:[%s494 + $0x6c] sm:$0xf]
      %v520 = vld [vmem:[%s494 + $0x70] sm:$0xff]
      %v521 = vld [vmem:[%s494 + $0x78] sm:$0xff]
      %v522 = vld [vmem:[%s494 + $0x80] sm:$0xff]
      %v523 = vld [vmem:[%s494 + $0x88] sm:$0xf]
      %v524 = vld [vmem:[%s494 + $0x8c] sm:$0xff]
      %v525 = vld [vmem:[%s494 + $0x94] sm:$0xff]
      %v526 = vld [vmem:[%s494 + $0x9c] sm:$0xff]
      %v527 = vld [vmem:[%s494 + $0xa4] sm:$0xf]
      %v528 = vld [vmem:[%s494 + $0xa8] sm:$0xff]
      %v529 = vld [vmem:[%s494 + $0xb0] sm:$0xff]
      %v530 = vld [vmem:[%s494 + $0xb8] sm:$0xff]
      %v531 = vld [vmem:[%s494 + $0xc0] sm:$0xf]
      %v532 = vld [vmem:[%s494 + $0xc4] sm:$0xff]
      %v533 = vld [vmem:[%s494 + $0xcc] sm:$0xff]
      %v534 = vld [vmem:[%s494 + $0xd4] sm:$0xff]
      %v535 = vld [vmem:[%s494 + $0xdc] sm:$0xf]
      %v536 = vld [vmem:[%s494 + $0xe0] sm:$0xff]
      %v537 = vld [vmem:[%s494 + $0xe8] sm:$0xff]
      %v538 = vld [vmem:[%s494 + $0xf0] sm:$0xff]
      %v539 = vld [vmem:[%s494 + $0xf8] sm:$0xf]
      %v540 = vld [vmem:[%s494 + $0xfc] sm:$0xff]
      %v541 = vld [vmem:[%s494 + $0x104] sm:$0xff]
      %v542 = vld [vmem:[%s494 + $0x10c] sm:$0xff]
      %v543 = vld [vmem:[%s494 + $0x114] sm:$0xf]
      %v544 = vld [vmem:[%s494 + $0x118] sm:$0xff]
      %v545 = vld [vmem:[%s494 + $0x120] sm:$0xff]
      %v546 = vld [vmem:[%s494 + $0x128] sm:$0xff]
      %v547 = vld [vmem:[%s494 + $0x130] sm:$0xf]
      %v548 = vld [vmem:[%s494 + $0x134] sm:$0xff]
      %v549 = vld [vmem:[%s494 + $0x13c] sm:$0xff]
      %v550 = vld [vmem:[%s494 + $0x144] sm:$0xff]
      %v551 = vld [vmem:[%s494 + $0x14c] sm:$0xf]
      %v552 = vld [vmem:[%s494 + $0x150] sm:$0xff]
      %v553 = vld [vmem:[%s494 + $0x158] sm:$0xff]
      %v554 = vld [vmem:[%s494 + $0x160] sm:$0xff]
      %v555 = vld [vmem:[%s494 + $0x168] sm:$0xf]
      %v556 = vld [vmem:[%s494 + $0x16c] sm:$0xff]
      %v557 = vld [vmem:[%s494 + $0x174] sm:$0xff]
      %v558 = vld [vmem:[%s494 + $0x17c] sm:$0xff]
      %v559 = vld [vmem:[%s494 + $0x184] sm:$0xf]
      %v560 = vld [vmem:[%s494 + $0x188] sm:$0xff]
      %v561 = vld [vmem:[%s494 + $0x190] sm:$0xff]
      %v562 = vld [vmem:[%s494 + $0x198] sm:$0xff]
      %v563 = vld [vmem:[%s494 + $0x1a0] sm:$0xf]
      %v564 = vld [vmem:[%s494 + $0x1a4] sm:$0xff]
      %v565 = vld [vmem:[%s494 + $0x1ac] sm:$0xff]
      %v566 = vld [vmem:[%s494 + $0x1b4] sm:$0xff]
      %v567 = vld [vmem:[%s494 + $0x1bc] sm:$0xf]
      %v568 = vld [vmem:[%s1] sm:$0xf]
      %v569 = vld [vmem:[%s1 + $0x4] sm:$0xf]
      %v570 = vld [vmem:[%s1 + $0x8] sm:$0xf]
      %v571 = vld [vmem:[%s1 + $0xc] sm:$0xf]
      %v572 = vld [vmem:[%s1 + $0x10] sm:$0xf]
      %v573 = vld [vmem:[%s1 + $0x14] sm:$0xf]
      %v574 = vld [vmem:[%s1 + $0x18] sm:$0xf]
      %v575 = vld [vmem:[%s1 + $0x1c] sm:$0xf]
      %v576 = vld [vmem:[%s1 + $0x20] sm:$0xf]
      %v577 = vld [vmem:[%s1 + $0x24] sm:$0xf]
      %v578 = vld [vmem:[%s1 + $0x28] sm:$0xf]
      %v579 = vld [vmem:[%s1 + $0x2c] sm:$0xf]
      %v580 = vld [vmem:[%s1 + $0x30] sm:$0xf]
      %v581 = vld [vmem:[%s1 + $0x34] sm:$0xf]
      %v582 = vld [vmem:[%s1 + $0x38] sm:$0xf]
      %v583 = vld [vmem:[%s1 + $0x3c] sm:$0xf]
      %v584 = vld [vmem:[%s1 + $0x40] sm:$0xf]
      %v585 = vld [vmem:[%s1 + $0x44] sm:$0xf]
      %v586 = vld [vmem:[%s1 + $0x48] sm:$0xf]
      %v587 = vld [vmem:[%s1 + $0x4c] sm:$0xf]
      %v588 = vld [vmem:[%s1 + $0x50] sm:$0xf]
      %v589 = vld [vmem:[%s1 + $0x54] sm:$0xf]
      %v590 = vld [vmem:[%s1 + $0x58] sm:$0xf]
      %v591 = vld [vmem:[%s1 + $0x5c] sm:$0xf]
      %v592 = vld [vmem:[%s1 + $0x60] sm:$0xf]
      %v593 = vld [vmem:[%s1 + $0x64] sm:$0xf]
      %v594 = vld [vmem:[%s1 + $0x68] sm:$0xf]
      %v595 = vld [vmem:[%s1 + $0x6c] sm:$0xf]
      %v596 = vld [vmem:[%s1 + $0x70] sm:$0xf]
      %v597 = vld [vmem:[%s1 + $0x74] sm:$0xf]
      %v598 = vld [vmem:[%s1 + $0x78] sm:$0xf]
      %v599 = vld [vmem:[%s1 + $0x7c] sm:$0xf]
      %v600 = vld [vmem:[%s1 + $0x80] sm:$0xf]
      %v601 = vld [vmem:[%s1 + $0x84] sm:$0xf]
      %v602 = vld [vmem:[%s1 + $0x88] sm:$0xf]
      %v603 = vld [vmem:[%s1 + $0x8c] sm:$0xf]
      %v604 = vld [vmem:[%s1 + $0x90] sm:$0xf]
      %v605 = vld [vmem:[%s1 + $0x94] sm:$0xf]
      %v606 = vld [vmem:[%s1 + $0x98] sm:$0xf]
      %v607 = vld [vmem:[%s1 + $0x9c] sm:$0xf]
      %v608 = vld [vmem:[%s1 + $0xa0] sm:$0xf]
      %v609 = vld [vmem:[%s1 + $0xa4] sm:$0xf]
      %v610 = vld [vmem:[%s1 + $0xa8] sm:$0xf]
      %v611 = vld [vmem:[%s1 + $0xac] sm:$0xf]
      %v612 = vld [vmem:[%s1 + $0xb0] sm:$0xf]
      %v613 = vld [vmem:[%s1 + $0xb4] sm:$0xf]
      %v614 = vld [vmem:[%s1 + $0xb8] sm:$0xf]
      %v615 = vld [vmem:[%s1 + $0xbc] sm:$0xf]
      %v616 = vld [vmem:[%s1 + $0xc0] sm:$0xf]
      %v617 = vld [vmem:[%s1 + $0xc4] sm:$0xf]
      %v618 = vld [vmem:[%s1 + $0xc8] sm:$0xf]
      %v619 = vld [vmem:[%s1 + $0xcc] sm:$0xf]
      %v620 = vld [vmem:[%s1 + $0xd0] sm:$0xf]
      %v621 = vld [vmem:[%s1 + $0xd4] sm:$0xf]
      %v622 = vld [vmem:[%s1 + $0xd8] sm:$0xf]
      %v623 = vld [vmem:[%s1 + $0xdc] sm:$0xf]
      %v624 = vld [vmem:[%s1 + $0xe0] sm:$0xf]
      %v625 = vld [vmem:[%s1 + $0xe4] sm:$0xf]
      %v626 = vld [vmem:[%s1 + $0xe8] sm:$0xf]
      %v627 = vld [vmem:[%s1 + $0xec] sm:$0xf]
      %v628 = vld [vmem:[%s1 + $0xf0] sm:$0xf]
      %v629 = vld [vmem:[%s1 + $0xf4] sm:$0xf]
      %v630 = vld [vmem:[%s1 + $0xf8] sm:$0xf]
      %v631 = vld [vmem:[%s1 + $0xfc] sm:$0xf]
      %v632 = vld [vmem:[%s1 + $0x100] sm:$0xf]
      %v633 = vld [vmem:[%s1 + $0x104] sm:$0xf]
      %v634 = vld [vmem:[%s1 + $0x108] sm:$0xf]
      %v635 = vld [vmem:[%s1 + $0x10c] sm:$0xf]
      %v636 = vld [vmem:[%s1 + $0x110] sm:$0xf]
      %v637 = vld [vmem:[%s1 + $0x114] sm:$0xf]
      %v638 = vld [vmem:[%s1 + $0x118] sm:$0xf]
      %v639 = vld [vmem:[%s1 + $0x11c] sm:$0xf]
      %v640 = vld [vmem:[%s1 + $0x120] sm:$0xf]
      %v641 = vld [vmem:[%s1 + $0x124] sm:$0xf]
      %v642 = vld [vmem:[%s1 + $0x128] sm:$0xf]
      %v643 = vld [vmem:[%s1 + $0x12c] sm:$0xf]
      %v644 = vld [vmem:[%s1 + $0x130] sm:$0xf]
      %v645 = vld [vmem:[%s1 + $0x134] sm:$0xf]
      %v646 = vld [vmem:[%s1 + $0x138] sm:$0xf]
      %v647 = vld [vmem:[%s1 + $0x13c] sm:$0xf]
      %v648 = vld [vmem:[%s1 + $0x140] sm:$0xf]
      %v649 = vld [vmem:[%s1 + $0x144] sm:$0xf]
      %v650 = vld [vmem:[%s1 + $0x148] sm:$0xf]
      %v651 = vld [vmem:[%s1 + $0x14c] sm:$0xf]
      %v652 = vld [vmem:[%s1 + $0x150] sm:$0xf]
      %v653 = vld [vmem:[%s1 + $0x154] sm:$0xf]
      %v654 = vld [vmem:[%s1 + $0x158] sm:$0xf]
      %v655 = vld [vmem:[%s1 + $0x15c] sm:$0xf]
      %v656 = vld [vmem:[%s1 + $0x160] sm:$0xf]
      %v657 = vld [vmem:[%s1 + $0x164] sm:$0xf]
      %v658 = vld [vmem:[%s1 + $0x168] sm:$0xf]
      %v659 = vld [vmem:[%s1 + $0x16c] sm:$0xf]
      %v660 = vld [vmem:[%s1 + $0x170] sm:$0xf]
      %v661 = vld [vmem:[%s1 + $0x174] sm:$0xf]
      %v662 = vld [vmem:[%s1 + $0x178] sm:$0xf]
      %v663 = vld [vmem:[%s1 + $0x17c] sm:$0xf]
      %v664 = vld [vmem:[%s1 + $0x180] sm:$0xf]
      %v665 = vld [vmem:[%s1 + $0x184] sm:$0xf]
      %v666 = vld [vmem:[%s2] sm:$0x1]
      %v668 = vlaneseq
      %v669 = vshrl.u32 %v668, 7
      %v670 = vsub.s32 0, %v669
      %v671 = vrot.slane %v666, %v670
      %v737 = vunpack.c.l.b16 %v504
      %v738 = vunpack.c.h.b16 %v504
      %v739 = vunpack.c.l.b16 %v505
      %v740 = vunpack.c.h.b16 %v505
      %v741 = vunpack.c.l.b16 %v506
      %v742 = vunpack.c.h.b16 %v506
      %v743 = vunpack.c.l.b16 %v507
      %v744 = vunpack.c.l.b16 %v508
      %v745 = vunpack.c.h.b16 %v508
      %v746 = vunpack.c.l.b16 %v509
      %v747 = vunpack.c.h.b16 %v509
      %v748 = vunpack.c.l.b16 %v510
      %v749 = vunpack.c.h.b16 %v510
      %v750 = vunpack.c.l.b16 %v511
      %v751 = vunpack.c.l.b16 %v512
      %v752 = vunpack.c.h.b16 %v512
      %v753 = vunpack.c.l.b16 %v513
      %v754 = vunpack.c.h.b16 %v513
      %v755 = vunpack.c.l.b16 %v514
      %v756 = vunpack.c.h.b16 %v514
      %v757 = vunpack.c.l.b16 %v515
      %v758 = vunpack.c.l.b16 %v516
      %v759 = vunpack.c.h.b16 %v516
      %v760 = vunpack.c.l.b16 %v517
      %v761 = vunpack.c.h.b16 %v517
      %v762 = vunpack.c.l.b16 %v518
      %v763 = vunpack.c.h.b16 %v518
      %v764 = vunpack.c.l.b16 %v519
      %v765 = vunpack.c.l.b16 %v520
      %v766 = vunpack.c.h.b16 %v520
      %v767 = vunpack.c.l.b16 %v521
      %v768 = vunpack.c.h.b16 %v521
      %v769 = vunpack.c.l.b16 %v522
      %v770 = vunpack.c.h.b16 %v522
      %v771 = vunpack.c.l.b16 %v523
      %v772 = vunpack.c.l.b16 %v524
      %v773 = vunpack.c.h.b16 %v524
      %v774 = vunpack.c.l.b16 %v525
      %v775 = vunpack.c.h.b16 %v525
      %v776 = vunpack.c.l.b16 %v526
      %v777 = vunpack.c.h.b16 %v526
      %v778 = vunpack.c.l.b16 %v527
      %v779 = vunpack.c.l.b16 %v528
      %v780 = vunpack.c.h.b16 %v528
      %v781 = vunpack.c.l.b16 %v529
      %v782 = vunpack.c.h.b16 %v529
      %v783 = vunpack.c.l.b16 %v530
      %v784 = vunpack.c.h.b16 %v530
      %v785 = vunpack.c.l.b16 %v531
      %v786 = vunpack.c.l.b16 %v532
      %v787 = vunpack.c.h.b16 %v532
      %v788 = vunpack.c.l.b16 %v533
      %v789 = vunpack.c.h.b16 %v533
      %v790 = vunpack.c.l.b16 %v534
      %v791 = vunpack.c.h.b16 %v534
      %v792 = vunpack.c.l.b16 %v535
      %v793 = vunpack.c.l.b16 %v536
      %v794 = vunpack.c.h.b16 %v536
      %v795 = vunpack.c.l.b16 %v537
      %v796 = vunpack.c.h.b16 %v537
      %v797 = vunpack.c.l.b16 %v538
      %v798 = vunpack.c.h.b16 %v538
      %v799 = vunpack.c.l.b16 %v539
      %v800 = vunpack.c.l.b16 %v540
      %v801 = vunpack.c.h.b16 %v540
      %v802 = vunpack.c.l.b16 %v541
      %v803 = vunpack.c.h.b16 %v541
      %v804 = vunpack.c.l.b16 %v542
      %v805 = vunpack.c.h.b16 %v542
      %v806 = vunpack.c.l.b16 %v543
      %v807 = vunpack.c.l.b16 %v544
      %v808 = vunpack.c.h.b16 %v544
      %v809 = vunpack.c.l.b16 %v545
      %v810 = vunpack.c.h.b16 %v545
      %v811 = vunpack.c.l.b16 %v546
      %v812 = vunpack.c.h.b16 %v546
      %v813 = vunpack.c.l.b16 %v547
      %v814 = vunpack.c.l.b16 %v548
      %v815 = vunpack.c.h.b16 %v548
      %v816 = vunpack.c.l.b16 %v549
      %v817 = vunpack.c.h.b16 %v549
      %v818 = vunpack.c.l.b16 %v550
      %v819 = vunpack.c.h.b16 %v550
      %v820 = vunpack.c.l.b16 %v551
      %v821 = vunpack.c.l.b16 %v552
      %v822 = vunpack.c.h.b16 %v552
      %v823 = vunpack.c.l.b16 %v553
      %v824 = vunpack.c.h.b16 %v553
      %v825 = vunpack.c.l.b16 %v554
      %v826 = vunpack.c.h.b16 %v554
      %v827 = vunpack.c.l.b16 %v555
      %v828 = vunpack.c.l.b16 %v556
      %v829 = vunpack.c.h.b16 %v556
      %v830 = vunpack.c.l.b16 %v557
      %v831 = vunpack.c.h.b16 %v557
      %v832 = vunpack.c.l.b16 %v558
      %v833 = vunpack.c.h.b16 %v558
      %v834 = vunpack.c.l.b16 %v559
      %v835 = vunpack.c.l.b16 %v560
      %v836 = vunpack.c.h.b16 %v560
      %v837 = vunpack.c.l.b16 %v561
      %v838 = vunpack.c.h.b16 %v561
      %v839 = vunpack.c.l.b16 %v562
      %v840 = vunpack.c.h.b16 %v562
      %v841 = vunpack.c.l.b16 %v563
      %v842 = vunpack.c.l.b16 %v564
      %v843 = vunpack.c.h.b16 %v564
      %v844 = vunpack.c.l.b16 %v565
      %v845 = vunpack.c.h.b16 %v565
      %v846 = vunpack.c.l.b16 %v566
      %v847 = vunpack.c.h.b16 %v566
      %v848 = vunpack.c.l.b16 %v567
      %v849 = vpack.c.b16 %v744, %v737
      %v850 = vpack.c.b16 %v745, %v738
      %v851 = vpack.c.b16 %v746, %v739
      %v852 = vpack.c.b16 %v747, %v740
      %v853 = vpack.c.b16 %v748, %v741
      %v854 = vpack.c.b16 %v749, %v742
      %v855 = vpack.c.b16 %v750, %v743
      %v856 = vpack.c.b16 %v758, %v751
      %v857 = vpack.c.b16 %v759, %v752
      %v858 = vpack.c.b16 %v760, %v753
      %v859 = vpack.c.b16 %v761, %v754
      %v860 = vpack.c.b16 %v762, %v755
      %v861 = vpack.c.b16 %v763, %v756
      %v862 = vpack.c.b16 %v764, %v757
      %v863 = vpack.c.b16 %v772, %v765
      %v864 = vpack.c.b16 %v773, %v766
      %v865 = vpack.c.b16 %v774, %v767
      %v866 = vpack.c.b16 %v775, %v768
      %v867 = vpack.c.b16 %v776, %v769
      %v868 = vpack.c.b16 %v777, %v770
      %v869 = vpack.c.b16 %v778, %v771
      %v870 = vpack.c.b16 %v786, %v779
      %v871 = vpack.c.b16 %v787, %v780
      %v872 = vpack.c.b16 %v788, %v781
      %v873 = vpack.c.b16 %v789, %v782
      %v874 = vpack.c.b16 %v790, %v783
      %v875 = vpack.c.b16 %v791, %v784
      %v876 = vpack.c.b16 %v792, %v785
      %v877 = vpack.c.b16 %v800, %v793
      %v878 = vpack.c.b16 %v801, %v794
      %v879 = vpack.c.b16 %v802, %v795
      %v880 = vpack.c.b16 %v803, %v796
      %v881 = vpack.c.b16 %v804, %v797
      %v882 = vpack.c.b16 %v805, %v798
      %v883 = vpack.c.b16 %v806, %v799
      %v884 = vpack.c.b16 %v814, %v807
      %v885 = vpack.c.b16 %v815, %v808
      %v886 = vpack.c.b16 %v816, %v809
      %v887 = vpack.c.b16 %v817, %v810
      %v888 = vpack.c.b16 %v818, %v811
      %v889 = vpack.c.b16 %v819, %v812
      %v890 = vpack.c.b16 %v820, %v813
      %v891 = vpack.c.b16 %v828, %v821
      %v892 = vpack.c.b16 %v829, %v822
      %v893 = vpack.c.b16 %v830, %v823
      %v894 = vpack.c.b16 %v831, %v824
      %v895 = vpack.c.b16 %v832, %v825
      %v896 = vpack.c.b16 %v833, %v826
      %v897 = vpack.c.b16 %v834, %v827
      %v898 = vpack.c.b16 %v842, %v835
      %v899 = vpack.c.b16 %v843, %v836
      %v900 = vpack.c.b16 %v844, %v837
      %v901 = vpack.c.b16 %v845, %v838
      %v902 = vpack.c.b16 %v846, %v839
      %v903 = vpack.c.b16 %v847, %v840
      %v904 = vpack.c.b16 %v848, %v841
      %v1051 = vunpack.c.l.b16 %v568
      %v1052 = vunpack.c.l.b16 %v569
      %v1053 = vunpack.c.l.b16 %v570
      %v1054 = vunpack.c.l.b16 %v571
      %v1055 = vunpack.c.l.b16 %v572
      %v1056 = vunpack.c.l.b16 %v573
      %v1057 = vunpack.c.l.b16 %v574
      %v1058 = vunpack.c.l.b16 %v575
      %v1059 = vunpack.c.l.b16 %v576
      %v1060 = vunpack.c.l.b16 %v577
      %v1061 = vunpack.c.l.b16 %v578
      %v1062 = vunpack.c.l.b16 %v579
      %v1063 = vunpack.c.l.b16 %v580
      %v1064 = vunpack.c.l.b16 %v581
      %v1065 = vunpack.c.l.b16 %v582
      %v1066 = vunpack.c.l.b16 %v583
      %v1067 = vunpack.c.l.b16 %v584
      %v1068 = vunpack.c.l.b16 %v585
      %v1069 = vunpack.c.l.b16 %v586
      %v1070 = vunpack.c.l.b16 %v587
      %v1071 = vunpack.c.l.b16 %v588
      %v1072 = vunpack.c.l.b16 %v589
      %v1073 = vunpack.c.l.b16 %v590
      %v1074 = vunpack.c.l.b16 %v591
      %v1075 = vunpack.c.l.b16 %v592
      %v1076 = vunpack.c.l.b16 %v593
      %v1077 = vunpack.c.l.b16 %v594
      %v1078 = vunpack.c.l.b16 %v595
      %v1079 = vunpack.c.l.b16 %v596
      %v1080 = vunpack.c.l.b16 %v597
      %v1081 = vunpack.c.l.b16 %v598
      %v1082 = vunpack.c.l.b16 %v599
      %v1083 = vunpack.c.l.b16 %v600
      %v1084 = vunpack.c.l.b16 %v601
      %v1085 = vunpack.c.l.b16 %v602
      %v1086 = vunpack.c.l.b16 %v603
      %v1087 = vunpack.c.l.b16 %v604
      %v1088 = vunpack.c.l.b16 %v605
      %v1089 = vunpack.c.l.b16 %v606
      %v1090 = vunpack.c.l.b16 %v607
      %v1091 = vunpack.c.l.b16 %v608
      %v1092 = vunpack.c.l.b16 %v609
      %v1093 = vunpack.c.l.b16 %v610
      %v1094 = vunpack.c.l.b16 %v611
      %v1095 = vunpack.c.l.b16 %v612
      %v1096 = vunpack.c.l.b16 %v613
      %v1097 = vunpack.c.l.b16 %v614
      %v1098 = vunpack.c.l.b16 %v615
      %v1099 = vunpack.c.l.b16 %v616
      %v1100 = vunpack.c.l.b16 %v617
      %v1101 = vunpack.c.l.b16 %v618
      %v1102 = vunpack.c.l.b16 %v619
      %v1103 = vunpack.c.l.b16 %v620
      %v1104 = vunpack.c.l.b16 %v621
      %v1105 = vunpack.c.l.b16 %v622
      %v1106 = vunpack.c.l.b16 %v623
      %v1107 = vunpack.c.l.b16 %v624
      %v1108 = vunpack.c.l.b16 %v625
      %v1109 = vunpack.c.l.b16 %v626
      %v1110 = vunpack.c.l.b16 %v627
      %v1111 = vunpack.c.l.b16 %v628
      %v1112 = vunpack.c.l.b16 %v629
      %v1113 = vunpack.c.l.b16 %v630
      %v1114 = vunpack.c.l.b16 %v631
      %v1115 = vunpack.c.l.b16 %v632
      %v1116 = vunpack.c.l.b16 %v633
      %v1117 = vunpack.c.l.b16 %v634
      %v1118 = vunpack.c.l.b16 %v635
      %v1119 = vunpack.c.l.b16 %v636
      %v1120 = vunpack.c.l.b16 %v637
      %v1121 = vunpack.c.l.b16 %v638
      %v1122 = vunpack.c.l.b16 %v639
      %v1123 = vunpack.c.l.b16 %v640
      %v1124 = vunpack.c.l.b16 %v641
      %v1125 = vunpack.c.l.b16 %v642
      %v1126 = vunpack.c.l.b16 %v643
      %v1127 = vunpack.c.l.b16 %v644
      %v1128 = vunpack.c.l.b16 %v645
      %v1129 = vunpack.c.l.b16 %v646
      %v1130 = vunpack.c.l.b16 %v647
      %v1131 = vunpack.c.l.b16 %v648
      %v1132 = vunpack.c.l.b16 %v649
      %v1133 = vunpack.c.l.b16 %v650
      %v1134 = vunpack.c.l.b16 %v651
      %v1135 = vunpack.c.l.b16 %v652
      %v1136 = vunpack.c.l.b16 %v653
      %v1137 = vunpack.c.l.b16 %v654
      %v1138 = vunpack.c.l.b16 %v655
      %v1139 = vunpack.c.l.b16 %v656
      %v1140 = vunpack.c.l.b16 %v657
      %v1141 = vunpack.c.l.b16 %v658
      %v1142 = vunpack.c.l.b16 %v659
      %v1143 = vunpack.c.l.b16 %v660
      %v1144 = vunpack.c.l.b16 %v661
      %v1145 = vunpack.c.l.b16 %v662
      %v1146 = vunpack.c.l.b16 %v663
      %v1147 = vunpack.c.l.b16 %v664
      %v1148 = vunpack.c.l.b16 %v665
      %v1149 = vpack.c.b16 %v1052, %v1051
      %v1150 = vpack.c.b16 %v1054, %v1053
      %v1151 = vpack.c.b16 %v1056, %v1055
      %v1152 = vpack.c.b16 %v1058, %v1057
      %v1153 = vpack.c.b16 %v1060, %v1059
      %v1154 = vpack.c.b16 %v1062, %v1061
      %v1155 = vpack.c.b16 %v1064, %v1063
      %v1156 = vpack.c.b16 %v1066, %v1065
      %v1157 = vpack.c.b16 %v1068, %v1067
      %v1158 = vpack.c.b16 %v1070, %v1069
      %v1159 = vpack.c.b16 %v1072, %v1071
      %v1160 = vpack.c.b16 %v1074, %v1073
      %v1161 = vpack.c.b16 %v1076, %v1075
      %v1162 = vpack.c.b16 %v1078, %v1077
      %v1163 = vpack.c.b16 %v1080, %v1079
      %v1164 = vpack.c.b16 %v1082, %v1081
      %v1165 = vpack.c.b16 %v1084, %v1083
      %v1166 = vpack.c.b16 %v1086, %v1085
      %v1167 = vpack.c.b16 %v1088, %v1087
      %v1168 = vpack.c.b16 %v1090, %v1089
      %v1169 = vpack.c.b16 %v1092, %v1091
      %v1170 = vpack.c.b16 %v1094, %v1093
      %v1171 = vpack.c.b16 %v1096, %v1095
      %v1172 = vpack.c.b16 %v1098, %v1097
      %v1173 = vpack.c.b16 %v1100, %v1099
      %v1174 = vpack.c.b16 %v1102, %v1101
      %v1175 = vpack.c.b16 %v1104, %v1103
      %v1176 = vpack.c.b16 %v1106, %v1105
      %v1177 = vpack.c.b16 %v1108, %v1107
      %v1178 = vpack.c.b16 %v1110, %v1109
      %v1179 = vpack.c.b16 %v1112, %v1111
      %v1180 = vpack.c.b16 %v1114, %v1113
      %v1181 = vpack.c.b16 %v1116, %v1115
      %v1182 = vpack.c.b16 %v1118, %v1117
      %v1183 = vpack.c.b16 %v1120, %v1119
      %v1184 = vpack.c.b16 %v1122, %v1121
      %v1185 = vpack.c.b16 %v1124, %v1123
      %v1186 = vpack.c.b16 %v1126, %v1125
      %v1187 = vpack.c.b16 %v1128, %v1127
      %v1188 = vpack.c.b16 %v1130, %v1129
      %v1189 = vpack.c.b16 %v1132, %v1131
      %v1190 = vpack.c.b16 %v1134, %v1133
      %v1191 = vpack.c.b16 %v1136, %v1135
      %v1192 = vpack.c.b16 %v1138, %v1137
      %v1193 = vpack.c.b16 %v1140, %v1139
      %v1194 = vpack.c.b16 %v1142, %v1141
      %v1195 = vpack.c.b16 %v1144, %v1143
      %v1196 = vpack.c.b16 %v1146, %v1145
      %v1197 = vpack.c.b16 %v1148, %v1147
      %vm1247 = vcmask 130048
      %v1249 = vsel %vm1247, %v855, 0
      %v1252 = vsel %vm1247, %v862, 0
      %v1255 = vsel %vm1247, %v869, 0
      %v1258 = vsel %vm1247, %v876, 0
      %v1261 = vsel %vm1247, %v883, 0
      %v1264 = vsel %vm1247, %v890, 0
      %v1267 = vsel %vm1247, %v897, 0
      %v1270 = vsel %vm1247, %v904, 0
      %1272 = vmatprep.subr.bf16.mxu0 0
      %1273 = vmatpush1.bf16.msra.mxu0 %v1149
      %1274 = vmatprep.subr.bf16.mxu0 0
      %1275 = vmatpush1.bf16.msra.mxu0 %v1150
      %1276 = vmatprep.subr.bf16.mxu0 0
      %1277 = vmatpush1.bf16.msra.mxu0 %v1151
      %1278 = vmatprep.subr.bf16.mxu0 0
      %1279 = vmatpush1.bf16.msra.mxu0 %v1152
      %1280 = vmatprep.subr.bf16.mxu0 0
      %1281 = vmatpush1.bf16.msra.mxu0 %v1153
      %1282 = vmatprep.subr.bf16.mxu0 0
      %1283 = vmatpush1.bf16.msra.mxu0 %v1154
      %1284 = vmatprep.subr.bf16.mxu0 0
      %1285 = vmatpush1.bf16.msra.mxu0 %v1155
      %1286 = vmatprep.subr.bf16.mxu0 0
      %1287 = vmatpush1.bf16.msra.mxu0 %v1156
      %1288 = vmatprep.subr.bf16.mxu0 0
      %1289 = vmatpush1.bf16.msra.mxu0 %v1157
      %1290 = vmatprep.subr.bf16.mxu0 0
      %1291 = vmatpush1.bf16.msra.mxu0 %v1158
      %1292 = vmatprep.subr.bf16.mxu0 0
      %1293 = vmatpush1.bf16.msra.mxu0 %v1159
      %1294 = vmatprep.subr.bf16.mxu0 0
      %1295 = vmatpush1.bf16.msra.mxu0 %v1160
      %1296 = vmatprep.subr.bf16.mxu0 0
      %1297 = vmatpush1.bf16.msra.mxu0 %v1161
      %1298 = vmatprep.subr.bf16.mxu0 0
      %1299 = vmatpush1.bf16.msra.mxu0 %v1162
      %1300 = vmatprep.subr.bf16.mxu0 0
      %1301 = vmatpush1.bf16.msra.mxu0 %v1163
      %1302 = vmatprep.subr.bf16.mxu0 0
      %1303 = vmatpush1.bf16.msra.mxu0 %v1164
      %1304 = vmatprep.mubr.bf16.mxu0 %v850
      %1305 = vmatmul.mubr.bf16.gmra.mrb[0].mxu0 %v849
      %v1306 = vpop.f32.mrb[0].mxu0
      %v1307 = vadd.f32 %v671, %v1306
      %v1308 = vpop.f32.mrb[0].mxu0
      %v1309 = vpop.f32.mrb[0].mxu0
      %v1310 = vadd.f32 %v671, %v1309
      %v1311 = vpop.f32.mrb[0].mxu0
      %1312 = vmatprep.mubr.bf16.mxu0 %v857
      %1313 = vmatmul.mubr.bf16.gmra.mrb[0].mxu0 %v856
      %v1314 = vpop.f32.mrb[0].mxu0
      %v1315 = vadd.f32 %v671, %v1314
      %v1316 = vpop.f32.mrb[0].mxu0
      %v1317 = vpop.f32.mrb[0].mxu0
      %v1318 = vadd.f32 %v671, %v1317
      %v1319 = vpop.f32.mrb[0].mxu0
      %1320 = vmatprep.mubr.bf16.mxu0 %v864
      %1321 = vmatmul.mubr.bf16.gmra.mrb[0].mxu0 %v863
      %v1322 = vpop.f32.mrb[0].mxu0
      %v1323 = vadd.f32 %v671, %v1322
      %v1324 = vpop.f32.mrb[0].mxu0
      %v1325 = vpop.f32.mrb[0].mxu0
      %v1326 = vadd.f32 %v671, %v1325
      %v1327 = vpop.f32.mrb[0].mxu0
      %1328 = vmatprep.mubr.bf16.mxu0 %v871
      %1329 = vmatmul.mubr.bf16.gmra.mrb[0].mxu0 %v870
      %v1330 = vpop.f32.mrb[0].mxu0
      %v1331 = vadd.f32 %v671, %v1330
      %v1332 = vpop.f32.mrb[0].mxu0
      %v1333 = vpop.f32.mrb[0].mxu0
      %v1334 = vadd.f32 %v671, %v1333
      %v1335 = vpop.f32.mrb[0].mxu0
      %1336 = vmatprep.mubr.bf16.mxu0 %v878
      %1337 = vmatmul.mubr.bf16.gmra.mrb[0].mxu0 %v877
      %v1338 = vpop.f32.mrb[0].mxu0
      %v1339 = vadd.f32 %v671, %v1338
      %v1340 = vpop.f32.mrb[0].mxu0
      %v1341 = vpop.f32.mrb[0].mxu0
      %v1342 = vadd.f32 %v671, %v1341
      %v1343 = vpop.f32.mrb[0].mxu0
      %1344 = vmatprep.mubr.bf16.mxu0 %v885
      %1345 = vmatmul.mubr.bf16.gmra.mrb[0].mxu0 %v884
      %v1346 = vpop.f32.mrb[0].mxu0
      %v1347 = vadd.f32 %v671, %v1346
      %v1348 = vpop.f32.mrb[0].mxu0
      %v1349 = vpop.f32.mrb[0].mxu0
      %v1350 = vadd.f32 %v671, %v1349
      %v1351 = vpop.f32.mrb[0].mxu0
      %1352 = vmatprep.mubr.bf16.mxu0 %v892
      %1353 = vmatmul.mubr.bf16.gmra.mrb[0].mxu0 %v891
      %v1354 = vpop.f32.mrb[0].mxu0
      %v1355 = vadd.f32 %v671, %v1354
      %v1356 = vpop.f32.mrb[0].mxu0
      %v1357 = vpop.f32.mrb[0].mxu0
      %v1358 = vadd.f32 %v671, %v1357
      %v1359 = vpop.f32.mrb[0].mxu0
      %1360 = vmatprep.mubr.bf16.mxu0 %v899
      %1361 = vmatmul.mubr.bf16.gmra.mrb[0].mxu0 %v898
      %v1362 = vpop.f32.mrb[0].mxu0
      %v1363 = vadd.f32 %v671, %v1362
      %v1364 = vpop.f32.mrb[0].mxu0
      %v1365 = vpop.f32.mrb[0].mxu0
      %v1366 = vadd.f32 %v671, %v1365
      %v1367 = vpop.f32.mrb[0].mxu0
      %1368 = vdwg.mxu0
      %1369 = vmatprep.subr.bf16.mxu0 0
      %1370 = vmatpush1.bf16.msra.mxu0 %v1165
      %1371 = vmatprep.subr.bf16.mxu0 0
      %1372 = vmatpush1.bf16.msra.mxu0 %v1166
      %1373 = vmatprep.subr.bf16.mxu0 0
      %1374 = vmatpush1.bf16.msra.mxu0 %v1167
      %1375 = vmatprep.subr.bf16.mxu0 0
      %1376 = vmatpush1.bf16.msra.mxu0 %v1168
      %1377 = vmatprep.subr.bf16.mxu0 0
      %1378 = vmatpush1.bf16.msra.mxu0 %v1169
      %1379 = vmatprep.subr.bf16.mxu0 0
      %1380 = vmatpush1.bf16.msra.mxu0 %v1170
      %1381 = vmatprep.subr.bf16.mxu0 0
      %1382 = vmatpush1.bf16.msra.mxu0 %v1171
      %1383 = vmatprep.subr.bf16.mxu0 0
      %1384 = vmatpush1.bf16.msra.mxu0 %v1172
      %1385 = vmatprep.subr.bf16.mxu0 0
      %1386 = vmatpush1.bf16.msra.mxu0 %v1173
      %1387 = vmatprep.subr.bf16.mxu0 0
      %1388 = vmatpush1.bf16.msra.mxu0 %v1174
      %1389 = vmatprep.subr.bf16.mxu0 0
      %1390 = vmatpush1.bf16.msra.mxu0 %v1175
      %1391 = vmatprep.subr.bf16.mxu0 0
      %1392 = vmatpush1.bf16.msra.mxu0 %v1176
      %1393 = vmatprep.subr.bf16.mxu0 0
      %1394 = vmatpush1.bf16.msra.mxu0 %v1177
      %1395 = vmatprep.subr.bf16.mxu0 0
      %1396 = vmatpush1.bf16.msra.mxu0 %v1178
      %1397 = vmatprep.subr.bf16.mxu0 0
      %1398 = vmatpush1.bf16.msra.mxu0 %v1179
      %1399 = vmatprep.subr.bf16.mxu0 0
      %1400 = vmatpush1.bf16.msra.mxu0 %v1180
      %1401 = vmatprep.mubr.bf16.mxu0 %v852
      %1402 = vmatmul.mubr.bf16.gmra.mrb[0].mxu0 %v851
      %v1403 = vpop.f32.mrb[0].mxu0
      %v1404 = vadd.f32 %v1307, %v1403
      %v1405 = vpop.f32.mrb[0].mxu0
      %v1406 = vpop.f32.mrb[0].mxu0
      %v1407 = vadd.f32 %v1310, %v1406
      %v1408 = vpop.f32.mrb[0].mxu0
      %1409 = vmatprep.mubr.bf16.mxu0 %v859
      %1410 = vmatmul.mubr.bf16.gmra.mrb[0].mxu0 %v858
      %v1411 = vpop.f32.mrb[0].mxu0
      %v1412 = vadd.f32 %v1315, %v1411
      %v1413 = vpop.f32.mrb[0].mxu0
      %v1414 = vpop.f32.mrb[0].mxu0
      %v1415 = vadd.f32 %v1318, %v1414
      %v1416 = vpop.f32.mrb[0].mxu0
      %1417 = vmatprep.mubr.bf16.mxu0 %v866
      %1418 = vmatmul.mubr.bf16.gmra.mrb[0].mxu0 %v865
      %v1419 = vpop.f32.mrb[0].mxu0
      %v1420 = vadd.f32 %v1323, %v1419
      %v1421 = vpop.f32.mrb[0].mxu0
      %v1422 = vpop.f32.mrb[0].mxu0
      %v1423 = vadd.f32 %v1326, %v1422
      %v1424 = vpop.f32.mrb[0].mxu0
      %1425 = vmatprep.mubr.bf16.mxu0 %v873
      %1426 = vmatmul.mubr.bf16.gmra.mrb[0].mxu0 %v872
      %v1427 = vpop.f32.mrb[0].mxu0
      %v1428 = vadd.f32 %v1331, %v1427
      %v1429 = vpop.f32.mrb[0].mxu0
      %v1430 = vpop.f32.mrb[0].mxu0
      %v1431 = vadd.f32 %v1334, %v1430
      %v1432 = vpop.f32.mrb[0].mxu0
      %1433 = vmatprep.mubr.bf16.mxu0 %v880
      %1434 = vmatmul.mubr.bf16.gmra.mrb[0].mxu0 %v879
      %v1435 = vpop.f32.mrb[0].mxu0
      %v1436 = vadd.f32 %v1339, %v1435
      %v1437 = vpop.f32.mrb[0].mxu0
      %v1438 = vpop.f32.mrb[0].mxu0
      %v1439 = vadd.f32 %v1342, %v1438
      %v1440 = vpop.f32.mrb[0].mxu0
      %1441 = vmatprep.mubr.bf16.mxu0 %v887
      %1442 = vmatmul.mubr.bf16.gmra.mrb[0].mxu0 %v886
      %v1443 = vpop.f32.mrb[0].mxu0
      %v1444 = vadd.f32 %v1347, %v1443
      %v1445 = vpop.f32.mrb[0].mxu0
      %v1446 = vpop.f32.mrb[0].mxu0
      %v1447 = vadd.f32 %v1350, %v1446
      %v1448 = vpop.f32.mrb[0].mxu0
      %1449 = vmatprep.mubr.bf16.mxu0 %v894
      %1450 = vmatmul.mubr.bf16.gmra.mrb[0].mxu0 %v893
      %v1451 = vpop.f32.mrb[0].mxu0
      %v1452 = vadd.f32 %v1355, %v1451
      %v1453 = vpop.f32.mrb[0].mxu0
      %v1454 = vpop.f32.mrb[0].mxu0
      %v1455 = vadd.f32 %v1358, %v1454
      %v1456 = vpop.f32.mrb[0].mxu0
      %1457 = vmatprep.mubr.bf16.mxu0 %v901
      %1458 = vmatmul.mubr.bf16.gmra.mrb[0].mxu0 %v900
      %v1459 = vpop.f32.mrb[0].mxu0
      %v1460 = vadd.f32 %v1363, %v1459
      %v1461 = vpop.f32.mrb[0].mxu0
      %v1462 = vpop.f32.mrb[0].mxu0
      %v1463 = vadd.f32 %v1366, %v1462
      %v1464 = vpop.f32.mrb[0].mxu0
      %1465 = vdwg.mxu0
      %1466 = vmatprep.subr.bf16.mxu0 0
      %1467 = vmatpush1.bf16.msra.mxu0 %v1181
      %1468 = vmatprep.subr.bf16.mxu0 0
      %1469 = vmatpush1.bf16.msra.mxu0 %v1182
      %1470 = vmatprep.subr.bf16.mxu0 0
      %1471 = vmatpush1.bf16.msra.mxu0 %v1183
      %1472 = vmatprep.subr.bf16.mxu0 0
      %1473 = vmatpush1.bf16.msra.mxu0 %v1184
      %1474 = vmatprep.subr.bf16.mxu0 0
      %1475 = vmatpush1.bf16.msra.mxu0 %v1185
      %1476 = vmatprep.subr.bf16.mxu0 0
      %1477 = vmatpush1.bf16.msra.mxu0 %v1186
      %1478 = vmatprep.subr.bf16.mxu0 0
      %1479 = vmatpush1.bf16.msra.mxu0 %v1187
      %1480 = vmatprep.subr.bf16.mxu0 0
      %1481 = vmatpush1.bf16.msra.mxu0 %v1188
      %1482 = vmatprep.subr.bf16.mxu0 0
      %1483 = vmatpush1.bf16.msra.mxu0 %v1189
      %1484 = vmatprep.subr.bf16.mxu0 0
      %1485 = vmatpush1.bf16.msra.mxu0 %v1190
      %1486 = vmatprep.subr.bf16.mxu0 0
      %1487 = vmatpush1.bf16.msra.mxu0 %v1191
      %1488 = vmatprep.subr.bf16.mxu0 0
      %1489 = vmatpush1.bf16.msra.mxu0 %v1192
      %1490 = vmatprep.subr.bf16.mxu0 0
      %1491 = vmatpush1.bf16.msra.mxu0 %v1193
      %1492 = vmatprep.subr.bf16.mxu0 0
      %1493 = vmatpush1.bf16.msra.mxu0 %v1194
      %1494 = vmatprep.subr.bf16.mxu0 0
      %1495 = vmatpush1.bf16.msra.mxu0 %v1195
      %1496 = vmatprep.subr.bf16.mxu0 0
      %1497 = vmatpush1.bf16.msra.mxu0 %v1196
      %1498 = vmatprep.mubr.bf16.mxu0 %v854
      %1499 = vmatmul.mubr.bf16.gmra.mrb[0].mxu0 %v853
      %v1500 = vpop.f32.mrb[0].mxu0
      %v1501 = vadd.f32 %v1404, %v1500
      %v1502 = vpop.f32.mrb[0].mxu0
      %v1503 = vpop.f32.mrb[0].mxu0
      %v1504 = vadd.f32 %v1407, %v1503
      %v1505 = vpop.f32.mrb[0].mxu0
      %1506 = vmatprep.mubr.bf16.mxu0 %v861
      %1507 = vmatmul.mubr.bf16.gmra.mrb[0].mxu0 %v860
      %v1508 = vpop.f32.mrb[0].mxu0
      %v1509 = vadd.f32 %v1412, %v1508
      %v1510 = vpop.f32.mrb[0].mxu0
      %v1511 = vpop.f32.mrb[0].mxu0
      %v1512 = vadd.f32 %v1415, %v1511
      %v1513 = vpop.f32.mrb[0].mxu0
      %1514 = vmatprep.mubr.bf16.mxu0 %v868
      %1515 = vmatmul.mubr.bf16.gmra.mrb[0].mxu0 %v867
      %v1516 = vpop.f32.mrb[0].mxu0
      %v1517 = vadd.f32 %v1420, %v1516
      %v1518 = vpop.f32.mrb[0].mxu0
      %v1519 = vpop.f32.mrb[0].mxu0
      %v1520 = vadd.f32 %v1423, %v1519
      %v1521 = vpop.f32.mrb[0].mxu0
      %1522 = vmatprep.mubr.bf16.mxu0 %v875
      %1523 = vmatmul.mubr.bf16.gmra.mrb[0].mxu0 %v874
      %v1524 = vpop.f32.mrb[0].mxu0
      %v1525 = vadd.f32 %v1428, %v1524
      %v1526 = vpop.f32.mrb[0].mxu0
      %v1527 = vpop.f32.mrb[0].mxu0
      %v1528 = vadd.f32 %v1431, %v1527
      %v1529 = vpop.f32.mrb[0].mxu0
      %1530 = vmatprep.mubr.bf16.mxu0 %v882
      %1531 = vmatmul.mubr.bf16.gmra.mrb[0].mxu0 %v881
      %v1532 = vpop.f32.mrb[0].mxu0
      %v1533 = vadd.f32 %v1436, %v1532
      %v1534 = vpop.f32.mrb[0].mxu0
      %v1535 = vpop.f32.mrb[0].mxu0
      %v1536 = vadd.f32 %v1439, %v1535
      %v1537 = vpop.f32.mrb[0].mxu0
      %1538 = vmatprep.mubr.bf16.mxu0 %v889
      %1539 = vmatmul.mubr.bf16.gmra.mrb[0].mxu0 %v888
      %v1540 = vpop.f32.mrb[0].mxu0
      %v1541 = vadd.f32 %v1444, %v1540
      %v1542 = vpop.f32.mrb[0].mxu0
      %v1543 = vpop.f32.mrb[0].mxu0
      %v1544 = vadd.f32 %v1447, %v1543
      %v1545 = vpop.f32.mrb[0].mxu0
      %1546 = vmatprep.mubr.bf16.mxu0 %v896
      %1547 = vmatmul.mubr.bf16.gmra.mrb[0].mxu0 %v895
      %v1548 = vpop.f32.mrb[0].mxu0
      %v1549 = vadd.f32 %v1452, %v1548
      %v1550 = vpop.f32.mrb[0].mxu0
      %v1551 = vpop.f32.mrb[0].mxu0
      %v1552 = vadd.f32 %v1455, %v1551
      %v1553 = vpop.f32.mrb[0].mxu0
      %1554 = vmatprep.mubr.bf16.mxu0 %v903
      %1555 = vmatmul.mubr.bf16.gmra.mrb[0].mxu0 %v902
      %v1556 = vpop.f32.mrb[0].mxu0
      %v1557 = vadd.f32 %v1460, %v1556
      %v1558 = vpop.f32.mrb[0].mxu0
      %v1559 = vpop.f32.mrb[0].mxu0
      %v1560 = vadd.f32 %v1463, %v1559
      %v1561 = vpop.f32.mrb[0].mxu0
      %1562 = vdwg.mxu0
      %1563 = vmatprep.subr.bf16.mxu0 0
      %1564 = vmatpush1.bf16.msra.mxu0 %v1197
      %1565 = vmatprep.subr.bf16.mxu0 0
      %1566 = vmatpush1.bf16.msra.mxu0 0
      %1567 = vmatprep.subr.bf16.mxu0 0
      %1568 = vmatpush1.bf16.msra.mxu0 0
      %1569 = vmatprep.subr.bf16.mxu0 0
      %1570 = vmatpush1.bf16.msra.mxu0 0
      %1571 = vmatprep.subr.bf16.mxu0 0
      %1572 = vmatpush1.bf16.msra.mxu0 0
      %1573 = vmatprep.subr.bf16.mxu0 0
      %1574 = vmatpush1.bf16.msra.mxu0 0
      %1575 = vmatprep.subr.bf16.mxu0 0
      %1576 = vmatpush1.bf16.msra.mxu0 0
      %1577 = vmatprep.subr.bf16.mxu0 0
      %1578 = vmatpush1.bf16.msra.mxu0 0
      %1579 = vmatprep.subr.bf16.mxu0 0
      %1580 = vmatpush1.bf16.msra.mxu0 0
      %1581 = vmatprep.subr.bf16.mxu0 0
      %1582 = vmatpush1.bf16.msra.mxu0 0
      %1583 = vmatprep.subr.bf16.mxu0 0
      %1584 = vmatpush1.bf16.msra.mxu0 0
      %1585 = vmatprep.subr.bf16.mxu0 0
      %1586 = vmatpush1.bf16.msra.mxu0 0
      %1587 = vmatprep.subr.bf16.mxu0 0
      %1588 = vmatpush1.bf16.msra.mxu0 0
      %1589 = vmatprep.subr.bf16.mxu0 0
      %1590 = vmatpush1.bf16.msra.mxu0 0
      %1591 = vmatprep.subr.bf16.mxu0 0
      %1592 = vmatpush1.bf16.msra.mxu0 0
      %1593 = vmatprep.subr.bf16.mxu0 0
      %1594 = vmatpush1.bf16.msra.mxu0 0
      %1595 = vmatprep.mubr.bf16.mxu0 0
      %1596 = vmatmul.mubr.bf16.gmra.mrb[0].mxu0 %v1249
      %v1597 = vpop.f32.mrb[0].mxu0
      %v1598 = vadd.f32 %v1501, %v1597
      %v1599 = vpop.f32.mrb[0].mxu0
      %v1600 = vpop.f32.mrb[0].mxu0
      %v1601 = vadd.f32 %v1504, %v1600
      %v1602 = vpop.f32.mrb[0].mxu0
      %1603 = vmatprep.mubr.bf16.mxu0 0
      %1604 = vmatmul.mubr.bf16.gmra.mrb[0].mxu0 %v1252
      %v1605 = vpop.f32.mrb[0].mxu0
      %v1606 = vadd.f32 %v1509, %v1605
      %v1607 = vpop.f32.mrb[0].mxu0
      %v1608 = vpop.f32.mrb[0].mxu0
      %v1609 = vadd.f32 %v1512, %v1608
      %v1610 = vpop.f32.mrb[0].mxu0
      %1611 = vmatprep.mubr.bf16.mxu0 0
      %1612 = vmatmul.mubr.bf16.gmra.mrb[0].mxu0 %v1255
      %v1613 = vpop.f32.mrb[0].mxu0
      %v1614 = vadd.f32 %v1517, %v1613
      %v1615 = vpop.f32.mrb[0].mxu0
      %v1616 = vpop.f32.mrb[0].mxu0
      %v1617 = vadd.f32 %v1520, %v1616
      %v1618 = vpop.f32.mrb[0].mxu0
      %1619 = vmatprep.mubr.bf16.mxu0 0
      %1620 = vmatmul.mubr.bf16.gmra.mrb[0].mxu0 %v1258
      %v1621 = vpop.f32.mrb[0].mxu0
      %v1622 = vadd.f32 %v1525, %v1621
      %v1623 = vpop.f32.mrb[0].mxu0
      %v1624 = vpop.f32.mrb[0].mxu0
      %v1625 = vadd.f32 %v1528, %v1624
      %v1626 = vpop.f32.mrb[0].mxu0
      %1627 = vmatprep.mubr.bf16.mxu0 0
      %1628 = vmatmul.mubr.bf16.gmra.mrb[0].mxu0 %v1261
      %v1629 = vpop.f32.mrb[0].mxu0
      %v1630 = vadd.f32 %v1533, %v1629
      %v1631 = vpop.f32.mrb[0].mxu0
      %v1632 = vpop.f32.mrb[0].mxu0
      %v1633 = vadd.f32 %v1536, %v1632
      %v1634 = vpop.f32.mrb[0].mxu0
      %1635 = vmatprep.mubr.bf16.mxu0 0
      %1636 = vmatmul.mubr.bf16.gmra.mrb[0].mxu0 %v1264
      %v1637 = vpop.f32.mrb[0].mxu0
      %v1638 = vadd.f32 %v1541, %v1637
      %v1639 = vpop.f32.mrb[0].mxu0
      %v1640 = vpop.f32.mrb[0].mxu0
      %v1641 = vadd.f32 %v1544, %v1640
      %v1642 = vpop.f32.mrb[0].mxu0
      %1643 = vmatprep.mubr.bf16.mxu0 0
      %1644 = vmatmul.mubr.bf16.gmra.mrb[0].mxu0 %v1267
      %v1645 = vpop.f32.mrb[0].mxu0
      %v1646 = vadd.f32 %v1549, %v1645
      %v1647 = vpop.f32.mrb[0].mxu0
      %v1648 = vpop.f32.mrb[0].mxu0
      %v1649 = vadd.f32 %v1552, %v1648
      %v1650 = vpop.f32.mrb[0].mxu0
      %1651 = vmatprep.mubr.bf16.mxu0 0
      %1652 = vmatmul.mubr.bf16.gmra.mrb[0].mxu0 %v1270
      %v1653 = vpop.f32.mrb[0].mxu0
      %v1654 = vadd.f32 %v1557, %v1653
      %v1655 = vpop.f32.mrb[0].mxu0
      %v1656 = vpop.f32.mrb[0].mxu0
      %v1657 = vadd.f32 %v1560, %v1656
      %v1658 = vpop.f32.mrb[0].mxu0
      %1659 = vdwg.mxu0
      %v1660 = vmax.f32 %v1598, 0.0
      %v1661 = vmax.f32 %v1601, 0.0
      %v1662 = vmax.f32 %v1606, 0.0
      %v1663 = vmax.f32 %v1609, 0.0
      %v1664 = vmax.f32 %v1614, 0.0
      %v1665 = vmax.f32 %v1617, 0.0
      %v1666 = vmax.f32 %v1622, 0.0
      %v1667 = vmax.f32 %v1625, 0.0
      %v1668 = vmax.f32 %v1630, 0.0
      %v1669 = vmax.f32 %v1633, 0.0
      %v1670 = vmax.f32 %v1638, 0.0
      %v1671 = vmax.f32 %v1641, 0.0
      %v1672 = vmax.f32 %v1646, 0.0
      %v1673 = vmax.f32 %v1649, 0.0
      %v1674 = vmax.f32 %v1654, 0.0
      %v1675 = vmax.f32 %v1657, 0.0
      %v1676 = vld [vmem:[%s3] sm:$0xf]
      %v1677 = vld [vmem:[%s3 + $0x4] sm:$0xf]
      %v1678 = vld [vmem:[%s3 + $0x8] sm:$0xf]
      %v1679 = vld [vmem:[%s3 + $0xc] sm:$0xf]
      %v1680 = vld [vmem:[%s3 + $0x10] sm:$0xf]
      %v1681 = vld [vmem:[%s3 + $0x14] sm:$0xf]
      %v1682 = vld [vmem:[%s3 + $0x18] sm:$0xf]
      %v1683 = vld [vmem:[%s3 + $0x1c] sm:$0xf]
      %v1684 = vld [vmem:[%s3 + $0x20] sm:$0xf]
      %v1685 = vld [vmem:[%s3 + $0x24] sm:$0xf]
      %v1686 = vld [vmem:[%s3 + $0x28] sm:$0xf]
      %v1687 = vld [vmem:[%s3 + $0x2c] sm:$0xf]
      %v1688 = vld [vmem:[%s3 + $0x30] sm:$0xf]
      %v1689 = vld [vmem:[%s3 + $0x34] sm:$0xf]
      %v1690 = vld [vmem:[%s3 + $0x38] sm:$0xf]
      %v1691 = vld [vmem:[%s3 + $0x3c] sm:$0xf]
      %v1692 = vld [vmem:[%s4] sm:$0x1]
      %v1693 = vpack.c.bf16 %v1661, %v1660
      %v1694 = vpack.c.bf16 %v1663, %v1662
      %v1695 = vpack.c.bf16 %v1665, %v1664
      %v1696 = vpack.c.bf16 %v1667, %v1666
      %v1697 = vpack.c.bf16 %v1669, %v1668
      %v1698 = vpack.c.bf16 %v1671, %v1670
      %v1699 = vpack.c.bf16 %v1673, %v1672
      %v1700 = vpack.c.bf16 %v1675, %v1674
      %v1702 = vlaneseq
      %v1703 = vshrl.u32 %v1702, 7
      %v1704 = vsub.s32 0, %v1703
      %v1705 = vrot.slane %v1692, %v1704
      %v1723 = vunpack.c.l.b16 %v1676
      %v1724 = vunpack.c.l.b16 %v1677
      %v1725 = vunpack.c.l.b16 %v1678
      %v1726 = vunpack.c.l.b16 %v1679
      %v1727 = vunpack.c.l.b16 %v1680
      %v1728 = vunpack.c.l.b16 %v1681
      %v1729 = vunpack.c.l.b16 %v1682
      %v1730 = vunpack.c.l.b16 %v1683
      %v1731 = vunpack.c.l.b16 %v1684
      %v1732 = vunpack.c.l.b16 %v1685
      %v1733 = vunpack.c.l.b16 %v1686
      %v1734 = vunpack.c.l.b16 %v1687
      %v1735 = vunpack.c.l.b16 %v1688
      %v1736 = vunpack.c.l.b16 %v1689
      %v1737 = vunpack.c.l.b16 %v1690
      %v1738 = vunpack.c.l.b16 %v1691
      %v1739 = vpack.c.b16 %v1724, %v1723
      %v1740 = vpack.c.b16 %v1726, %v1725
      %v1741 = vpack.c.b16 %v1728, %v1727
      %v1742 = vpack.c.b16 %v1730, %v1729
      %v1743 = vpack.c.b16 %v1732, %v1731
      %v1744 = vpack.c.b16 %v1734, %v1733
      %v1745 = vpack.c.b16 %v1736, %v1735
      %v1746 = vpack.c.b16 %v1738, %v1737
      %1755 = vmatprep.subr.bf16.mxu0 0
      %1756 = vmatpush1.bf16.msra.mxu0 %v1739
      %1757 = vmatprep.subr.bf16.mxu0 0
      %1758 = vmatpush1.bf16.msra.mxu0 %v1740
      %1759 = vmatprep.subr.bf16.mxu0 0
      %1760 = vmatpush1.bf16.msra.mxu0 %v1741
      %1761 = vmatprep.subr.bf16.mxu0 0
      %1762 = vmatpush1.bf16.msra.mxu0 %v1742
      %1763 = vmatprep.subr.bf16.mxu0 0
      %1764 = vmatpush1.bf16.msra.mxu0 %v1743
      %1765 = vmatprep.subr.bf16.mxu0 0
      %1766 = vmatpush1.bf16.msra.mxu0 %v1744
      %1767 = vmatprep.subr.bf16.mxu0 0
      %1768 = vmatpush1.bf16.msra.mxu0 %v1745
      %1769 = vmatprep.subr.bf16.mxu0 0
      %1770 = vmatpush1.bf16.msra.mxu0 %v1746
      %1771 = vmatprep.subr.bf16.mxu0 0
      %1772 = vmatpush1.bf16.msra.mxu0 0
      %1773 = vmatprep.subr.bf16.mxu0 0
      %1774 = vmatpush1.bf16.msra.mxu0 0
      %1775 = vmatprep.subr.bf16.mxu0 0
      %1776 = vmatpush1.bf16.msra.mxu0 0
      %1777 = vmatprep.subr.bf16.mxu0 0
      %1778 = vmatpush1.bf16.msra.mxu0 0
      %1779 = vmatprep.subr.bf16.mxu0 0
      %1780 = vmatpush1.bf16.msra.mxu0 0
      %1781 = vmatprep.subr.bf16.mxu0 0
      %1782 = vmatpush1.bf16.msra.mxu0 0
      %1783 = vmatprep.subr.bf16.mxu0 0
      %1784 = vmatpush1.bf16.msra.mxu0 0
      %1785 = vmatprep.subr.bf16.mxu0 0
      %1786 = vmatpush1.bf16.msra.mxu0 0
      %1787 = vmatprep.mubr.bf16.mxu0 0
      %1788 = vmatmul.mubr.bf16.gmra.mrb[0].mxu0 %v1693
      %v1789 = vpop.f32.mrb[0].mxu0
      %v1790 = vadd.f32 %v1705, %v1789
      %v1791 = vpop.f32.mrb[0].mxu0
      %v1792 = vpop.f32.mrb[0].mxu0
      %v1793 = vadd.f32 %v1705, %v1792
      %v1794 = vpop.f32.mrb[0].mxu0
      %1795 = vmatprep.mubr.bf16.mxu0 0
      %1796 = vmatmul.mubr.bf16.gmra.mrb[0].mxu0 %v1694
      %v1797 = vpop.f32.mrb[0].mxu0
      %v1798 = vadd.f32 %v1705, %v1797
      %v1799 = vpop.f32.mrb[0].mxu0
      %v1800 = vpop.f32.mrb[0].mxu0
      %v1801 = vadd.f32 %v1705, %v1800
      %v1802 = vpop.f32.mrb[0].mxu0
      %1803 = vmatprep.mubr.bf16.mxu0 0
      %1804 = vmatmul.mubr.bf16.gmra.mrb[0].mxu0 %v1695
      %v1805 = vpop.f32.mrb[0].mxu0
      %v1806 = vadd.f32 %v1705, %v1805
      %v1807 = vpop.f32.mrb[0].mxu0
      %v1808 = vpop.f32.mrb[0].mxu0
      %v1809 = vadd.f32 %v1705, %v1808
      %v1810 = vpop.f32.mrb[0].mxu0
      %1811 = vmatprep.mubr.bf16.mxu0 0
      %1812 = vmatmul.mubr.bf16.gmra.mrb[0].mxu0 %v1696
      %v1813 = vpop.f32.mrb[0].mxu0
      %v1814 = vadd.f32 %v1705, %v1813
      %v1815 = vpop.f32.mrb[0].mxu0
      %v1816 = vpop.f32.mrb[0].mxu0
      %v1817 = vadd.f32 %v1705, %v1816
      %v1818 = vpop.f32.mrb[0].mxu0
      %1819 = vmatprep.mubr.bf16.mxu0 0
      %1820 = vmatmul.mubr.bf16.gmra.mrb[0].mxu0 %v1697
      %v1821 = vpop.f32.mrb[0].mxu0
      %v1822 = vadd.f32 %v1705, %v1821
      %v1823 = vpop.f32.mrb[0].mxu0
      %v1824 = vpop.f32.mrb[0].mxu0
      %v1825 = vadd.f32 %v1705, %v1824
      %v1826 = vpop.f32.mrb[0].mxu0
      %1827 = vmatprep.mubr.bf16.mxu0 0
      %1828 = vmatmul.mubr.bf16.gmra.mrb[0].mxu0 %v1698
      %v1829 = vpop.f32.mrb[0].mxu0
      %v1830 = vadd.f32 %v1705, %v1829
      %v1831 = vpop.f32.mrb[0].mxu0
      %v1832 = vpop.f32.mrb[0].mxu0
      %v1833 = vadd.f32 %v1705, %v1832
      %v1834 = vpop.f32.mrb[0].mxu0
      %1835 = vmatprep.mubr.bf16.mxu0 0
      %1836 = vmatmul.mubr.bf16.gmra.mrb[0].mxu0 %v1699
      %v1837 = vpop.f32.mrb[0].mxu0
      %v1838 = vadd.f32 %v1705, %v1837
      %v1839 = vpop.f32.mrb[0].mxu0
      %v1840 = vpop.f32.mrb[0].mxu0
      %v1841 = vadd.f32 %v1705, %v1840
      %v1842 = vpop.f32.mrb[0].mxu0
      %1843 = vmatprep.mubr.bf16.mxu0 0
      %1844 = vmatmul.mubr.bf16.gmra.mrb[0].mxu0 %v1700
      %v1845 = vpop.f32.mrb[0].mxu0
      %v1846 = vadd.f32 %v1705, %v1845
      %v1847 = vpop.f32.mrb[0].mxu0
      %v1848 = vpop.f32.mrb[0].mxu0
      %v1849 = vadd.f32 %v1705, %v1848
      %v1850 = vpop.f32.mrb[0].mxu0
      %1851 = vdwg.mxu0
      %v1852 = vmax.f32 %v1790, 0.0
      %v1853 = vmax.f32 %v1793, 0.0
      %v1854 = vmax.f32 %v1798, 0.0
      %v1855 = vmax.f32 %v1801, 0.0
      %v1856 = vmax.f32 %v1806, 0.0
      %v1857 = vmax.f32 %v1809, 0.0
      %v1858 = vmax.f32 %v1814, 0.0
      %v1859 = vmax.f32 %v1817, 0.0
      %v1860 = vmax.f32 %v1822, 0.0
      %v1861 = vmax.f32 %v1825, 0.0
      %v1862 = vmax.f32 %v1830, 0.0
      %v1863 = vmax.f32 %v1833, 0.0
      %v1864 = vmax.f32 %v1838, 0.0
      %v1865 = vmax.f32 %v1841, 0.0
      %v1866 = vmax.f32 %v1846, 0.0
      %v1867 = vmax.f32 %v1849, 0.0
      %v1868 = vld [vmem:[%s5] sm:$0xf]
      %v1869 = vld [vmem:[%s5 + $0x4] sm:$0xf]
      %v1870 = vld [vmem:[%s5 + $0x8] sm:$0xf]
      %v1871 = vld [vmem:[%s5 + $0xc] sm:$0xf]
      %v1872 = vld [vmem:[%s5 + $0x10] sm:$0xf]
      %v1873 = vld [vmem:[%s5 + $0x14] sm:$0xf]
      %v1874 = vld [vmem:[%s5 + $0x18] sm:$0xf]
      %v1875 = vld [vmem:[%s5 + $0x1c] sm:$0xf]
      %v1876 = vld [vmem:[%s6] sm:$0x1]
      %v1877 = vpack.c.bf16 %v1853, %v1852
      %v1878 = vpack.c.bf16 %v1855, %v1854
      %v1879 = vpack.c.bf16 %v1857, %v1856
      %v1880 = vpack.c.bf16 %v1859, %v1858
      %v1881 = vpack.c.bf16 %v1861, %v1860
      %v1882 = vpack.c.bf16 %v1863, %v1862
      %v1883 = vpack.c.bf16 %v1865, %v1864
      %v1884 = vpack.c.bf16 %v1867, %v1866
      %v1886 = vlaneseq
      %v1887 = vshrl.u32 %v1886, 7
      %v1888 = vsub.s32 0, %v1887
      %v1889 = vrot.slane %v1876, %v1888
      %v1899 = vunpack.c.l.b16 %v1868
      %v1900 = vunpack.c.l.b16 %v1869
      %v1901 = vunpack.c.l.b16 %v1870
      %v1902 = vunpack.c.l.b16 %v1871
      %v1903 = vunpack.c.l.b16 %v1872
      %v1904 = vunpack.c.l.b16 %v1873
      %v1905 = vunpack.c.l.b16 %v1874
      %v1906 = vunpack.c.l.b16 %v1875
      %v1907 = vpack.c.b16 %v1900, %v1899
      %v1908 = vpack.c.b16 %v1902, %v1901
      %v1909 = vpack.c.b16 %v1904, %v1903
      %v1910 = vpack.c.b16 %v1906, %v1905
      %vm1915 = vcmask 523264
      %v1917 = vsel %vm1915, %v1877, 0
      %v1920 = vsel %vm1915, %v1878, 0
      %v1923 = vsel %vm1915, %v1879, 0
      %v1926 = vsel %vm1915, %v1880, 0
      %v1929 = vsel %vm1915, %v1881, 0
      %v1932 = vsel %vm1915, %v1882, 0
      %v1935 = vsel %vm1915, %v1883, 0
      %v1938 = vsel %vm1915, %v1884, 0
      %1940 = vmatprep.subr.bf16.mxu0 0
      %1941 = vmatpush1.bf16.msra.mxu0 %v1907
      %1942 = vmatprep.subr.bf16.mxu0 0
      %1943 = vmatpush1.bf16.msra.mxu0 %v1908
      %1944 = vmatprep.subr.bf16.mxu0 0
      %1945 = vmatpush1.bf16.msra.mxu0 %v1909
      %1946 = vmatprep.subr.bf16.mxu0 0
      %1947 = vmatpush1.bf16.msra.mxu0 %v1910
      %1948 = vmatprep.subr.bf16.mxu0 0
      %1949 = vmatpush1.bf16.msra.mxu0 0
      %1950 = vmatprep.subr.bf16.mxu0 0
      %1951 = vmatpush1.bf16.msra.mxu0 0
      %1952 = vmatprep.subr.bf16.mxu0 0
      %1953 = vmatpush1.bf16.msra.mxu0 0
      %1954 = vmatprep.subr.bf16.mxu0 0
      %1955 = vmatpush1.bf16.msra.mxu0 0
      %1956 = vmatprep.subr.bf16.mxu0 0
      %1957 = vmatpush1.bf16.msra.mxu0 0
      %1958 = vmatprep.subr.bf16.mxu0 0
      %1959 = vmatpush1.bf16.msra.mxu0 0
      %1960 = vmatprep.subr.bf16.mxu0 0
      %1961 = vmatpush1.bf16.msra.mxu0 0
      %1962 = vmatprep.subr.bf16.mxu0 0
      %1963 = vmatpush1.bf16.msra.mxu0 0
      %1964 = vmatprep.subr.bf16.mxu0 0
      %1965 = vmatpush1.bf16.msra.mxu0 0
      %1966 = vmatprep.subr.bf16.mxu0 0
      %1967 = vmatpush1.bf16.msra.mxu0 0
      %1968 = vmatprep.subr.bf16.mxu0 0
      %1969 = vmatpush1.bf16.msra.mxu0 0
      %1970 = vmatprep.subr.bf16.mxu0 0
      %1971 = vmatpush1.bf16.msra.mxu0 0
      %1972 = vmatprep.mubr.bf16.mxu0 0
      %1973 = vmatmul.mubr.bf16.gmra.mrb[0].mxu0 %v1917
      %v1974 = vpop.f32.mrb[0].mxu0
      %v1975 = vadd.f32 %v1889, %v1974
      %v1976 = vpop.f32.mrb[0].mxu0
      %v1977 = vpop.f32.mrb[0].mxu0
      %v1978 = vadd.f32 %v1889, %v1977
      %v1979 = vpop.f32.mrb[0].mxu0
      %1980 = vmatprep.mubr.bf16.mxu0 0
      %1981 = vmatmul.mubr.bf16.gmra.mrb[0].mxu0 %v1920
      %v1982 = vpop.f32.mrb[0].mxu0
      %v1983 = vadd.f32 %v1889, %v1982
      %v1984 = vpop.f32.mrb[0].mxu0
      %v1985 = vpop.f32.mrb[0].mxu0
      %v1986 = vadd.f32 %v1889, %v1985
      %v1987 = vpop.f32.mrb[0].mxu0
      %1988 = vmatprep.mubr.bf16.mxu0 0
      %1989 = vmatmul.mubr.bf16.gmra.mrb[0].mxu0 %v1923
      %v1990 = vpop.f32.mrb[0].mxu0
      %v1991 = vadd.f32 %v1889, %v1990
      %v1992 = vpop.f32.mrb[0].mxu0
      %v1993 = vpop.f32.mrb[0].mxu0
      %v1994 = vadd.f32 %v1889, %v1993
      %v1995 = vpop.f32.mrb[0].mxu0
      %1996 = vmatprep.mubr.bf16.mxu0 0
      %1997 = vmatmul.mubr.bf16.gmra.mrb[0].mxu0 %v1926
      %v1998 = vpop.f32.mrb[0].mxu0
      %v1999 = vadd.f32 %v1889, %v1998
      %v2000 = vpop.f32.mrb[0].mxu0
      %v2001 = vpop.f32.mrb[0].mxu0
      %v2002 = vadd.f32 %v1889, %v2001
      %v2003 = vpop.f32.mrb[0].mxu0
      %2004 = vmatprep.mubr.bf16.mxu0 0
      %2005 = vmatmul.mubr.bf16.gmra.mrb[0].mxu0 %v1929
      %v2006 = vpop.f32.mrb[0].mxu0
      %v2007 = vadd.f32 %v1889, %v2006
      %v2008 = vpop.f32.mrb[0].mxu0
      %v2009 = vpop.f32.mrb[0].mxu0
      %v2010 = vadd.f32 %v1889, %v2009
      %v2011 = vpop.f32.mrb[0].mxu0
      %2012 = vmatprep.mubr.bf16.mxu0 0
      %2013 = vmatmul.mubr.bf16.gmra.mrb[0].mxu0 %v1932
      %v2014 = vpop.f32.mrb[0].mxu0
      %v2015 = vadd.f32 %v1889, %v2014
      %v2016 = vpop.f32.mrb[0].mxu0
      %v2017 = vpop.f32.mrb[0].mxu0
      %v2018 = vadd.f32 %v1889, %v2017
      %v2019 = vpop.f32.mrb[0].mxu0
      %2020 = vmatprep.mubr.bf16.mxu0 0
      %2021 = vmatmul.mubr.bf16.gmra.mrb[0].mxu0 %v1935
      %v2022 = vpop.f32.mrb[0].mxu0
      %v2023 = vadd.f32 %v1889, %v2022
      %v2024 = vpop.f32.mrb[0].mxu0
      %v2025 = vpop.f32.mrb[0].mxu0
      %v2026 = vadd.f32 %v1889, %v2025
      %v2027 = vpop.f32.mrb[0].mxu0
      %2028 = vmatprep.mubr.bf16.mxu0 0
      %2029 = vmatmul.mubr.bf16.gmra.mrb[0].mxu0 %v1938
      %v2030 = vpop.f32.mrb[0].mxu0
      %v2031 = vadd.f32 %v1889, %v2030
      %v2032 = vpop.f32.mrb[0].mxu0
      %v2033 = vpop.f32.mrb[0].mxu0
      %v2034 = vadd.f32 %v1889, %v2033
      %v2035 = vpop.f32.mrb[0].mxu0
      %2036 = vdwg.mxu0
      %v2037 = vmax.f32 %v1975, 0.0
      %v2038 = vmax.f32 %v1978, 0.0
      %v2039 = vmax.f32 %v1983, 0.0
      %v2040 = vmax.f32 %v1986, 0.0
      %v2041 = vmax.f32 %v1991, 0.0
      %v2042 = vmax.f32 %v1994, 0.0
      %v2043 = vmax.f32 %v1999, 0.0
      %v2044 = vmax.f32 %v2002, 0.0
      %v2045 = vmax.f32 %v2007, 0.0
      %v2046 = vmax.f32 %v2010, 0.0
      %v2047 = vmax.f32 %v2015, 0.0
      %v2048 = vmax.f32 %v2018, 0.0
      %v2049 = vmax.f32 %v2023, 0.0
      %v2050 = vmax.f32 %v2026, 0.0
      %v2051 = vmax.f32 %v2031, 0.0
      %v2052 = vmax.f32 %v2034, 0.0
      %v2053 = vld [vmem:[%s7] sm:$0xf]
      %v2054 = vld [vmem:[%s7 + $0x4] sm:$0x3]
      %v2055 = vld [vmem:[%s8] sm:$0x1]
      %v2056 = vpack.c.bf16 %v2038, %v2037
      %v2057 = vpack.c.bf16 %v2040, %v2039
      %v2058 = vpack.c.bf16 %v2042, %v2041
      %v2059 = vpack.c.bf16 %v2044, %v2043
      %v2060 = vpack.c.bf16 %v2046, %v2045
      %v2061 = vpack.c.bf16 %v2048, %v2047
      %v2062 = vpack.c.bf16 %v2050, %v2049
      %v2063 = vpack.c.bf16 %v2052, %v2051
      %v2065 = vlaneseq
      %v2066 = vshrl.u32 %v2065, 7
      %v2067 = vsub.s32 0, %v2066
      %v2068 = vrot.slane %v2055, %v2067
      %v2072 = vunpack.c.l.b16 %v2053
      %v2073 = vunpack.c.l.b16 %v2054
      %v2074 = vpack.c.b16 %v2073, %v2072
      %vm2075 = vcmask 97280
      %v2077 = vsel %vm2075, %v2056, 0
      %v2080 = vsel %vm2075, %v2057, 0
      %v2083 = vsel %vm2075, %v2058, 0
      %v2086 = vsel %vm2075, %v2059, 0
      %v2089 = vsel %vm2075, %v2060, 0
      %v2092 = vsel %vm2075, %v2061, 0
      %v2095 = vsel %vm2075, %v2062, 0
      %v2098 = vsel %vm2075, %v2063, 0
      %vm2100 = vcmask 1045504
      %v2102 = vsel %vm2100, %v2074, 0
      %2104 = vmatprep.subr.bf16.mxu0 0
      %2105 = vmatpush1.bf16.msra.mxu0 %v2102
      %2106 = vmatprep.subr.bf16.mxu0 0
      %2107 = vmatpush1.bf16.msra.mxu0 0
      %2108 = vmatprep.subr.bf16.mxu0 0
      %2109 = vmatpush1.bf16.msra.mxu0 0
      %2110 = vmatprep.subr.bf16.mxu0 0
      %2111 = vmatpush1.bf16.msra.mxu0 0
      %2112 = vmatprep.subr.bf16.mxu0 0
      %2113 = vmatpush1.bf16.msra.mxu0 0
      %2114 = vmatprep.subr.bf16.mxu0 0
      %2115 = vmatpush1.bf16.msra.mxu0 0
      %2116 = vmatprep.subr.bf16.mxu0 0
      %2117 = vmatpush1.bf16.msra.mxu0 0
      %2118 = vmatprep.subr.bf16.mxu0 0
      %2119 = vmatpush1.bf16.msra.mxu0 0
      %2120 = vmatprep.subr.bf16.mxu0 0
      %2121 = vmatpush1.bf16.msra.mxu0 0
      %2122 = vmatprep.subr.bf16.mxu0 0
      %2123 = vmatpush1.bf16.msra.mxu0 0
      %2124 = vmatprep.subr.bf16.mxu0 0
      %2125 = vmatpush1.bf16.msra.mxu0 0
      %2126 = vmatprep.subr.bf16.mxu0 0
      %2127 = vmatpush1.bf16.msra.mxu0 0
      %2128 = vmatprep.subr.bf16.mxu0 0
      %2129 = vmatpush1.bf16.msra.mxu0 0
      %2130 = vmatprep.subr.bf16.mxu0 0
      %2131 = vmatpush1.bf16.msra.mxu0 0
      %2132 = vmatprep.subr.bf16.mxu0 0
      %2133 = vmatpush1.bf16.msra.mxu0 0
      %2134 = vmatprep.subr.bf16.mxu0 0
      %2135 = vmatpush1.bf16.msra.mxu0 0
      %2136 = vmatprep.mubr.bf16.mxu0 0
      %2137 = vmatmul.mubr.bf16.gmra.mrb[0].mxu0 %v2077
      %v2138 = vpop.f32.mrb[0].mxu0
      %v2139 = vadd.f32 %v2068, %v2138
      %v2140 = vpop.f32.mrb[0].mxu0
      %v2141 = vpop.f32.mrb[0].mxu0
      %v2142 = vadd.f32 %v2068, %v2141
      %v2143 = vpop.f32.mrb[0].mxu0
      %2144 = vmatprep.mubr.bf16.mxu0 0
      %2145 = vmatmul.mubr.bf16.gmra.mrb[0].mxu0 %v2080
      %v2146 = vpop.f32.mrb[0].mxu0
      %v2147 = vadd.f32 %v2068, %v2146
      %v2148 = vpop.f32.mrb[0].mxu0
      %v2149 = vpop.f32.mrb[0].mxu0
      %v2150 = vadd.f32 %v2068, %v2149
      %v2151 = vpop.f32.mrb[0].mxu0
      %2152 = vmatprep.mubr.bf16.mxu0 0
      %2153 = vmatmul.mubr.bf16.gmra.mrb[0].mxu0 %v2083
      %v2154 = vpop.f32.mrb[0].mxu0
      %v2155 = vadd.f32 %v2068, %v2154
      %v2156 = vpop.f32.mrb[0].mxu0
      %v2157 = vpop.f32.mrb[0].mxu0
      %v2158 = vadd.f32 %v2068, %v2157
      %v2159 = vpop.f32.mrb[0].mxu0
      %2160 = vmatprep.mubr.bf16.mxu0 0
      %2161 = vmatmul.mubr.bf16.gmra.mrb[0].mxu0 %v2086
      %v2162 = vpop.f32.mrb[0].mxu0
      %v2163 = vadd.f32 %v2068, %v2162
      %v2164 = vpop.f32.mrb[0].mxu0
      %v2165 = vpop.f32.mrb[0].mxu0
      %v2166 = vadd.f32 %v2068, %v2165
      %v2167 = vpop.f32.mrb[0].mxu0
      %2168 = vmatprep.mubr.bf16.mxu0 0
      %2169 = vmatmul.mubr.bf16.gmra.mrb[0].mxu0 %v2089
      %v2170 = vpop.f32.mrb[0].mxu0
      %v2171 = vadd.f32 %v2068, %v2170
      %v2172 = vpop.f32.mrb[0].mxu0
      %v2173 = vpop.f32.mrb[0].mxu0
      %v2174 = vadd.f32 %v2068, %v2173
      %v2175 = vpop.f32.mrb[0].mxu0
      %2176 = vmatprep.mubr.bf16.mxu0 0
      %2177 = vmatmul.mubr.bf16.gmra.mrb[0].mxu0 %v2092
      %v2178 = vpop.f32.mrb[0].mxu0
      %v2179 = vadd.f32 %v2068, %v2178
      %v2180 = vpop.f32.mrb[0].mxu0
      %v2181 = vpop.f32.mrb[0].mxu0
      %v2182 = vadd.f32 %v2068, %v2181
      %v2183 = vpop.f32.mrb[0].mxu0
      %2184 = vmatprep.mubr.bf16.mxu0 0
      %2185 = vmatmul.mubr.bf16.gmra.mrb[0].mxu0 %v2095
      %v2186 = vpop.f32.mrb[0].mxu0
      %v2187 = vadd.f32 %v2068, %v2186
      %v2188 = vpop.f32.mrb[0].mxu0
      %v2189 = vpop.f32.mrb[0].mxu0
      %v2190 = vadd.f32 %v2068, %v2189
      %v2191 = vpop.f32.mrb[0].mxu0
      %2192 = vmatprep.mubr.bf16.mxu0 0
      %2193 = vmatmul.mubr.bf16.gmra.mrb[0].mxu0 %v2098
      %v2194 = vpop.f32.mrb[0].mxu0
      %v2195 = vadd.f32 %v2068, %v2194
      %v2196 = vpop.f32.mrb[0].mxu0
      %v2197 = vpop.f32.mrb[0].mxu0
      %v2198 = vadd.f32 %v2068, %v2197
      %v2199 = vpop.f32.mrb[0].mxu0
      %2200 = vdwg.mxu0
      %v2201 = vmax.f32 %v2139, 0.0
      %v2202 = vmax.f32 %v2142, 0.0
      %v2203 = vmax.f32 %v2147, 0.0
      %v2204 = vmax.f32 %v2150, 0.0
      %v2205 = vmax.f32 %v2155, 0.0
      %v2206 = vmax.f32 %v2158, 0.0
      %v2207 = vmax.f32 %v2163, 0.0
      %v2208 = vmax.f32 %v2166, 0.0
      %v2209 = vmax.f32 %v2171, 0.0
      %v2210 = vmax.f32 %v2174, 0.0
      %v2211 = vmax.f32 %v2179, 0.0
      %v2212 = vmax.f32 %v2182, 0.0
      %v2213 = vmax.f32 %v2187, 0.0
      %v2214 = vmax.f32 %v2190, 0.0
      %v2215 = vmax.f32 %v2195, 0.0
      %v2216 = vmax.f32 %v2198, 0.0
      %v2217 = vld [vmem:[%s9] sm:$0xf]
      %v2218 = vld [vmem:[%s9 + $0x4] sm:$0x3]
      %v2219 = vld [vmem:[%s10] sm:$0x1]
      %v2220 = vpack.c.bf16 %v2202, %v2201
      %v2221 = vpack.c.bf16 %v2204, %v2203
      %v2222 = vpack.c.bf16 %v2206, %v2205
      %v2223 = vpack.c.bf16 %v2208, %v2207
      %v2224 = vpack.c.bf16 %v2210, %v2209
      %v2225 = vpack.c.bf16 %v2212, %v2211
      %v2226 = vpack.c.bf16 %v2214, %v2213
      %v2227 = vpack.c.bf16 %v2216, %v2215
      %v2229 = vlaneseq
      %v2230 = vshrl.u32 %v2229, 7
      %v2231 = vsub.s32 0, %v2230
      %v2232 = vrot.slane %v2219, %v2231
      %v2236 = vunpack.c.l.b16 %v2217
      %v2237 = vunpack.c.l.b16 %v2218
      %v2238 = vpack.c.b16 %v2237, %v2236
      %v2240 = vsel %vm2075, %v2220, 0
      %v2243 = vsel %vm2075, %v2221, 0
      %v2246 = vsel %vm2075, %v2222, 0
      %v2249 = vsel %vm2075, %v2223, 0
      %v2252 = vsel %vm2075, %v2224, 0
      %v2255 = vsel %vm2075, %v2225, 0
      %v2258 = vsel %vm2075, %v2226, 0
      %v2261 = vsel %vm2075, %v2227, 0
      %v2264 = vsel %vm2100, %v2238, 0
      %2266 = vmatprep.subr.bf16.mxu0 0
      %2267 = vmatpush1.bf16.msra.mxu0 %v2264
      %2268 = vmatprep.subr.bf16.mxu0 0
      %2269 = vmatpush1.bf16.msra.mxu0 0
      %2270 = vmatprep.subr.bf16.mxu0 0
      %2271 = vmatpush1.bf16.msra.mxu0 0
      %2272 = vmatprep.subr.bf16.mxu0 0
      %2273 = vmatpush1.bf16.msra.mxu0 0
      %2274 = vmatprep.subr.bf16.mxu0 0
      %2275 = vmatpush1.bf16.msra.mxu0 0
      %2276 = vmatprep.subr.bf16.mxu0 0
      %2277 = vmatpush1.bf16.msra.mxu0 0
      %2278 = vmatprep.subr.bf16.mxu0 0
      %2279 = vmatpush1.bf16.msra.mxu0 0
      %2280 = vmatprep.subr.bf16.mxu0 0
      %2281 = vmatpush1.bf16.msra.mxu0 0
      %2282 = vmatprep.subr.bf16.mxu0 0
      %2283 = vmatpush1.bf16.msra.mxu0 0
      %2284 = vmatprep.subr.bf16.mxu0 0
      %2285 = vmatpush1.bf16.msra.mxu0 0
      %2286 = vmatprep.subr.bf16.mxu0 0
      %2287 = vmatpush1.bf16.msra.mxu0 0
      %2288 = vmatprep.subr.bf16.mxu0 0
      %2289 = vmatpush1.bf16.msra.mxu0 0
      %2290 = vmatprep.subr.bf16.mxu0 0
      %2291 = vmatpush1.bf16.msra.mxu0 0
      %2292 = vmatprep.subr.bf16.mxu0 0
      %2293 = vmatpush1.bf16.msra.mxu0 0
      %2294 = vmatprep.subr.bf16.mxu0 0
      %2295 = vmatpush1.bf16.msra.mxu0 0
      %2296 = vmatprep.subr.bf16.mxu0 0
      %2297 = vmatpush1.bf16.msra.mxu0 0
      %2298 = vmatprep.mubr.bf16.mxu0 0
      %2299 = vmatmul.mubr.bf16.gmra.mrb[0].mxu0 %v2240
      %v2300 = vpop.f32.mrb[0].mxu0
      %v2301 = vadd.f32 %v2232, %v2300
      %v2302 = vpop.f32.mrb[0].mxu0
      %v2303 = vpop.f32.mrb[0].mxu0
      %v2304 = vadd.f32 %v2232, %v2303
      %v2305 = vpop.f32.mrb[0].mxu0
      %2306 = vmatprep.mubr.bf16.mxu0 0
      %2307 = vmatmul.mubr.bf16.gmra.mrb[0].mxu0 %v2243
      %v2308 = vpop.f32.mrb[0].mxu0
      %v2309 = vadd.f32 %v2232, %v2308
      %v2310 = vpop.f32.mrb[0].mxu0
      %v2311 = vpop.f32.mrb[0].mxu0
      %v2312 = vadd.f32 %v2232, %v2311
      %v2313 = vpop.f32.mrb[0].mxu0
      %2314 = vmatprep.mubr.bf16.mxu0 0
      %2315 = vmatmul.mubr.bf16.gmra.mrb[0].mxu0 %v2246
      %v2316 = vpop.f32.mrb[0].mxu0
      %v2317 = vadd.f32 %v2232, %v2316
      %v2318 = vpop.f32.mrb[0].mxu0
      %v2319 = vpop.f32.mrb[0].mxu0
      %v2320 = vadd.f32 %v2232, %v2319
      %v2321 = vpop.f32.mrb[0].mxu0
      %2322 = vmatprep.mubr.bf16.mxu0 0
      %2323 = vmatmul.mubr.bf16.gmra.mrb[0].mxu0 %v2249
      %v2324 = vpop.f32.mrb[0].mxu0
      %v2325 = vadd.f32 %v2232, %v2324
      %v2326 = vpop.f32.mrb[0].mxu0
      %v2327 = vpop.f32.mrb[0].mxu0
      %v2328 = vadd.f32 %v2232, %v2327
      %v2329 = vpop.f32.mrb[0].mxu0
      %2330 = vmatprep.mubr.bf16.mxu0 0
      %2331 = vmatmul.mubr.bf16.gmra.mrb[0].mxu0 %v2252
      %v2332 = vpop.f32.mrb[0].mxu0
      %v2333 = vadd.f32 %v2232, %v2332
      %v2334 = vpop.f32.mrb[0].mxu0
      %v2335 = vpop.f32.mrb[0].mxu0
      %v2336 = vadd.f32 %v2232, %v2335
      %v2337 = vpop.f32.mrb[0].mxu0
      %2338 = vmatprep.mubr.bf16.mxu0 0
      %2339 = vmatmul.mubr.bf16.gmra.mrb[0].mxu0 %v2255
      %v2340 = vpop.f32.mrb[0].mxu0
      %v2341 = vadd.f32 %v2232, %v2340
      %v2342 = vpop.f32.mrb[0].mxu0
      %v2343 = vpop.f32.mrb[0].mxu0
      %v2344 = vadd.f32 %v2232, %v2343
      %v2345 = vpop.f32.mrb[0].mxu0
      %2346 = vmatprep.mubr.bf16.mxu0 0
      %2347 = vmatmul.mubr.bf16.gmra.mrb[0].mxu0 %v2258
      %v2348 = vpop.f32.mrb[0].mxu0
      %v2349 = vadd.f32 %v2232, %v2348
      %v2350 = vpop.f32.mrb[0].mxu0
      %v2351 = vpop.f32.mrb[0].mxu0
      %v2352 = vadd.f32 %v2232, %v2351
      %v2353 = vpop.f32.mrb[0].mxu0
      %2354 = vmatprep.mubr.bf16.mxu0 0
      %2355 = vmatmul.mubr.bf16.gmra.mrb[0].mxu0 %v2261
      %v2356 = vpop.f32.mrb[0].mxu0
      %v2357 = vadd.f32 %v2232, %v2356
      %v2358 = vpop.f32.mrb[0].mxu0
      %v2359 = vpop.f32.mrb[0].mxu0
      %v2360 = vadd.f32 %v2232, %v2359
      %v2361 = vpop.f32.mrb[0].mxu0
      %2362 = vdwg.mxu0
      %v2363 = vmax.f32 %v2301, 0.0
      %v2364 = vmax.f32 %v2304, 0.0
      %v2365 = vmax.f32 %v2309, 0.0
      %v2366 = vmax.f32 %v2312, 0.0
      %v2367 = vmax.f32 %v2317, 0.0
      %v2368 = vmax.f32 %v2320, 0.0
      %v2369 = vmax.f32 %v2325, 0.0
      %v2370 = vmax.f32 %v2328, 0.0
      %v2371 = vmax.f32 %v2333, 0.0
      %v2372 = vmax.f32 %v2336, 0.0
      %v2373 = vmax.f32 %v2341, 0.0
      %v2374 = vmax.f32 %v2344, 0.0
      %v2375 = vmax.f32 %v2349, 0.0
      %v2376 = vmax.f32 %v2352, 0.0
      %v2377 = vmax.f32 %v2357, 0.0
      %v2378 = vmax.f32 %v2360, 0.0
      %v2379 = vld [vmem:[%s11] sm:$0xf]
      %v2380 = vld [vmem:[%s11 + $0x4] sm:$0xf]
      %v2381 = vld [vmem:[%s11 + $0x8] sm:$0xf]
      %v2382 = vld [vmem:[%s11 + $0xc] sm:$0xf]
      %v2383 = vld [vmem:[%s11 + $0x10] sm:$0xf]
      %v2384 = vld [vmem:[%s11 + $0x14] sm:$0xf]
      %v2385 = vld [vmem:[%s11 + $0x18] sm:$0xf]
      %v2386 = vld [vmem:[%s11 + $0x1c] sm:$0xf]
      %v2387 = vld [vmem:[%s12] sm:$0x1]
      %v2388 = vpack.c.bf16 %v2364, %v2363
      %v2389 = vpack.c.bf16 %v2366, %v2365
      %v2390 = vpack.c.bf16 %v2368, %v2367
      %v2391 = vpack.c.bf16 %v2370, %v2369
      %v2392 = vpack.c.bf16 %v2372, %v2371
      %v2393 = vpack.c.bf16 %v2374, %v2373
      %v2394 = vpack.c.bf16 %v2376, %v2375
      %v2395 = vpack.c.bf16 %v2378, %v2377
      %v2397 = vlaneseq
      %v2398 = vshrl.u32 %v2397, 7
      %v2399 = vsub.s32 0, %v2398
      %v2400 = vrot.slane %v2387, %v2399
      %v2410 = vunpack.c.l.b16 %v2379
      %v2411 = vunpack.c.l.b16 %v2380
      %v2412 = vunpack.c.l.b16 %v2381
      %v2413 = vunpack.c.l.b16 %v2382
      %v2414 = vunpack.c.l.b16 %v2383
      %v2415 = vunpack.c.l.b16 %v2384
      %v2416 = vunpack.c.l.b16 %v2385
      %v2417 = vunpack.c.l.b16 %v2386
      %v2418 = vpack.c.b16 %v2411, %v2410
      %v2419 = vpack.c.b16 %v2413, %v2412
      %v2420 = vpack.c.b16 %v2415, %v2414
      %v2421 = vpack.c.b16 %v2417, %v2416
      %v2427 = vsel %vm1915, %v2388, 0
      %v2430 = vsel %vm1915, %v2389, 0
      %v2433 = vsel %vm1915, %v2390, 0
      %v2436 = vsel %vm1915, %v2391, 0
      %v2439 = vsel %vm1915, %v2392, 0
      %v2442 = vsel %vm1915, %v2393, 0
      %v2445 = vsel %vm1915, %v2394, 0
      %v2448 = vsel %vm1915, %v2395, 0
      %2450 = vmatprep.subr.bf16.mxu0 0
      %2451 = vmatpush1.bf16.msra.mxu0 %v2418
      %2452 = vmatprep.subr.bf16.mxu0 0
      %2453 = vmatpush1.bf16.msra.mxu0 %v2419
      %2454 = vmatprep.subr.bf16.mxu0 0
      %2455 = vmatpush1.bf16.msra.mxu0 %v2420
      %2456 = vmatprep.subr.bf16.mxu0 0
      %2457 = vmatpush1.bf16.msra.mxu0 %v2421
      %2458 = vmatprep.subr.bf16.mxu0 0
      %2459 = vmatpush1.bf16.msra.mxu0 0
      %2460 = vmatprep.subr.bf16.mxu0 0
      %2461 = vmatpush1.bf16.msra.mxu0 0
      %2462 = vmatprep.subr.bf16.mxu0 0
      %2463 = vmatpush1.bf16.msra.mxu0 0
      %2464 = vmatprep.subr.bf16.mxu0 0
      %2465 = vmatpush1.bf16.msra.mxu0 0
      %2466 = vmatprep.subr.bf16.mxu0 0
      %2467 = vmatpush1.bf16.msra.mxu0 0
      %2468 = vmatprep.subr.bf16.mxu0 0
      %2469 = vmatpush1.bf16.msra.mxu0 0
      %2470 = vmatprep.subr.bf16.mxu0 0
      %2471 = vmatpush1.bf16.msra.mxu0 0
      %2472 = vmatprep.subr.bf16.mxu0 0
      %2473 = vmatpush1.bf16.msra.mxu0 0
      %2474 = vmatprep.subr.bf16.mxu0 0
      %2475 = vmatpush1.bf16.msra.mxu0 0
      %2476 = vmatprep.subr.bf16.mxu0 0
      %2477 = vmatpush1.bf16.msra.mxu0 0
      %2478 = vmatprep.subr.bf16.mxu0 0
      %2479 = vmatpush1.bf16.msra.mxu0 0
      %2480 = vmatprep.subr.bf16.mxu0 0
      %2481 = vmatpush1.bf16.msra.mxu0 0
      %2482 = vmatprep.mubr.bf16.mxu0 0
      %2483 = vmatmul.mubr.bf16.gmra.mrb[0].mxu0 %v2427
      %v2484 = vpop.f32.mrb[0].mxu0
      %v2485 = vadd.f32 %v2400, %v2484
      %v2486 = vpop.f32.mrb[0].mxu0
      %v2487 = vpop.f32.mrb[0].mxu0
      %v2488 = vadd.f32 %v2400, %v2487
      %v2489 = vpop.f32.mrb[0].mxu0
      %2490 = vmatprep.mubr.bf16.mxu0 0
      %2491 = vmatmul.mubr.bf16.gmra.mrb[0].mxu0 %v2430
      %v2492 = vpop.f32.mrb[0].mxu0
      %v2493 = vadd.f32 %v2400, %v2492
      %v2494 = vpop.f32.mrb[0].mxu0
      %v2495 = vpop.f32.mrb[0].mxu0
      %v2496 = vadd.f32 %v2400, %v2495
      %v2497 = vpop.f32.mrb[0].mxu0
      %2498 = vmatprep.mubr.bf16.mxu0 0
      %2499 = vmatmul.mubr.bf16.gmra.mrb[0].mxu0 %v2433
      %v2500 = vpop.f32.mrb[0].mxu0
      %v2501 = vadd.f32 %v2400, %v2500
      %v2502 = vpop.f32.mrb[0].mxu0
      %v2503 = vpop.f32.mrb[0].mxu0
      %v2504 = vadd.f32 %v2400, %v2503
      %v2505 = vpop.f32.mrb[0].mxu0
      %2506 = vmatprep.mubr.bf16.mxu0 0
      %2507 = vmatmul.mubr.bf16.gmra.mrb[0].mxu0 %v2436
      %v2508 = vpop.f32.mrb[0].mxu0
      %v2509 = vadd.f32 %v2400, %v2508
      %v2510 = vpop.f32.mrb[0].mxu0
      %v2511 = vpop.f32.mrb[0].mxu0
      %v2512 = vadd.f32 %v2400, %v2511
      %v2513 = vpop.f32.mrb[0].mxu0
      %2514 = vmatprep.mubr.bf16.mxu0 0
      %2515 = vmatmul.mubr.bf16.gmra.mrb[0].mxu0 %v2439
      %v2516 = vpop.f32.mrb[0].mxu0
      %v2517 = vadd.f32 %v2400, %v2516
      %v2518 = vpop.f32.mrb[0].mxu0
      %v2519 = vpop.f32.mrb[0].mxu0
      %v2520 = vadd.f32 %v2400, %v2519
      %v2521 = vpop.f32.mrb[0].mxu0
      %2522 = vmatprep.mubr.bf16.mxu0 0
      %2523 = vmatmul.mubr.bf16.gmra.mrb[0].mxu0 %v2442
      %v2524 = vpop.f32.mrb[0].mxu0
      %v2525 = vadd.f32 %v2400, %v2524
      %v2526 = vpop.f32.mrb[0].mxu0
      %v2527 = vpop.f32.mrb[0].mxu0
      %v2528 = vadd.f32 %v2400, %v2527
      %v2529 = vpop.f32.mrb[0].mxu0
      %2530 = vmatprep.mubr.bf16.mxu0 0
      %2531 = vmatmul.mubr.bf16.gmra.mrb[0].mxu0 %v2445
      %v2532 = vpop.f32.mrb[0].mxu0
      %v2533 = vadd.f32 %v2400, %v2532
      %v2534 = vpop.f32.mrb[0].mxu0
      %v2535 = vpop.f32.mrb[0].mxu0
      %v2536 = vadd.f32 %v2400, %v2535
      %v2537 = vpop.f32.mrb[0].mxu0
      %2538 = vmatprep.mubr.bf16.mxu0 0
      %2539 = vmatmul.mubr.bf16.gmra.mrb[0].mxu0 %v2448
      %v2540 = vpop.f32.mrb[0].mxu0
      %v2541 = vadd.f32 %v2400, %v2540
      %v2542 = vpop.f32.mrb[0].mxu0
      %v2543 = vpop.f32.mrb[0].mxu0
      %v2544 = vadd.f32 %v2400, %v2543
      %v2545 = vpop.f32.mrb[0].mxu0
      %2546 = vdwg.mxu0
      %v2547 = vmax.f32 %v2485, 0.0
      %v2548 = vmax.f32 %v2488, 0.0
      %v2549 = vmax.f32 %v2493, 0.0
      %v2550 = vmax.f32 %v2496, 0.0
      %v2551 = vmax.f32 %v2501, 0.0
      %v2552 = vmax.f32 %v2504, 0.0
      %v2553 = vmax.f32 %v2509, 0.0
      %v2554 = vmax.f32 %v2512, 0.0
      %v2555 = vmax.f32 %v2517, 0.0
      %v2556 = vmax.f32 %v2520, 0.0
      %v2557 = vmax.f32 %v2525, 0.0
      %v2558 = vmax.f32 %v2528, 0.0
      %v2559 = vmax.f32 %v2533, 0.0
      %v2560 = vmax.f32 %v2536, 0.0
      %v2561 = vmax.f32 %v2541, 0.0
      %v2562 = vmax.f32 %v2544, 0.0
      %v2563 = vld [vmem:[%s13] sm:$0xff]
      %v2564 = vld [vmem:[%s13 + $0x8] sm:$0xff]
      %v2565 = vld [vmem:[%s13 + $0x10] sm:$0xff]
      %v2566 = vld [vmem:[%s13 + $0x18] sm:$0xf]
      %v2567 = vld [vmem:[%s13 + $0x1c] sm:$0xff]
      %v2568 = vld [vmem:[%s13 + $0x24] sm:$0xff]
      %v2569 = vld [vmem:[%s13 + $0x2c] sm:$0xff]
      %v2570 = vld [vmem:[%s13 + $0x34] sm:$0xf]
      %v2571 = vld [vmem:[%s13 + $0x38] sm:$0xff]
      %v2572 = vld [vmem:[%s13 + $0x40] sm:$0xff]
      %v2573 = vld [vmem:[%s13 + $0x48] sm:$0xff]
      %v2574 = vld [vmem:[%s13 + $0x50] sm:$0xf]
      %v2575 = vld [vmem:[%s13 + $0x54] sm:$0xff]
      %v2576 = vld [vmem:[%s13 + $0x5c] sm:$0xff]
      %v2577 = vld [vmem:[%s13 + $0x64] sm:$0xff]
      %v2578 = vld [vmem:[%s13 + $0x6c] sm:$0xf]
      %v2579 = vld [vmem:[%s13 + $0x70] sm:$0xff]
      %v2580 = vld [vmem:[%s13 + $0x78] sm:$0xff]
      %v2581 = vld [vmem:[%s13 + $0x80] sm:$0xff]
      %v2582 = vld [vmem:[%s13 + $0x88] sm:$0xf]
      %v2583 = vld [vmem:[%s13 + $0x8c] sm:$0xff]
      %v2584 = vld [vmem:[%s13 + $0x94] sm:$0xff]
      %v2585 = vld [vmem:[%s13 + $0x9c] sm:$0xff]
      %v2586 = vld [vmem:[%s13 + $0xa4] sm:$0xf]
      %v2587 = vld [vmem:[%s13 + $0xa8] sm:$0xff]
      %v2588 = vld [vmem:[%s13 + $0xb0] sm:$0xff]
      %v2589 = vld [vmem:[%s13 + $0xb8] sm:$0xff]
      %v2590 = vld [vmem:[%s13 + $0xc0] sm:$0xf]
      %v2591 = vld [vmem:[%s13 + $0xc4] sm:$0xff]
      %v2592 = vld [vmem:[%s13 + $0xcc] sm:$0xff]
      %v2593 = vld [vmem:[%s13 + $0xd4] sm:$0xff]
      %v2594 = vld [vmem:[%s13 + $0xdc] sm:$0xf]
      %v2595 = vld [vmem:[%s13 + $0xe0] sm:$0xff]
      %v2596 = vld [vmem:[%s13 + $0xe8] sm:$0xff]
      %v2597 = vld [vmem:[%s13 + $0xf0] sm:$0xff]
      %v2598 = vld [vmem:[%s13 + $0xf8] sm:$0xf]
      %v2599 = vld [vmem:[%s13 + $0xfc] sm:$0xff]
      %v2600 = vld [vmem:[%s13 + $0x104] sm:$0xff]
      %v2601 = vld [vmem:[%s13 + $0x10c] sm:$0xff]
      %v2602 = vld [vmem:[%s13 + $0x114] sm:$0xf]
      %v2603 = vld [vmem:[%s13 + $0x118] sm:$0xff]
      %v2604 = vld [vmem:[%s13 + $0x120] sm:$0xff]
      %v2605 = vld [vmem:[%s13 + $0x128] sm:$0xff]
      %v2606 = vld [vmem:[%s13 + $0x130] sm:$0xf]
      %v2607 = vld [vmem:[%s13 + $0x134] sm:$0xff]
      %v2608 = vld [vmem:[%s13 + $0x13c] sm:$0xff]
      %v2609 = vld [vmem:[%s13 + $0x144] sm:$0xff]
      %v2610 = vld [vmem:[%s13 + $0x14c] sm:$0xf]
      %v2611 = vld [vmem:[%s13 + $0x150] sm:$0xff]
      %v2612 = vld [vmem:[%s13 + $0x158] sm:$0xff]
      %v2613 = vld [vmem:[%s13 + $0x160] sm:$0xff]
      %v2614 = vld [vmem:[%s13 + $0x168] sm:$0xf]
      %v2615 = vld [vmem:[%s13 + $0x16c] sm:$0xff]
      %v2616 = vld [vmem:[%s13 + $0x174] sm:$0xff]
      %v2617 = vld [vmem:[%s13 + $0x17c] sm:$0xff]
      %v2618 = vld [vmem:[%s13 + $0x184] sm:$0xf]
      %v2619 = vld [vmem:[%s13 + $0x188] sm:$0xff]
      %v2620 = vld [vmem:[%s13 + $0x190] sm:$0xff]
      %v2621 = vld [vmem:[%s13 + $0x198] sm:$0xff]
      %v2622 = vld [vmem:[%s13 + $0x1a0] sm:$0xf]
      %v2623 = vld [vmem:[%s13 + $0x1a4] sm:$0xff]
      %v2624 = vld [vmem:[%s13 + $0x1ac] sm:$0xff]
      %v2625 = vld [vmem:[%s13 + $0x1b4] sm:$0xff]
      %v2626 = vld [vmem:[%s13 + $0x1bc] sm:$0xf]
      %v2627 = vld [vmem:[%s14] sm:$0x7f]
      %v2628 = vpack.c.bf16 %v2548, %v2547
      %v2629 = vpack.c.bf16 %v2550, %v2549
      %v2630 = vpack.c.bf16 %v2552, %v2551
      %v2631 = vpack.c.bf16 %v2554, %v2553
      %v2632 = vpack.c.bf16 %v2556, %v2555
      %v2633 = vpack.c.bf16 %v2558, %v2557
      %v2634 = vpack.c.bf16 %v2560, %v2559
      %v2635 = vpack.c.bf16 %v2562, %v2561
      %v2637 = vlaneseq
      %v2638 = vshrl.u32 %v2637, 7
      %v2639 = vsub.s32 0, %v2638
      %v2640 = vrot.slane %v2627, %v2639
      %v2641 = vlaneseq
      %v2642 = vshrl.u32 %v2641, 7
      %v2643 = vsub.s32 1, %v2642
      %v2644 = vrot.slane %v2627, %v2643
      %v2645 = vlaneseq
      %v2646 = vshrl.u32 %v2645, 7
      %v2647 = vsub.s32 2, %v2646
      %v2648 = vrot.slane %v2627, %v2647
      %v2649 = vlaneseq
      %v2650 = vshrl.u32 %v2649, 7
      %v2651 = vsub.s32 3, %v2650
      %v2652 = vrot.slane %v2627, %v2651
      %v2653 = vlaneseq
      %v2654 = vshrl.u32 %v2653, 7
      %v2655 = vsub.s32 4, %v2654
      %v2656 = vrot.slane %v2627, %v2655
      %v2657 = vlaneseq
      %v2658 = vshrl.u32 %v2657, 7
      %v2659 = vsub.s32 5, %v2658
      %v2660 = vrot.slane %v2627, %v2659
      %v2661 = vlaneseq
      %v2662 = vshrl.u32 %v2661, 7
      %v2663 = vsub.s32 6, %v2662
      %v2664 = vrot.slane %v2627, %v2663
      %v2736 = vunpack.c.l.b16 %v2563
      %v2737 = vunpack.c.h.b16 %v2563
      %v2738 = vunpack.c.l.b16 %v2564
      %v2739 = vunpack.c.h.b16 %v2564
      %v2740 = vunpack.c.l.b16 %v2565
      %v2741 = vunpack.c.h.b16 %v2565
      %v2742 = vunpack.c.l.b16 %v2566
      %v2743 = vunpack.c.l.b16 %v2567
      %v2744 = vunpack.c.h.b16 %v2567
      %v2745 = vunpack.c.l.b16 %v2568
      %v2746 = vunpack.c.h.b16 %v2568
      %v2747 = vunpack.c.l.b16 %v2569
      %v2748 = vunpack.c.h.b16 %v2569
      %v2749 = vunpack.c.l.b16 %v2570
      %v2750 = vunpack.c.l.b16 %v2571
      %v2751 = vunpack.c.h.b16 %v2571
      %v2752 = vunpack.c.l.b16 %v2572
      %v2753 = vunpack.c.h.b16 %v2572
      %v2754 = vunpack.c.l.b16 %v2573
      %v2755 = vunpack.c.h.b16 %v2573
      %v2756 = vunpack.c.l.b16 %v2574
      %v2757 = vunpack.c.l.b16 %v2575
      %v2758 = vunpack.c.h.b16 %v2575
      %v2759 = vunpack.c.l.b16 %v2576
      %v2760 = vunpack.c.h.b16 %v2576
      %v2761 = vunpack.c.l.b16 %v2577
      %v2762 = vunpack.c.h.b16 %v2577
      %v2763 = vunpack.c.l.b16 %v2578
      %v2764 = vunpack.c.l.b16 %v2579
      %v2765 = vunpack.c.h.b16 %v2579
      %v2766 = vunpack.c.l.b16 %v2580
      %v2767 = vunpack.c.h.b16 %v2580
      %v2768 = vunpack.c.l.b16 %v2581
      %v2769 = vunpack.c.h.b16 %v2581
      %v2770 = vunpack.c.l.b16 %v2582
      %v2771 = vunpack.c.l.b16 %v2583
      %v2772 = vunpack.c.h.b16 %v2583
      %v2773 = vunpack.c.l.b16 %v2584
      %v2774 = vunpack.c.h.b16 %v2584
      %v2775 = vunpack.c.l.b16 %v2585
      %v2776 = vunpack.c.h.b16 %v2585
      %v2777 = vunpack.c.l.b16 %v2586
      %v2778 = vunpack.c.l.b16 %v2587
      %v2779 = vunpack.c.h.b16 %v2587
      %v2780 = vunpack.c.l.b16 %v2588
      %v2781 = vunpack.c.h.b16 %v2588
      %v2782 = vunpack.c.l.b16 %v2589
      %v2783 = vunpack.c.h.b16 %v2589
      %v2784 = vunpack.c.l.b16 %v2590
      %v2785 = vunpack.c.l.b16 %v2591
      %v2786 = vunpack.c.h.b16 %v2591
      %v2787 = vunpack.c.l.b16 %v2592
      %v2788 = vunpack.c.h.b16 %v2592
      %v2789 = vunpack.c.l.b16 %v2593
      %v2790 = vunpack.c.h.b16 %v2593
      %v2791 = vunpack.c.l.b16 %v2594
      %v2792 = vunpack.c.l.b16 %v2595
      %v2793 = vunpack.c.h.b16 %v2595
      %v2794 = vunpack.c.l.b16 %v2596
      %v2795 = vunpack.c.h.b16 %v2596
      %v2796 = vunpack.c.l.b16 %v2597
      %v2797 = vunpack.c.h.b16 %v2597
      %v2798 = vunpack.c.l.b16 %v2598
      %v2799 = vunpack.c.l.b16 %v2599
      %v2800 = vunpack.c.h.b16 %v2599
      %v2801 = vunpack.c.l.b16 %v2600
      %v2802 = vunpack.c.h.b16 %v2600
      %v2803 = vunpack.c.l.b16 %v2601
      %v2804 = vunpack.c.h.b16 %v2601
      %v2805 = vunpack.c.l.b16 %v2602
      %v2806 = vunpack.c.l.b16 %v2603
      %v2807 = vunpack.c.h.b16 %v2603
      %v2808 = vunpack.c.l.b16 %v2604
      %v2809 = vunpack.c.h.b16 %v2604
      %v2810 = vunpack.c.l.b16 %v2605
      %v2811 = vunpack.c.h.b16 %v2605
      %v2812 = vunpack.c.l.b16 %v2606
      %v2813 = vunpack.c.l.b16 %v2607
      %v2814 = vunpack.c.h.b16 %v2607
      %v2815 = vunpack.c.l.b16 %v2608
      %v2816 = vunpack.c.h.b16 %v2608
      %v2817 = vunpack.c.l.b16 %v2609
      %v2818 = vunpack.c.h.b16 %v2609
      %v2819 = vunpack.c.l.b16 %v2610
      %v2820 = vunpack.c.l.b16 %v2611
      %v2821 = vunpack.c.h.b16 %v2611
      %v2822 = vunpack.c.l.b16 %v2612
      %v2823 = vunpack.c.h.b16 %v2612
      %v2824 = vunpack.c.l.b16 %v2613
      %v2825 = vunpack.c.h.b16 %v2613
      %v2826 = vunpack.c.l.b16 %v2614
      %v2827 = vunpack.c.l.b16 %v2615
      %v2828 = vunpack.c.h.b16 %v2615
      %v2829 = vunpack.c.l.b16 %v2616
      %v2830 = vunpack.c.h.b16 %v2616
      %v2831 = vunpack.c.l.b16 %v2617
      %v2832 = vunpack.c.h.b16 %v2617
      %v2833 = vunpack.c.l.b16 %v2618
      %v2834 = vunpack.c.l.b16 %v2619
      %v2835 = vunpack.c.h.b16 %v2619
      %v2836 = vunpack.c.l.b16 %v2620
      %v2837 = vunpack.c.h.b16 %v2620
      %v2838 = vunpack.c.l.b16 %v2621
      %v2839 = vunpack.c.h.b16 %v2621
      %v2840 = vunpack.c.l.b16 %v2622
      %v2841 = vunpack.c.l.b16 %v2623
      %v2842 = vunpack.c.h.b16 %v2623
      %v2843 = vunpack.c.l.b16 %v2624
      %v2844 = vunpack.c.h.b16 %v2624
      %v2845 = vunpack.c.l.b16 %v2625
      %v2846 = vunpack.c.h.b16 %v2625
      %v2847 = vunpack.c.l.b16 %v2626
      %v2848 = vpack.c.b16 %v2743, %v2736
      %v2849 = vpack.c.b16 %v2744, %v2737
      %v2850 = vpack.c.b16 %v2745, %v2738
      %v2851 = vpack.c.b16 %v2746, %v2739
      %v2852 = vpack.c.b16 %v2747, %v2740
      %v2853 = vpack.c.b16 %v2748, %v2741
      %v2854 = vpack.c.b16 %v2749, %v2742
      %v2855 = vpack.c.b16 %v2757, %v2750
      %v2856 = vpack.c.b16 %v2758, %v2751
      %v2857 = vpack.c.b16 %v2759, %v2752
      %v2858 = vpack.c.b16 %v2760, %v2753
      %v2859 = vpack.c.b16 %v2761, %v2754
      %v2860 = vpack.c.b16 %v2762, %v2755
      %v2861 = vpack.c.b16 %v2763, %v2756
      %v2862 = vpack.c.b16 %v2771, %v2764
      %v2863 = vpack.c.b16 %v2772, %v2765
      %v2864 = vpack.c.b16 %v2773, %v2766
      %v2865 = vpack.c.b16 %v2774, %v2767
      %v2866 = vpack.c.b16 %v2775, %v2768
      %v2867 = vpack.c.b16 %v2776, %v2769
      %v2868 = vpack.c.b16 %v2777, %v2770
      %v2869 = vpack.c.b16 %v2785, %v2778
      %v2870 = vpack.c.b16 %v2786, %v2779
      %v2871 = vpack.c.b16 %v2787, %v2780
      %v2872 = vpack.c.b16 %v2788, %v2781
      %v2873 = vpack.c.b16 %v2789, %v2782
      %v2874 = vpack.c.b16 %v2790, %v2783
      %v2875 = vpack.c.b16 %v2791, %v2784
      %v2876 = vpack.c.b16 %v2799, %v2792
      %v2877 = vpack.c.b16 %v2800, %v2793
      %v2878 = vpack.c.b16 %v2801, %v2794
      %v2879 = vpack.c.b16 %v2802, %v2795
      %v2880 = vpack.c.b16 %v2803, %v2796
      %v2881 = vpack.c.b16 %v2804, %v2797
      %v2882 = vpack.c.b16 %v2805, %v2798
      %v2883 = vpack.c.b16 %v2813, %v2806
      %v2884 = vpack.c.b16 %v2814, %v2807
      %v2885 = vpack.c.b16 %v2815, %v2808
      %v2886 = vpack.c.b16 %v2816, %v2809
      %v2887 = vpack.c.b16 %v2817, %v2810
      %v2888 = vpack.c.b16 %v2818, %v2811
      %v2889 = vpack.c.b16 %v2819, %v2812
      %v2890 = vpack.c.b16 %v2827, %v2820
      %v2891 = vpack.c.b16 %v2828, %v2821
      %v2892 = vpack.c.b16 %v2829, %v2822
      %v2893 = vpack.c.b16 %v2830, %v2823
      %v2894 = vpack.c.b16 %v2831, %v2824
      %v2895 = vpack.c.b16 %v2832, %v2825
      %v2896 = vpack.c.b16 %v2833, %v2826
      %v2897 = vpack.c.b16 %v2841, %v2834
      %v2898 = vpack.c.b16 %v2842, %v2835
      %v2899 = vpack.c.b16 %v2843, %v2836
      %v2900 = vpack.c.b16 %v2844, %v2837
      %v2901 = vpack.c.b16 %v2845, %v2838
      %v2902 = vpack.c.b16 %v2846, %v2839
      %v2903 = vpack.c.b16 %v2847, %v2840
      %2960 = vmatprep.subr.bf16.mxu0 %v2849
      %2961 = vmatpush1.bf16.msra.mxu0 %v2848
      %2962 = vmatprep.subr.bf16.mxu0 %v2856
      %2963 = vmatpush1.bf16.msra.mxu0 %v2855
      %2964 = vmatprep.subr.bf16.mxu0 %v2863
      %2965 = vmatpush1.bf16.msra.mxu0 %v2862
      %2966 = vmatprep.subr.bf16.mxu0 %v2870
      %2967 = vmatpush1.bf16.msra.mxu0 %v2869
      %2968 = vmatprep.subr.bf16.mxu0 %v2877
      %2969 = vmatpush1.bf16.msra.mxu0 %v2876
      %2970 = vmatprep.subr.bf16.mxu0 %v2884
      %2971 = vmatpush1.bf16.msra.mxu0 %v2883
      %2972 = vmatprep.subr.bf16.mxu0 %v2891
      %2973 = vmatpush1.bf16.msra.mxu0 %v2890
      %2974 = vmatprep.subr.bf16.mxu0 %v2898
      %2975 = vmatpush1.bf16.msra.mxu0 %v2897
      %2976 = vmatprep.subr.bf16.mxu0 0
      %2977 = vmatpush1.bf16.msra.mxu0 0
      %2978 = vmatprep.subr.bf16.mxu0 0
      %2979 = vmatpush1.bf16.msra.mxu0 0
      %2980 = vmatprep.subr.bf16.mxu0 0
      %2981 = vmatpush1.bf16.msra.mxu0 0
      %2982 = vmatprep.subr.bf16.mxu0 0
      %2983 = vmatpush1.bf16.msra.mxu0 0
      %2984 = vmatprep.subr.bf16.mxu0 0
      %2985 = vmatpush1.bf16.msra.mxu0 0
      %2986 = vmatprep.subr.bf16.mxu0 0
      %2987 = vmatpush1.bf16.msra.mxu0 0
      %2988 = vmatprep.subr.bf16.mxu0 0
      %2989 = vmatpush1.bf16.msra.mxu0 0
      %2990 = vmatprep.subr.bf16.mxu0 0
      %2991 = vmatpush1.bf16.msra.mxu0 0
      %2992 = vmatprep.mubr.bf16.mxu0 0
      %2993 = vmatmul.mubr.bf16.gmra.mrb[0].mxu0 %v2628
      %v2994 = vpop.f32.mrb[0].mxu0
      %v2995 = vadd.f32 %v2640, %v2994
      %v2996 = vpop.f32.mrb[0].mxu0
      %v2997 = vadd.f32 %v2644, %v2996
      %v2998 = vpop.f32.mrb[0].mxu0
      %v2999 = vadd.f32 %v2640, %v2998
      %v3000 = vpop.f32.mrb[0].mxu0
      %v3001 = vadd.f32 %v2644, %v3000
      %3002 = vmatprep.mubr.bf16.mxu0 0
      %3003 = vmatmul.mubr.bf16.gmra.mrb[0].mxu0 %v2629
      %v3004 = vpop.f32.mrb[0].mxu0
      %v3005 = vadd.f32 %v2640, %v3004
      %v3006 = vpop.f32.mrb[0].mxu0
      %v3007 = vadd.f32 %v2644, %v3006
      %v3008 = vpop.f32.mrb[0].mxu0
      %v3009 = vadd.f32 %v2640, %v3008
      %v3010 = vpop.f32.mrb[0].mxu0
      %v3011 = vadd.f32 %v2644, %v3010
      %3012 = vmatprep.mubr.bf16.mxu0 0
      %3013 = vmatmul.mubr.bf16.gmra.mrb[0].mxu0 %v2630
      %v3014 = vpop.f32.mrb[0].mxu0
      %v3015 = vadd.f32 %v2640, %v3014
      %v3016 = vpop.f32.mrb[0].mxu0
      %v3017 = vadd.f32 %v2644, %v3016
      %v3018 = vpop.f32.mrb[0].mxu0
      %v3019 = vadd.f32 %v2640, %v3018
      %v3020 = vpop.f32.mrb[0].mxu0
      %v3021 = vadd.f32 %v2644, %v3020
      %3022 = vmatprep.mubr.bf16.mxu0 0
      %3023 = vmatmul.mubr.bf16.gmra.mrb[0].mxu0 %v2631
      %v3024 = vpop.f32.mrb[0].mxu0
      %v3025 = vadd.f32 %v2640, %v3024
      %v3026 = vpop.f32.mrb[0].mxu0
      %v3027 = vadd.f32 %v2644, %v3026
      %v3028 = vpop.f32.mrb[0].mxu0
      %v3029 = vadd.f32 %v2640, %v3028
      %v3030 = vpop.f32.mrb[0].mxu0
      %v3031 = vadd.f32 %v2644, %v3030
      %3032 = vmatprep.mubr.bf16.mxu0 0
      %3033 = vmatmul.mubr.bf16.gmra.mrb[0].mxu0 %v2632
      %v3034 = vpop.f32.mrb[0].mxu0
      %v3035 = vadd.f32 %v2640, %v3034
      %v3036 = vpop.f32.mrb[0].mxu0
      %v3037 = vadd.f32 %v2644, %v3036
      %v3038 = vpop.f32.mrb[0].mxu0
      %v3039 = vadd.f32 %v2640, %v3038
      %v3040 = vpop.f32.mrb[0].mxu0
      %v3041 = vadd.f32 %v2644, %v3040
      %3042 = vmatprep.mubr.bf16.mxu0 0
      %3043 = vmatmul.mubr.bf16.gmra.mrb[0].mxu0 %v2633
      %v3044 = vpop.f32.mrb[0].mxu0
      %v3045 = vadd.f32 %v2640, %v3044
      %v3046 = vpop.f32.mrb[0].mxu0
      %v3047 = vadd.f32 %v2644, %v3046
      %v3048 = vpop.f32.mrb[0].mxu0
      %v3049 = vadd.f32 %v2640, %v3048
      %v3050 = vpop.f32.mrb[0].mxu0
      %v3051 = vadd.f32 %v2644, %v3050
      %3052 = vmatprep.mubr.bf16.mxu0 0
      %3053 = vmatmul.mubr.bf16.gmra.mrb[0].mxu0 %v2634
      %v3054 = vpop.f32.mrb[0].mxu0
      %v3055 = vadd.f32 %v2640, %v3054
      %v3056 = vpop.f32.mrb[0].mxu0
      %v3057 = vadd.f32 %v2644, %v3056
      %v3058 = vpop.f32.mrb[0].mxu0
      %v3059 = vadd.f32 %v2640, %v3058
      %v3060 = vpop.f32.mrb[0].mxu0
      %v3061 = vadd.f32 %v2644, %v3060
      %3062 = vmatprep.mubr.bf16.mxu0 0
      %3063 = vmatmul.mubr.bf16.gmra.mrb[0].mxu0 %v2635
      %v3064 = vpop.f32.mrb[0].mxu0
      %v3065 = vadd.f32 %v2640, %v3064
      %v3066 = vpop.f32.mrb[0].mxu0
      %v3067 = vadd.f32 %v2644, %v3066
      %v3068 = vpop.f32.mrb[0].mxu0
      %v3069 = vadd.f32 %v2640, %v3068
      %v3070 = vpop.f32.mrb[0].mxu0
      %v3071 = vadd.f32 %v2644, %v3070
      %3072 = vdwg.mxu0
      %3073 = vmatprep.subr.bf16.mxu0 %v2851
      %3074 = vmatpush1.bf16.msra.mxu0 %v2850
      %3075 = vmatprep.subr.bf16.mxu0 %v2858
      %3076 = vmatpush1.bf16.msra.mxu0 %v2857
      %3077 = vmatprep.subr.bf16.mxu0 %v2865
      %3078 = vmatpush1.bf16.msra.mxu0 %v2864
      %3079 = vmatprep.subr.bf16.mxu0 %v2872
      %3080 = vmatpush1.bf16.msra.mxu0 %v2871
      %3081 = vmatprep.subr.bf16.mxu0 %v2879
      %3082 = vmatpush1.bf16.msra.mxu0 %v2878
      %3083 = vmatprep.subr.bf16.mxu0 %v2886
      %3084 = vmatpush1.bf16.msra.mxu0 %v2885
      %3085 = vmatprep.subr.bf16.mxu0 %v2893
      %3086 = vmatpush1.bf16.msra.mxu0 %v2892
      %3087 = vmatprep.subr.bf16.mxu0 %v2900
      %3088 = vmatpush1.bf16.msra.mxu0 %v2899
      %3089 = vmatprep.subr.bf16.mxu0 0
      %3090 = vmatpush1.bf16.msra.mxu0 0
      %3091 = vmatprep.subr.bf16.mxu0 0
      %3092 = vmatpush1.bf16.msra.mxu0 0
      %3093 = vmatprep.subr.bf16.mxu0 0
      %3094 = vmatpush1.bf16.msra.mxu0 0
      %3095 = vmatprep.subr.bf16.mxu0 0
      %3096 = vmatpush1.bf16.msra.mxu0 0
      %3097 = vmatprep.subr.bf16.mxu0 0
      %3098 = vmatpush1.bf16.msra.mxu0 0
      %3099 = vmatprep.subr.bf16.mxu0 0
      %3100 = vmatpush1.bf16.msra.mxu0 0
      %3101 = vmatprep.subr.bf16.mxu0 0
      %3102 = vmatpush1.bf16.msra.mxu0 0
      %3103 = vmatprep.subr.bf16.mxu0 0
      %3104 = vmatpush1.bf16.msra.mxu0 0
      %3105 = vmatprep.mubr.bf16.mxu0 0
      %3106 = vmatmul.mubr.bf16.gmra.mrb[0].mxu0 %v2628
      %v3107 = vpop.f32.mrb[0].mxu0
      %v3108 = vadd.f32 %v2648, %v3107
      %v3109 = vpop.f32.mrb[0].mxu0
      %v3110 = vadd.f32 %v2652, %v3109
      %v3111 = vpop.f32.mrb[0].mxu0
      %v3112 = vadd.f32 %v2648, %v3111
      %v3113 = vpop.f32.mrb[0].mxu0
      %v3114 = vadd.f32 %v2652, %v3113
      %3115 = vmatprep.mubr.bf16.mxu0 0
      %3116 = vmatmul.mubr.bf16.gmra.mrb[0].mxu0 %v2629
      %v3117 = vpop.f32.mrb[0].mxu0
      %v3118 = vadd.f32 %v2648, %v3117
      %v3119 = vpop.f32.mrb[0].mxu0
      %v3120 = vadd.f32 %v2652, %v3119
      %v3121 = vpop.f32.mrb[0].mxu0
      %v3122 = vadd.f32 %v2648, %v3121
      %v3123 = vpop.f32.mrb[0].mxu0
      %v3124 = vadd.f32 %v2652, %v3123
      %3125 = vmatprep.mubr.bf16.mxu0 0
      %3126 = vmatmul.mubr.bf16.gmra.mrb[0].mxu0 %v2630
      %v3127 = vpop.f32.mrb[0].mxu0
      %v3128 = vadd.f32 %v2648, %v3127
      %v3129 = vpop.f32.mrb[0].mxu0
      %v3130 = vadd.f32 %v2652, %v3129
      %v3131 = vpop.f32.mrb[0].mxu0
      %v3132 = vadd.f32 %v2648, %v3131
      %v3133 = vpop.f32.mrb[0].mxu0
      %v3134 = vadd.f32 %v2652, %v3133
      %3135 = vmatprep.mubr.bf16.mxu0 0
      %3136 = vmatmul.mubr.bf16.gmra.mrb[0].mxu0 %v2631
      %v3137 = vpop.f32.mrb[0].mxu0
      %v3138 = vadd.f32 %v2648, %v3137
      %v3139 = vpop.f32.mrb[0].mxu0
      %v3140 = vadd.f32 %v2652, %v3139
      %v3141 = vpop.f32.mrb[0].mxu0
      %v3142 = vadd.f32 %v2648, %v3141
      %v3143 = vpop.f32.mrb[0].mxu0
      %v3144 = vadd.f32 %v2652, %v3143
      %3145 = vmatprep.mubr.bf16.mxu0 0
      %3146 = vmatmul.mubr.bf16.gmra.mrb[0].mxu0 %v2632
      %v3147 = vpop.f32.mrb[0].mxu0
      %v3148 = vadd.f32 %v2648, %v3147
      %v3149 = vpop.f32.mrb[0].mxu0
      %v3150 = vadd.f32 %v2652, %v3149
      %v3151 = vpop.f32.mrb[0].mxu0
      %v3152 = vadd.f32 %v2648, %v3151
      %v3153 = vpop.f32.mrb[0].mxu0
      %v3154 = vadd.f32 %v2652, %v3153
      %3155 = vmatprep.mubr.bf16.mxu0 0
      %3156 = vmatmul.mubr.bf16.gmra.mrb[0].mxu0 %v2633
      %v3157 = vpop.f32.mrb[0].mxu0
      %v3158 = vadd.f32 %v2648, %v3157
      %v3159 = vpop.f32.mrb[0].mxu0
      %v3160 = vadd.f32 %v2652, %v3159
      %v3161 = vpop.f32.mrb[0].mxu0
      %v3162 = vadd.f32 %v2648, %v3161
      %v3163 = vpop.f32.mrb[0].mxu0
      %v3164 = vadd.f32 %v2652, %v3163
      %3165 = vmatprep.mubr.bf16.mxu0 0
      %3166 = vmatmul.mubr.bf16.gmra.mrb[0].mxu0 %v2634
      %v3167 = vpop.f32.mrb[0].mxu0
      %v3168 = vadd.f32 %v2648, %v3167
      %v3169 = vpop.f32.mrb[0].mxu0
      %v3170 = vadd.f32 %v2652, %v3169
      %v3171 = vpop.f32.mrb[0].mxu0
      %v3172 = vadd.f32 %v2648, %v3171
      %v3173 = vpop.f32.mrb[0].mxu0
      %v3174 = vadd.f32 %v2652, %v3173
      %3175 = vmatprep.mubr.bf16.mxu0 0
      %3176 = vmatmul.mubr.bf16.gmra.mrb[0].mxu0 %v2635
      %v3177 = vpop.f32.mrb[0].mxu0
      %v3178 = vadd.f32 %v2648, %v3177
      %v3179 = vpop.f32.mrb[0].mxu0
      %v3180 = vadd.f32 %v2652, %v3179
      %v3181 = vpop.f32.mrb[0].mxu0
      %v3182 = vadd.f32 %v2648, %v3181
      %v3183 = vpop.f32.mrb[0].mxu0
      %v3184 = vadd.f32 %v2652, %v3183
      %3185 = vdwg.mxu0
      %3186 = vmatprep.subr.bf16.mxu0 %v2853
      %3187 = vmatpush1.bf16.msra.mxu0 %v2852
      %3188 = vmatprep.subr.bf16.mxu0 %v2860
      %3189 = vmatpush1.bf16.msra.mxu0 %v2859
      %3190 = vmatprep.subr.bf16.mxu0 %v2867
      %3191 = vmatpush1.bf16.msra.mxu0 %v2866
      %3192 = vmatprep.subr.bf16.mxu0 %v2874
      %3193 = vmatpush1.bf16.msra.mxu0 %v2873
      %3194 = vmatprep.subr.bf16.mxu0 %v2881
      %3195 = vmatpush1.bf16.msra.mxu0 %v2880
      %3196 = vmatprep.subr.bf16.mxu0 %v2888
      %3197 = vmatpush1.bf16.msra.mxu0 %v2887
      %3198 = vmatprep.subr.bf16.mxu0 %v2895
      %3199 = vmatpush1.bf16.msra.mxu0 %v2894
      %3200 = vmatprep.subr.bf16.mxu0 %v2902
      %3201 = vmatpush1.bf16.msra.mxu0 %v2901
      %3202 = vmatprep.subr.bf16.mxu0 0
      %3203 = vmatpush1.bf16.msra.mxu0 0
      %3204 = vmatprep.subr.bf16.mxu0 0
      %3205 = vmatpush1.bf16.msra.mxu0 0
      %3206 = vmatprep.subr.bf16.mxu0 0
      %3207 = vmatpush1.bf16.msra.mxu0 0
      %3208 = vmatprep.subr.bf16.mxu0 0
      %3209 = vmatpush1.bf16.msra.mxu0 0
      %3210 = vmatprep.subr.bf16.mxu0 0
      %3211 = vmatpush1.bf16.msra.mxu0 0
      %3212 = vmatprep.subr.bf16.mxu0 0
      %3213 = vmatpush1.bf16.msra.mxu0 0
      %3214 = vmatprep.subr.bf16.mxu0 0
      %3215 = vmatpush1.bf16.msra.mxu0 0
      %3216 = vmatprep.subr.bf16.mxu0 0
      %3217 = vmatpush1.bf16.msra.mxu0 0
      %3218 = vmatprep.mubr.bf16.mxu0 0
      %3219 = vmatmul.mubr.bf16.gmra.mrb[0].mxu0 %v2628
      %v3220 = vpop.f32.mrb[0].mxu0
      %v3221 = vadd.f32 %v2656, %v3220
      %v3222 = vpop.f32.mrb[0].mxu0
      %v3223 = vadd.f32 %v2660, %v3222
      %v3224 = vpop.f32.mrb[0].mxu0
      %v3225 = vadd.f32 %v2656, %v3224
      %v3226 = vpop.f32.mrb[0].mxu0
      %v3227 = vadd.f32 %v2660, %v3226
      %3228 = vmatprep.mubr.bf16.mxu0 0
      %3229 = vmatmul.mubr.bf16.gmra.mrb[0].mxu0 %v2629
      %v3230 = vpop.f32.mrb[0].mxu0
      %v3231 = vadd.f32 %v2656, %v3230
      %v3232 = vpop.f32.mrb[0].mxu0
      %v3233 = vadd.f32 %v2660, %v3232
      %v3234 = vpop.f32.mrb[0].mxu0
      %v3235 = vadd.f32 %v2656, %v3234
      %v3236 = vpop.f32.mrb[0].mxu0
      %v3237 = vadd.f32 %v2660, %v3236
      %3238 = vmatprep.mubr.bf16.mxu0 0
      %3239 = vmatmul.mubr.bf16.gmra.mrb[0].mxu0 %v2630
      %v3240 = vpop.f32.mrb[0].mxu0
      %v3241 = vadd.f32 %v2656, %v3240
      %v3242 = vpop.f32.mrb[0].mxu0
      %v3243 = vadd.f32 %v2660, %v3242
      %v3244 = vpop.f32.mrb[0].mxu0
      %v3245 = vadd.f32 %v2656, %v3244
      %v3246 = vpop.f32.mrb[0].mxu0
      %v3247 = vadd.f32 %v2660, %v3246
      %3248 = vmatprep.mubr.bf16.mxu0 0
      %3249 = vmatmul.mubr.bf16.gmra.mrb[0].mxu0 %v2631
      %v3250 = vpop.f32.mrb[0].mxu0
      %v3251 = vadd.f32 %v2656, %v3250
      %v3252 = vpop.f32.mrb[0].mxu0
      %v3253 = vadd.f32 %v2660, %v3252
      %v3254 = vpop.f32.mrb[0].mxu0
      %v3255 = vadd.f32 %v2656, %v3254
      %v3256 = vpop.f32.mrb[0].mxu0
      %v3257 = vadd.f32 %v2660, %v3256
      %3258 = vmatprep.mubr.bf16.mxu0 0
      %3259 = vmatmul.mubr.bf16.gmra.mrb[0].mxu0 %v2632
      %v3260 = vpop.f32.mrb[0].mxu0
      %v3261 = vadd.f32 %v2656, %v3260
      %v3262 = vpop.f32.mrb[0].mxu0
      %v3263 = vadd.f32 %v2660, %v3262
      %v3264 = vpop.f32.mrb[0].mxu0
      %v3265 = vadd.f32 %v2656, %v3264
      %v3266 = vpop.f32.mrb[0].mxu0
      %v3267 = vadd.f32 %v2660, %v3266
      %3268 = vmatprep.mubr.bf16.mxu0 0
      %3269 = vmatmul.mubr.bf16.gmra.mrb[0].mxu0 %v2633
      %v3270 = vpop.f32.mrb[0].mxu0
      %v3271 = vadd.f32 %v2656, %v3270
      %v3272 = vpop.f32.mrb[0].mxu0
      %v3273 = vadd.f32 %v2660, %v3272
      %v3274 = vpop.f32.mrb[0].mxu0
      %v3275 = vadd.f32 %v2656, %v3274
      %v3276 = vpop.f32.mrb[0].mxu0
      %v3277 = vadd.f32 %v2660, %v3276
      %3278 = vmatprep.mubr.bf16.mxu0 0
      %3279 = vmatmul.mubr.bf16.gmra.mrb[0].mxu0 %v2634
      %v3280 = vpop.f32.mrb[0].mxu0
      %v3281 = vadd.f32 %v2656, %v3280
      %v3282 = vpop.f32.mrb[0].mxu0
      %v3283 = vadd.f32 %v2660, %v3282
      %v3284 = vpop.f32.mrb[0].mxu0
      %v3285 = vadd.f32 %v2656, %v3284
      %v3286 = vpop.f32.mrb[0].mxu0
      %v3287 = vadd.f32 %v2660, %v3286
      %3288 = vmatprep.mubr.bf16.mxu0 0
      %3289 = vmatmul.mubr.bf16.gmra.mrb[0].mxu0 %v2635
      %v3290 = vpop.f32.mrb[0].mxu0
      %v3291 = vadd.f32 %v2656, %v3290
      %v3292 = vpop.f32.mrb[0].mxu0
      %v3293 = vadd.f32 %v2660, %v3292
      %v3294 = vpop.f32.mrb[0].mxu0
      %v3295 = vadd.f32 %v2656, %v3294
      %v3296 = vpop.f32.mrb[0].mxu0
      %v3297 = vadd.f32 %v2660, %v3296
      %3298 = vdwg.mxu0
      %3299 = vmatprep.subr.bf16.mxu0 0
      %3300 = vmatpush1.bf16.msra.mxu0 %v2854
      %3301 = vmatprep.subr.bf16.mxu0 0
      %3302 = vmatpush1.bf16.msra.mxu0 %v2861
      %3303 = vmatprep.subr.bf16.mxu0 0
      %3304 = vmatpush1.bf16.msra.mxu0 %v2868
      %3305 = vmatprep.subr.bf16.mxu0 0
      %3306 = vmatpush1.bf16.msra.mxu0 %v2875
      %3307 = vmatprep.subr.bf16.mxu0 0
      %3308 = vmatpush1.bf16.msra.mxu0 %v2882
      %3309 = vmatprep.subr.bf16.mxu0 0
      %3310 = vmatpush1.bf16.msra.mxu0 %v2889
      %3311 = vmatprep.subr.bf16.mxu0 0
      %3312 = vmatpush1.bf16.msra.mxu0 %v2896
      %3313 = vmatprep.subr.bf16.mxu0 0
      %3314 = vmatpush1.bf16.msra.mxu0 %v2903
      %3315 = vmatprep.subr.bf16.mxu0 0
      %3316 = vmatpush1.bf16.msra.mxu0 0
      %3317 = vmatprep.subr.bf16.mxu0 0
      %3318 = vmatpush1.bf16.msra.mxu0 0
      %3319 = vmatprep.subr.bf16.mxu0 0
      %3320 = vmatpush1.bf16.msra.mxu0 0
      %3321 = vmatprep.subr.bf16.mxu0 0
      %3322 = vmatpush1.bf16.msra.mxu0 0
      %3323 = vmatprep.subr.bf16.mxu0 0
      %3324 = vmatpush1.bf16.msra.mxu0 0
      %3325 = vmatprep.subr.bf16.mxu0 0
      %3326 = vmatpush1.bf16.msra.mxu0 0
      %3327 = vmatprep.subr.bf16.mxu0 0
      %3328 = vmatpush1.bf16.msra.mxu0 0
      %3329 = vmatprep.subr.bf16.mxu0 0
      %3330 = vmatpush1.bf16.msra.mxu0 0
      %3331 = vmatprep.mubr.bf16.mxu0 0
      %3332 = vmatmul.mubr.bf16.gmra.mrb[0].mxu0 %v2628
      %v3333 = vpop.f32.mrb[0].mxu0
      %v3334 = vadd.f32 %v2664, %v3333
      %v3335 = vpop.f32.mrb[0].mxu0
      %v3336 = vpop.f32.mrb[0].mxu0
      %v3337 = vadd.f32 %v2664, %v3336
      %v3338 = vpop.f32.mrb[0].mxu0
      %3339 = vmatprep.mubr.bf16.mxu0 0
      %3340 = vmatmul.mubr.bf16.gmra.mrb[0].mxu0 %v2629
      %v3341 = vpop.f32.mrb[0].mxu0
      %v3342 = vadd.f32 %v2664, %v3341
      %v3343 = vpop.f32.mrb[0].mxu0
      %v3344 = vpop.f32.mrb[0].mxu0
      %v3345 = vadd.f32 %v2664, %v3344
      %v3346 = vpop.f32.mrb[0].mxu0
      %3347 = vmatprep.mubr.bf16.mxu0 0
      %3348 = vmatmul.mubr.bf16.gmra.mrb[0].mxu0 %v2630
      %v3349 = vpop.f32.mrb[0].mxu0
      %v3350 = vadd.f32 %v2664, %v3349
      %v3351 = vpop.f32.mrb[0].mxu0
      %v3352 = vpop.f32.mrb[0].mxu0
      %v3353 = vadd.f32 %v2664, %v3352
      %v3354 = vpop.f32.mrb[0].mxu0
      %3355 = vmatprep.mubr.bf16.mxu0 0
      %3356 = vmatmul.mubr.bf16.gmra.mrb[0].mxu0 %v2631
      %v3357 = vpop.f32.mrb[0].mxu0
      %v3358 = vadd.f32 %v2664, %v3357
      %v3359 = vpop.f32.mrb[0].mxu0
      %v3360 = vpop.f32.mrb[0].mxu0
      %v3361 = vadd.f32 %v2664, %v3360
      %v3362 = vpop.f32.mrb[0].mxu0
      %3363 = vmatprep.mubr.bf16.mxu0 0
      %3364 = vmatmul.mubr.bf16.gmra.mrb[0].mxu0 %v2632
      %v3365 = vpop.f32.mrb[0].mxu0
      %v3366 = vadd.f32 %v2664, %v3365
      %v3367 = vpop.f32.mrb[0].mxu0
      %v3368 = vpop.f32.mrb[0].mxu0
      %v3369 = vadd.f32 %v2664, %v3368
      %v3370 = vpop.f32.mrb[0].mxu0
      %3371 = vmatprep.mubr.bf16.mxu0 0
      %3372 = vmatmul.mubr.bf16.gmra.mrb[0].mxu0 %v2633
      %v3373 = vpop.f32.mrb[0].mxu0
      %v3374 = vadd.f32 %v2664, %v3373
      %v3375 = vpop.f32.mrb[0].mxu0
      %v3376 = vpop.f32.mrb[0].mxu0
      %v3377 = vadd.f32 %v2664, %v3376
      %v3378 = vpop.f32.mrb[0].mxu0
      %3379 = vmatprep.mubr.bf16.mxu0 0
      %3380 = vmatmul.mubr.bf16.gmra.mrb[0].mxu0 %v2634
      %v3381 = vpop.f32.mrb[0].mxu0
      %v3382 = vadd.f32 %v2664, %v3381
      %v3383 = vpop.f32.mrb[0].mxu0
      %v3384 = vpop.f32.mrb[0].mxu0
      %v3385 = vadd.f32 %v2664, %v3384
      %v3386 = vpop.f32.mrb[0].mxu0
      %3387 = vmatprep.mubr.bf16.mxu0 0
      %3388 = vmatmul.mubr.bf16.gmra.mrb[0].mxu0 %v2635
      %v3389 = vpop.f32.mrb[0].mxu0
      %v3390 = vadd.f32 %v2664, %v3389
      %v3391 = vpop.f32.mrb[0].mxu0
      %v3392 = vpop.f32.mrb[0].mxu0
      %v3393 = vadd.f32 %v2664, %v3392
      %v3394 = vpop.f32.mrb[0].mxu0
      %3395 = vdwg.mxu0
      %v3396 = vxor.u32 %v2995, 2147483648
      %v3397 = vxor.u32 %v2997, 2147483648
      %v3398 = vxor.u32 %v3108, 2147483648
      %v3399 = vxor.u32 %v3110, 2147483648
      %v3400 = vxor.u32 %v3221, 2147483648
      %v3401 = vxor.u32 %v3223, 2147483648
      %v3402 = vxor.u32 %v3334, 2147483648
      %v3403 = vxor.u32 %v2999, 2147483648
      %v3404 = vxor.u32 %v3001, 2147483648
      %v3405 = vxor.u32 %v3112, 2147483648
      %v3406 = vxor.u32 %v3114, 2147483648
      %v3407 = vxor.u32 %v3225, 2147483648
      %v3408 = vxor.u32 %v3227, 2147483648
      %v3409 = vxor.u32 %v3337, 2147483648
      %v3410 = vxor.u32 %v3005, 2147483648
      %v3411 = vxor.u32 %v3007, 2147483648
      %v3412 = vxor.u32 %v3118, 2147483648
      %v3413 = vxor.u32 %v3120, 2147483648
      %v3414 = vxor.u32 %v3231, 2147483648
      %v3415 = vxor.u32 %v3233, 2147483648
      %v3416 = vxor.u32 %v3342, 2147483648
      %v3417 = vxor.u32 %v3009, 2147483648
      %v3418 = vxor.u32 %v3011, 2147483648
      %v3419 = vxor.u32 %v3122, 2147483648
      %v3420 = vxor.u32 %v3124, 2147483648
      %v3421 = vxor.u32 %v3235, 2147483648
      %v3422 = vxor.u32 %v3237, 2147483648
      %v3423 = vxor.u32 %v3345, 2147483648
      %v3424 = vxor.u32 %v3015, 2147483648
      %v3425 = vxor.u32 %v3017, 2147483648
      %v3426 = vxor.u32 %v3128, 2147483648
      %v3427 = vxor.u32 %v3130, 2147483648
      %v3428 = vxor.u32 %v3241, 2147483648
      %v3429 = vxor.u32 %v3243, 2147483648
      %v3430 = vxor.u32 %v3350, 2147483648
      %v3431 = vxor.u32 %v3019, 2147483648
      %v3432 = vxor.u32 %v3021, 2147483648
      %v3433 = vxor.u32 %v3132, 2147483648
      %v3434 = vxor.u32 %v3134, 2147483648
      %v3435 = vxor.u32 %v3245, 2147483648
      %v3436 = vxor.u32 %v3247, 2147483648
      %v3437 = vxor.u32 %v3353, 2147483648
      %v3438 = vxor.u32 %v3025, 2147483648
      %v3439 = vxor.u32 %v3027, 2147483648
      %v3440 = vxor.u32 %v3138, 2147483648
      %v3441 = vxor.u32 %v3140, 2147483648
      %v3442 = vxor.u32 %v3251, 2147483648
      %v3443 = vxor.u32 %v3253, 2147483648
      %v3444 = vxor.u32 %v3358, 2147483648
      %v3445 = vxor.u32 %v3029, 2147483648
      %v3446 = vxor.u32 %v3031, 2147483648
      %v3447 = vxor.u32 %v3142, 2147483648
      %v3448 = vxor.u32 %v3144, 2147483648
      %v3449 = vxor.u32 %v3255, 2147483648
      %v3450 = vxor.u32 %v3257, 2147483648
      %v3451 = vxor.u32 %v3361, 2147483648
      %v3452 = vxor.u32 %v3035, 2147483648
      %v3453 = vxor.u32 %v3037, 2147483648
      %v3454 = vxor.u32 %v3148, 2147483648
      %v3455 = vxor.u32 %v3150, 2147483648
      %v3456 = vxor.u32 %v3261, 2147483648
      %v3457 = vxor.u32 %v3263, 2147483648
      %v3458 = vxor.u32 %v3366, 2147483648
      %v3459 = vxor.u32 %v3039, 2147483648
      %v3460 = vxor.u32 %v3041, 2147483648
      %v3461 = vxor.u32 %v3152, 2147483648
      %v3462 = vxor.u32 %v3154, 2147483648
      %v3463 = vxor.u32 %v3265, 2147483648
      %v3464 = vxor.u32 %v3267, 2147483648
      %v3465 = vxor.u32 %v3369, 2147483648
      %v3466 = vxor.u32 %v3045, 2147483648
      %v3467 = vxor.u32 %v3047, 2147483648
      %v3468 = vxor.u32 %v3158, 2147483648
      %v3469 = vxor.u32 %v3160, 2147483648
      %v3470 = vxor.u32 %v3271, 2147483648
      %v3471 = vxor.u32 %v3273, 2147483648
      %v3472 = vxor.u32 %v3374, 2147483648
      %v3473 = vxor.u32 %v3049, 2147483648
      %v3474 = vxor.u32 %v3051, 2147483648
      %v3475 = vxor.u32 %v3162, 2147483648
      %v3476 = vxor.u32 %v3164, 2147483648
      %v3477 = vxor.u32 %v3275, 2147483648
      %v3478 = vxor.u32 %v3277, 2147483648
      %v3479 = vxor.u32 %v3377, 2147483648
      %v3480 = vxor.u32 %v3055, 2147483648
      %v3481 = vxor.u32 %v3057, 2147483648
      %v3482 = vxor.u32 %v3168, 2147483648
      %v3483 = vxor.u32 %v3170, 2147483648
      %v3484 = vxor.u32 %v3281, 2147483648
      %v3485 = vxor.u32 %v3283, 2147483648
      %v3486 = vxor.u32 %v3382, 2147483648
      %v3487 = vxor.u32 %v3059, 2147483648
      %v3488 = vxor.u32 %v3061, 2147483648
      %v3489 = vxor.u32 %v3172, 2147483648
      %v3490 = vxor.u32 %v3174, 2147483648
      %v3491 = vxor.u32 %v3285, 2147483648
      %v3492 = vxor.u32 %v3287, 2147483648
      %v3493 = vxor.u32 %v3385, 2147483648
      %v3494 = vxor.u32 %v3065, 2147483648
      %v3495 = vxor.u32 %v3067, 2147483648
      %v3496 = vxor.u32 %v3178, 2147483648
      %v3497 = vxor.u32 %v3180, 2147483648
      %v3498 = vxor.u32 %v3291, 2147483648
      %v3499 = vxor.u32 %v3293, 2147483648
      %v3500 = vxor.u32 %v3390, 2147483648
      %v3501 = vxor.u32 %v3069, 2147483648
      %v3502 = vxor.u32 %v3071, 2147483648
      %v3503 = vxor.u32 %v3182, 2147483648
      %v3504 = vxor.u32 %v3184, 2147483648
      %v3505 = vxor.u32 %v3295, 2147483648
      %v3506 = vxor.u32 %v3297, 2147483648
      %v3507 = vxor.u32 %v3393, 2147483648
      %v3508 = vmul.f32 %v3396, 1.442695
      %v3509 = vpow.pop %v3508
      %v3510 = vmul.f32 %v3397, 1.442695
      %v3511 = vpow.pop %v3510
      %v3512 = vmul.f32 %v3398, 1.442695
      %v3513 = vpow.pop %v3512
      %v3514 = vmul.f32 %v3399, 1.442695
      %v3515 = vpow.pop %v3514
      %v3516 = vmul.f32 %v3400, 1.442695
      %v3517 = vpow.pop %v3516
      %v3518 = vmul.f32 %v3401, 1.442695
      %v3519 = vpow.pop %v3518
      %v3520 = vmul.f32 %v3402, 1.442695
      %v3521 = vpow.pop %v3520
      %v3522 = vmul.f32 %v3403, 1.442695
      %v3523 = vpow.pop %v3522
      %v3524 = vmul.f32 %v3404, 1.442695
      %v3525 = vpow.pop %v3524
      %v3526 = vmul.f32 %v3405, 1.442695
      %v3527 = vpow.pop %v3526
      %v3528 = vmul.f32 %v3406, 1.442695
      %v3529 = vpow.pop %v3528
      %v3530 = vmul.f32 %v3407, 1.442695
      %v3531 = vpow.pop %v3530
      %v3532 = vmul.f32 %v3408, 1.442695
      %v3533 = vpow.pop %v3532
      %v3534 = vmul.f32 %v3409, 1.442695
      %v3535 = vpow.pop %v3534
      %v3536 = vmul.f32 %v3410, 1.442695
      %v3537 = vpow.pop %v3536
      %v3538 = vmul.f32 %v3411, 1.442695
      %v3539 = vpow.pop %v3538
      %v3540 = vmul.f32 %v3412, 1.442695
      %v3541 = vpow.pop %v3540
      %v3542 = vmul.f32 %v3413, 1.442695
      %v3543 = vpow.pop %v3542
      %v3544 = vmul.f32 %v3414, 1.442695
      %v3545 = vpow.pop %v3544
      %v3546 = vmul.f32 %v3415, 1.442695
      %v3547 = vpow.pop %v3546
      %v3548 = vmul.f32 %v3416, 1.442695
      %v3549 = vpow.pop %v3548
      %v3550 = vmul.f32 %v3417, 1.442695
      %v3551 = vpow.pop %v3550
      %v3552 = vmul.f32 %v3418, 1.442695
      %v3553 = vpow.pop %v3552
      %v3554 = vmul.f32 %v3419, 1.442695
      %v3555 = vpow.pop %v3554
      %v3556 = vmul.f32 %v3420, 1.442695
      %v3557 = vpow.pop %v3556
      %v3558 = vmul.f32 %v3421, 1.442695
      %v3559 = vpow.pop %v3558
      %v3560 = vmul.f32 %v3422, 1.442695
      %v3561 = vpow.pop %v3560
      %v3562 = vmul.f32 %v3423, 1.442695
      %v3563 = vpow.pop %v3562
      %v3564 = vmul.f32 %v3424, 1.442695
      %v3565 = vpow.pop %v3564
      %v3566 = vmul.f32 %v3425, 1.442695
      %v3567 = vpow.pop %v3566
      %v3568 = vmul.f32 %v3426, 1.442695
      %v3569 = vpow.pop %v3568
      %v3570 = vmul.f32 %v3427, 1.442695
      %v3571 = vpow.pop %v3570
      %v3572 = vmul.f32 %v3428, 1.442695
      %v3573 = vpow.pop %v3572
      %v3574 = vmul.f32 %v3429, 1.442695
      %v3575 = vpow.pop %v3574
      %v3576 = vmul.f32 %v3430, 1.442695
      %v3577 = vpow.pop %v3576
      %v3578 = vmul.f32 %v3431, 1.442695
      %v3579 = vpow.pop %v3578
      %v3580 = vmul.f32 %v3432, 1.442695
      %v3581 = vpow.pop %v3580
      %v3582 = vmul.f32 %v3433, 1.442695
      %v3583 = vpow.pop %v3582
      %v3584 = vmul.f32 %v3434, 1.442695
      %v3585 = vpow.pop %v3584
      %v3586 = vmul.f32 %v3435, 1.442695
      %v3587 = vpow.pop %v3586
      %v3588 = vmul.f32 %v3436, 1.442695
      %v3589 = vpow.pop %v3588
      %v3590 = vmul.f32 %v3437, 1.442695
      %v3591 = vpow.pop %v3590
      %v3592 = vmul.f32 %v3438, 1.442695
      %v3593 = vpow.pop %v3592
      %v3594 = vmul.f32 %v3439, 1.442695
      %v3595 = vpow.pop %v3594
      %v3596 = vmul.f32 %v3440, 1.442695
      %v3597 = vpow.pop %v3596
      %v3598 = vmul.f32 %v3441, 1.442695
      %v3599 = vpow.pop %v3598
      %v3600 = vmul.f32 %v3442, 1.442695
      %v3601 = vpow.pop %v3600
      %v3602 = vmul.f32 %v3443, 1.442695
      %v3603 = vpow.pop %v3602
      %v3604 = vmul.f32 %v3444, 1.442695
      %v3605 = vpow.pop %v3604
      %v3606 = vmul.f32 %v3445, 1.442695
      %v3607 = vpow.pop %v3606
      %v3608 = vmul.f32 %v3446, 1.442695
      %v3609 = vpow.pop %v3608
      %v3610 = vmul.f32 %v3447, 1.442695
      %v3611 = vpow.pop %v3610
      %v3612 = vmul.f32 %v3448, 1.442695
      %v3613 = vpow.pop %v3612
      %v3614 = vmul.f32 %v3449, 1.442695
      %v3615 = vpow.pop %v3614
      %v3616 = vmul.f32 %v3450, 1.442695
      %v3617 = vpow.pop %v3616
      %v3618 = vmul.f32 %v3451, 1.442695
      %v3619 = vpow.pop %v3618
      %v3620 = vmul.f32 %v3452, 1.442695
      %v3621 = vpow.pop %v3620
      %v3622 = vmul.f32 %v3453, 1.442695
      %v3623 = vpow.pop %v3622
      %v3624 = vmul.f32 %v3454, 1.442695
      %v3625 = vpow.pop %v3624
      %v3626 = vmul.f32 %v3455, 1.442695
      %v3627 = vpow.pop %v3626
      %v3628 = vmul.f32 %v3456, 1.442695
      %v3629 = vpow.pop %v3628
      %v3630 = vmul.f32 %v3457, 1.442695
      %v3631 = vpow.pop %v3630
      %v3632 = vmul.f32 %v3458, 1.442695
      %v3633 = vpow.pop %v3632
      %v3634 = vmul.f32 %v3459, 1.442695
      %v3635 = vpow.pop %v3634
      %v3636 = vmul.f32 %v3460, 1.442695
      %v3637 = vpow.pop %v3636
      %v3638 = vmul.f32 %v3461, 1.442695
      %v3639 = vpow.pop %v3638
      %v3640 = vmul.f32 %v3462, 1.442695
      %v3641 = vpow.pop %v3640
      %v3642 = vmul.f32 %v3463, 1.442695
      %v3643 = vpow.pop %v3642
      %v3644 = vmul.f32 %v3464, 1.442695
      %v3645 = vpow.pop %v3644
      %v3646 = vmul.f32 %v3465, 1.442695
      %v3647 = vpow.pop %v3646
      %v3648 = vmul.f32 %v3466, 1.442695
      %v3649 = vpow.pop %v3648
      %v3650 = vmul.f32 %v3467, 1.442695
      %v3651 = vpow.pop %v3650
      %v3652 = vmul.f32 %v3468, 1.442695
      %v3653 = vpow.pop %v3652
      %v3654 = vmul.f32 %v3469, 1.442695
      %v3655 = vpow.pop %v3654
      %v3656 = vmul.f32 %v3470, 1.442695
      %v3657 = vpow.pop %v3656
      %v3658 = vmul.f32 %v3471, 1.442695
      %v3659 = vpow.pop %v3658
      %v3660 = vmul.f32 %v3472, 1.442695
      %v3661 = vpow.pop %v3660
      %v3662 = vmul.f32 %v3473, 1.442695
      %v3663 = vpow.pop %v3662
      %v3664 = vmul.f32 %v3474, 1.442695
      %v3665 = vpow.pop %v3664
      %v3666 = vmul.f32 %v3475, 1.442695
      %v3667 = vpow.pop %v3666
      %v3668 = vmul.f32 %v3476, 1.442695
      %v3669 = vpow.pop %v3668
      %v3670 = vmul.f32 %v3477, 1.442695
      %v3671 = vpow.pop %v3670
      %v3672 = vmul.f32 %v3478, 1.442695
      %v3673 = vpow.pop %v3672
      %v3674 = vmul.f32 %v3479, 1.442695
      %v3675 = vpow.pop %v3674
      %v3676 = vmul.f32 %v3480, 1.442695
      %v3677 = vpow.pop %v3676
      %v3678 = vmul.f32 %v3481, 1.442695
      %v3679 = vpow.pop %v3678
      %v3680 = vmul.f32 %v3482, 1.442695
      %v3681 = vpow.pop %v3680
      %v3682 = vmul.f32 %v3483, 1.442695
      %v3683 = vpow.pop %v3682
      %v3684 = vmul.f32 %v3484, 1.442695
      %v3685 = vpow.pop %v3684
      %v3686 = vmul.f32 %v3485, 1.442695
      %v3687 = vpow.pop %v3686
      %v3688 = vmul.f32 %v3486, 1.442695
      %v3689 = vpow.pop %v3688
      %v3690 = vmul.f32 %v3487, 1.442695
      %v3691 = vpow.pop %v3690
      %v3692 = vmul.f32 %v3488, 1.442695
      %v3693 = vpow.pop %v3692
      %v3694 = vmul.f32 %v3489, 1.442695
      %v3695 = vpow.pop %v3694
      %v3696 = vmul.f32 %v3490, 1.442695
      %v3697 = vpow.pop %v3696
      %v3698 = vmul.f32 %v3491, 1.442695
      %v3699 = vpow.pop %v3698
      %v3700 = vmul.f32 %v3492, 1.442695
      %v3701 = vpow.pop %v3700
      %v3702 = vmul.f32 %v3493, 1.442695
      %v3703 = vpow.pop %v3702
      %v3704 = vmul.f32 %v3494, 1.442695
      %v3705 = vpow.pop %v3704
      %v3706 = vmul.f32 %v3495, 1.442695
      %v3707 = vpow.pop %v3706
      %v3708 = vmul.f32 %v3496, 1.442695
      %v3709 = vpow.pop %v3708
      %v3710 = vmul.f32 %v3497, 1.442695
      %v3711 = vpow.pop %v3710
      %v3712 = vmul.f32 %v3498, 1.442695
      %v3713 = vpow.pop %v3712
      %v3714 = vmul.f32 %v3499, 1.442695
      %v3715 = vpow.pop %v3714
      %v3716 = vmul.f32 %v3500, 1.442695
      %v3717 = vpow.pop %v3716
      %v3718 = vmul.f32 %v3501, 1.442695
      %v3719 = vpow.pop %v3718
      %v3720 = vmul.f32 %v3502, 1.442695
      %v3721 = vpow.pop %v3720
      %v3722 = vmul.f32 %v3503, 1.442695
      %v3723 = vpow.pop %v3722
      %v3724 = vmul.f32 %v3504, 1.442695
      %v3725 = vpow.pop %v3724
      %v3726 = vmul.f32 %v3505, 1.442695
      %v3727 = vpow.pop %v3726
      %v3728 = vmul.f32 %v3506, 1.442695
      %v3729 = vpow.pop %v3728
      %v3730 = vmul.f32 %v3507, 1.442695
      %v3731 = vpow.pop %v3730
      %v3732 = vadd.f32 %v3509, 1.0
      %v3733 = vadd.f32 %v3511, 1.0
      %v3734 = vadd.f32 %v3513, 1.0
      %v3735 = vadd.f32 %v3515, 1.0
      %v3736 = vadd.f32 %v3517, 1.0
      %v3737 = vadd.f32 %v3519, 1.0
      %v3738 = vadd.f32 %v3521, 1.0
      %v3739 = vadd.f32 %v3523, 1.0
      %v3740 = vadd.f32 %v3525, 1.0
      %v3741 = vadd.f32 %v3527, 1.0
      %v3742 = vadd.f32 %v3529, 1.0
      %v3743 = vadd.f32 %v3531, 1.0
      %v3744 = vadd.f32 %v3533, 1.0
      %v3745 = vadd.f32 %v3535, 1.0
      %v3746 = vadd.f32 %v3537, 1.0
      %v3747 = vadd.f32 %v3539, 1.0
      %v3748 = vadd.f32 %v3541, 1.0
      %v3749 = vadd.f32 %v3543, 1.0
      %v3750 = vadd.f32 %v3545, 1.0
      %v3751 = vadd.f32 %v3547, 1.0
      %v3752 = vadd.f32 %v3549, 1.0
      %v3753 = vadd.f32 %v3551, 1.0
      %v3754 = vadd.f32 %v3553, 1.0
      %v3755 = vadd.f32 %v3555, 1.0
      %v3756 = vadd.f32 %v3557, 1.0
      %v3757 = vadd.f32 %v3559, 1.0
      %v3758 = vadd.f32 %v3561, 1.0
      %v3759 = vadd.f32 %v3563, 1.0
      %v3760 = vadd.f32 %v3565, 1.0
      %v3761 = vadd.f32 %v3567, 1.0
      %v3762 = vadd.f32 %v3569, 1.0
      %v3763 = vadd.f32 %v3571, 1.0
      %v3764 = vadd.f32 %v3573, 1.0
      %v3765 = vadd.f32 %v3575, 1.0
      %v3766 = vadd.f32 %v3577, 1.0
      %v3767 = vadd.f32 %v3579, 1.0
      %v3768 = vadd.f32 %v3581, 1.0
      %v3769 = vadd.f32 %v3583, 1.0
      %v3770 = vadd.f32 %v3585, 1.0
      %v3771 = vadd.f32 %v3587, 1.0
      %v3772 = vadd.f32 %v3589, 1.0
      %v3773 = vadd.f32 %v3591, 1.0
      %v3774 = vadd.f32 %v3593, 1.0
      %v3775 = vadd.f32 %v3595, 1.0
      %v3776 = vadd.f32 %v3597, 1.0
      %v3777 = vadd.f32 %v3599, 1.0
      %v3778 = vadd.f32 %v3601, 1.0
      %v3779 = vadd.f32 %v3603, 1.0
      %v3780 = vadd.f32 %v3605, 1.0
      %v3781 = vadd.f32 %v3607, 1.0
      %v3782 = vadd.f32 %v3609, 1.0
      %v3783 = vadd.f32 %v3611, 1.0
      %v3784 = vadd.f32 %v3613, 1.0
      %v3785 = vadd.f32 %v3615, 1.0
      %v3786 = vadd.f32 %v3617, 1.0
      %v3787 = vadd.f32 %v3619, 1.0
      %v3788 = vadd.f32 %v3621, 1.0
      %v3789 = vadd.f32 %v3623, 1.0
      %v3790 = vadd.f32 %v3625, 1.0
      %v3791 = vadd.f32 %v3627, 1.0
      %v3792 = vadd.f32 %v3629, 1.0
      %v3793 = vadd.f32 %v3631, 1.0
      %v3794 = vadd.f32 %v3633, 1.0
      %v3795 = vadd.f32 %v3635, 1.0
      %v3796 = vadd.f32 %v3637, 1.0
      %v3797 = vadd.f32 %v3639, 1.0
      %v3798 = vadd.f32 %v3641, 1.0
      %v3799 = vadd.f32 %v3643, 1.0
      %v3800 = vadd.f32 %v3645, 1.0
      %v3801 = vadd.f32 %v3647, 1.0
      %v3802 = vadd.f32 %v3649, 1.0
      %v3803 = vadd.f32 %v3651, 1.0
      %v3804 = vadd.f32 %v3653, 1.0
      %v3805 = vadd.f32 %v3655, 1.0
      %v3806 = vadd.f32 %v3657, 1.0
      %v3807 = vadd.f32 %v3659, 1.0
      %v3808 = vadd.f32 %v3661, 1.0
      %v3809 = vadd.f32 %v3663, 1.0
      %v3810 = vadd.f32 %v3665, 1.0
      %v3811 = vadd.f32 %v3667, 1.0
      %v3812 = vadd.f32 %v3669, 1.0
      %v3813 = vadd.f32 %v3671, 1.0
      %v3814 = vadd.f32 %v3673, 1.0
      %v3815 = vadd.f32 %v3675, 1.0
      %v3816 = vadd.f32 %v3677, 1.0
      %v3817 = vadd.f32 %v3679, 1.0
      %v3818 = vadd.f32 %v3681, 1.0
      %v3819 = vadd.f32 %v3683, 1.0
      %v3820 = vadd.f32 %v3685, 1.0
      %v3821 = vadd.f32 %v3687, 1.0
      %v3822 = vadd.f32 %v3689, 1.0
      %v3823 = vadd.f32 %v3691, 1.0
      %v3824 = vadd.f32 %v3693, 1.0
      %v3825 = vadd.f32 %v3695, 1.0
      %v3826 = vadd.f32 %v3697, 1.0
      %v3827 = vadd.f32 %v3699, 1.0
      %v3828 = vadd.f32 %v3701, 1.0
      %v3829 = vadd.f32 %v3703, 1.0
      %v3830 = vadd.f32 %v3705, 1.0
      %v3831 = vadd.f32 %v3707, 1.0
      %v3832 = vadd.f32 %v3709, 1.0
      %v3833 = vadd.f32 %v3711, 1.0
      %v3834 = vadd.f32 %v3713, 1.0
      %v3835 = vadd.f32 %v3715, 1.0
      %v3836 = vadd.f32 %v3717, 1.0
      %v3837 = vadd.f32 %v3719, 1.0
      %v3838 = vadd.f32 %v3721, 1.0
      %v3839 = vadd.f32 %v3723, 1.0
      %v3840 = vadd.f32 %v3725, 1.0
      %v3841 = vadd.f32 %v3727, 1.0
      %v3842 = vadd.f32 %v3729, 1.0
      %v3843 = vadd.f32 %v3731, 1.0
      %v3844 = vrcp.pop %v3732
      %v3845 = vmul.f32 1.0, %v3844
      %v3846 = vrcp.pop %v3733
      %v3847 = vmul.f32 1.0, %v3846
      %v3848 = vrcp.pop %v3734
      %v3849 = vmul.f32 1.0, %v3848
      %v3850 = vrcp.pop %v3735
      %v3851 = vmul.f32 1.0, %v3850
      %v3852 = vrcp.pop %v3736
      %v3853 = vmul.f32 1.0, %v3852
      %v3854 = vrcp.pop %v3737
      %v3855 = vmul.f32 1.0, %v3854
      %v3856 = vrcp.pop %v3738
      %v3857 = vmul.f32 1.0, %v3856
      %v3858 = vrcp.pop %v3739
      %v3859 = vmul.f32 1.0, %v3858
      %v3860 = vrcp.pop %v3740
      %v3861 = vmul.f32 1.0, %v3860
      %v3862 = vrcp.pop %v3741
      %v3863 = vmul.f32 1.0, %v3862
      %v3864 = vrcp.pop %v3742
      %v3865 = vmul.f32 1.0, %v3864
      %v3866 = vrcp.pop %v3743
      %v3867 = vmul.f32 1.0, %v3866
      %v3868 = vrcp.pop %v3744
      %v3869 = vmul.f32 1.0, %v3868
      %v3870 = vrcp.pop %v3745
      %v3871 = vmul.f32 1.0, %v3870
      %v3872 = vrcp.pop %v3746
      %v3873 = vmul.f32 1.0, %v3872
      %v3874 = vrcp.pop %v3747
      %v3875 = vmul.f32 1.0, %v3874
      %v3876 = vrcp.pop %v3748
      %v3877 = vmul.f32 1.0, %v3876
      %v3878 = vrcp.pop %v3749
      %v3879 = vmul.f32 1.0, %v3878
      %v3880 = vrcp.pop %v3750
      %v3881 = vmul.f32 1.0, %v3880
      %v3882 = vrcp.pop %v3751
      %v3883 = vmul.f32 1.0, %v3882
      %v3884 = vrcp.pop %v3752
      %v3885 = vmul.f32 1.0, %v3884
      %v3886 = vrcp.pop %v3753
      %v3887 = vmul.f32 1.0, %v3886
      %v3888 = vrcp.pop %v3754
      %v3889 = vmul.f32 1.0, %v3888
      %v3890 = vrcp.pop %v3755
      %v3891 = vmul.f32 1.0, %v3890
      %v3892 = vrcp.pop %v3756
      %v3893 = vmul.f32 1.0, %v3892
      %v3894 = vrcp.pop %v3757
      %v3895 = vmul.f32 1.0, %v3894
      %v3896 = vrcp.pop %v3758
      %v3897 = vmul.f32 1.0, %v3896
      %v3898 = vrcp.pop %v3759
      %v3899 = vmul.f32 1.0, %v3898
      %v3900 = vrcp.pop %v3760
      %v3901 = vmul.f32 1.0, %v3900
      %v3902 = vrcp.pop %v3761
      %v3903 = vmul.f32 1.0, %v3902
      %v3904 = vrcp.pop %v3762
      %v3905 = vmul.f32 1.0, %v3904
      %v3906 = vrcp.pop %v3763
      %v3907 = vmul.f32 1.0, %v3906
      %v3908 = vrcp.pop %v3764
      %v3909 = vmul.f32 1.0, %v3908
      %v3910 = vrcp.pop %v3765
      %v3911 = vmul.f32 1.0, %v3910
      %v3912 = vrcp.pop %v3766
      %v3913 = vmul.f32 1.0, %v3912
      %v3914 = vrcp.pop %v3767
      %v3915 = vmul.f32 1.0, %v3914
      %v3916 = vrcp.pop %v3768
      %v3917 = vmul.f32 1.0, %v3916
      %v3918 = vrcp.pop %v3769
      %v3919 = vmul.f32 1.0, %v3918
      %v3920 = vrcp.pop %v3770
      %v3921 = vmul.f32 1.0, %v3920
      %v3922 = vrcp.pop %v3771
      %v3923 = vmul.f32 1.0, %v3922
      %v3924 = vrcp.pop %v3772
      %v3925 = vmul.f32 1.0, %v3924
      %v3926 = vrcp.pop %v3773
      %v3927 = vmul.f32 1.0, %v3926
      %v3928 = vrcp.pop %v3774
      %v3929 = vmul.f32 1.0, %v3928
      %v3930 = vrcp.pop %v3775
      %v3931 = vmul.f32 1.0, %v3930
      %v3932 = vrcp.pop %v3776
      %v3933 = vmul.f32 1.0, %v3932
      %v3934 = vrcp.pop %v3777
      %v3935 = vmul.f32 1.0, %v3934
      %v3936 = vrcp.pop %v3778
      %v3937 = vmul.f32 1.0, %v3936
      %v3938 = vrcp.pop %v3779
      %v3939 = vmul.f32 1.0, %v3938
      %v3940 = vrcp.pop %v3780
      %v3941 = vmul.f32 1.0, %v3940
      %v3942 = vrcp.pop %v3781
      %v3943 = vmul.f32 1.0, %v3942
      %v3944 = vrcp.pop %v3782
      %v3945 = vmul.f32 1.0, %v3944
      %v3946 = vrcp.pop %v3783
      %v3947 = vmul.f32 1.0, %v3946
      %v3948 = vrcp.pop %v3784
      %v3949 = vmul.f32 1.0, %v3948
      %v3950 = vrcp.pop %v3785
      %v3951 = vmul.f32 1.0, %v3950
      %v3952 = vrcp.pop %v3786
      %v3953 = vmul.f32 1.0, %v3952
      %v3954 = vrcp.pop %v3787
      %v3955 = vmul.f32 1.0, %v3954
      %v3956 = vrcp.pop %v3788
      %v3957 = vmul.f32 1.0, %v3956
      %v3958 = vrcp.pop %v3789
      %v3959 = vmul.f32 1.0, %v3958
      %v3960 = vrcp.pop %v3790
      %v3961 = vmul.f32 1.0, %v3960
      %v3962 = vrcp.pop %v3791
      %v3963 = vmul.f32 1.0, %v3962
      %v3964 = vrcp.pop %v3792
      %v3965 = vmul.f32 1.0, %v3964
      %v3966 = vrcp.pop %v3793
      %v3967 = vmul.f32 1.0, %v3966
      %v3968 = vrcp.pop %v3794
      %v3969 = vmul.f32 1.0, %v3968
      %v3970 = vrcp.pop %v3795
      %v3971 = vmul.f32 1.0, %v3970
      %v3972 = vrcp.pop %v3796
      %v3973 = vmul.f32 1.0, %v3972
      %v3974 = vrcp.pop %v3797
      %v3975 = vmul.f32 1.0, %v3974
      %v3976 = vrcp.pop %v3798
      %v3977 = vmul.f32 1.0, %v3976
      %v3978 = vrcp.pop %v3799
      %v3979 = vmul.f32 1.0, %v3978
      %v3980 = vrcp.pop %v3800
      %v3981 = vmul.f32 1.0, %v3980
      %v3982 = vrcp.pop %v3801
      %v3983 = vmul.f32 1.0, %v3982
      %v3984 = vrcp.pop %v3802
      %v3985 = vmul.f32 1.0, %v3984
      %v3986 = vrcp.pop %v3803
      %v3987 = vmul.f32 1.0, %v3986
      %v3988 = vrcp.pop %v3804
      %v3989 = vmul.f32 1.0, %v3988
      %v3990 = vrcp.pop %v3805
      %v3991 = vmul.f32 1.0, %v3990
      %v3992 = vrcp.pop %v3806
      %v3993 = vmul.f32 1.0, %v3992
      %v3994 = vrcp.pop %v3807
      %v3995 = vmul.f32 1.0, %v3994
      %v3996 = vrcp.pop %v3808
      %v3997 = vmul.f32 1.0, %v3996
      %v3998 = vrcp.pop %v3809
      %v3999 = vmul.f32 1.0, %v3998
      %v4000 = vrcp.pop %v3810
      %v4001 = vmul.f32 1.0, %v4000
      %v4002 = vrcp.pop %v3811
      %v4003 = vmul.f32 1.0, %v4002
      %v4004 = vrcp.pop %v3812
      %v4005 = vmul.f32 1.0, %v4004
      %v4006 = vrcp.pop %v3813
      %v4007 = vmul.f32 1.0, %v4006
      %v4008 = vrcp.pop %v3814
      %v4009 = vmul.f32 1.0, %v4008
      %v4010 = vrcp.pop %v3815
      %v4011 = vmul.f32 1.0, %v4010
      %v4012 = vrcp.pop %v3816
      %v4013 = vmul.f32 1.0, %v4012
      %v4014 = vrcp.pop %v3817
      %v4015 = vmul.f32 1.0, %v4014
      %v4016 = vrcp.pop %v3818
      %v4017 = vmul.f32 1.0, %v4016
      %v4018 = vrcp.pop %v3819
      %v4019 = vmul.f32 1.0, %v4018
      %v4020 = vrcp.pop %v3820
      %v4021 = vmul.f32 1.0, %v4020
      %v4022 = vrcp.pop %v3821
      %v4023 = vmul.f32 1.0, %v4022
      %v4024 = vrcp.pop %v3822
      %v4025 = vmul.f32 1.0, %v4024
      %v4026 = vrcp.pop %v3823
      %v4027 = vmul.f32 1.0, %v4026
      %v4028 = vrcp.pop %v3824
      %v4029 = vmul.f32 1.0, %v4028
      %v4030 = vrcp.pop %v3825
      %v4031 = vmul.f32 1.0, %v4030
      %v4032 = vrcp.pop %v3826
      %v4033 = vmul.f32 1.0, %v4032
      %v4034 = vrcp.pop %v3827
      %v4035 = vmul.f32 1.0, %v4034
      %v4036 = vrcp.pop %v3828
      %v4037 = vmul.f32 1.0, %v4036
      %v4038 = vrcp.pop %v3829
      %v4039 = vmul.f32 1.0, %v4038
      %v4040 = vrcp.pop %v3830
      %v4041 = vmul.f32 1.0, %v4040
      %v4042 = vrcp.pop %v3831
      %v4043 = vmul.f32 1.0, %v4042
      %v4044 = vrcp.pop %v3832
      %v4045 = vmul.f32 1.0, %v4044
      %v4046 = vrcp.pop %v3833
      %v4047 = vmul.f32 1.0, %v4046
      %v4048 = vrcp.pop %v3834
      %v4049 = vmul.f32 1.0, %v4048
      %v4050 = vrcp.pop %v3835
      %v4051 = vmul.f32 1.0, %v4050
      %v4052 = vrcp.pop %v3836
      %v4053 = vmul.f32 1.0, %v4052
      %v4054 = vrcp.pop %v3837
      %v4055 = vmul.f32 1.0, %v4054
      %v4056 = vrcp.pop %v3838
      %v4057 = vmul.f32 1.0, %v4056
      %v4058 = vrcp.pop %v3839
      %v4059 = vmul.f32 1.0, %v4058
      %v4060 = vrcp.pop %v3840
      %v4061 = vmul.f32 1.0, %v4060
      %v4062 = vrcp.pop %v3841
      %v4063 = vmul.f32 1.0, %v4062
      %v4064 = vrcp.pop %v3842
      %v4065 = vmul.f32 1.0, %v4064
      %v4066 = vrcp.pop %v3843
      %v4067 = vmul.f32 1.0, %v4066
      %4068 = vst [vmem:[%s501] sm:$0xff] %v3845
      %4069 = vst [vmem:[%s501 + $0x8] sm:$0xff] %v3847
      %4070 = vst [vmem:[%s501 + $0x10] sm:$0xff] %v3849
      %4071 = vst [vmem:[%s501 + $0x18] sm:$0xff] %v3851
      %4072 = vst [vmem:[%s501 + $0x20] sm:$0xff] %v3853
      %4073 = vst [vmem:[%s501 + $0x28] sm:$0xff] %v3855
      %4074 = vst.msk [vmem:[%s501 + $0x30] sm:$0xff] %vm1247, %v3857
      %4075 = vst [vmem:[%s501 + $0x38] sm:$0xff] %v3859
      %4076 = vst [vmem:[%s501 + $0x40] sm:$0xff] %v3861
      %4077 = vst [vmem:[%s501 + $0x48] sm:$0xff] %v3863
      %4078 = vst [vmem:[%s501 + $0x50] sm:$0xff] %v3865
      %4079 = vst [vmem:[%s501 + $0x58] sm:$0xff] %v3867
      %4080 = vst [vmem:[%s501 + $0x60] sm:$0xff] %v3869
      %4081 = vst.msk [vmem:[%s501 + $0x68] sm:$0xff] %vm1247, %v3871
      %4082 = vst [vmem:[%s501 + $0x70] sm:$0xff] %v3873
      %4083 = vst [vmem:[%s501 + $0x78] sm:$0xff] %v3875
      %4084 = vst [vmem:[%s501 + $0x80] sm:$0xff] %v3877
      %4085 = vst [vmem:[%s501 + $0x88] sm:$0xff] %v3879
      %4086 = vst [vmem:[%s501 + $0x90] sm:$0xff] %v3881
      %4087 = vst [vmem:[%s501 + $0x98] sm:$0xff] %v3883
      %4088 = vst.msk [vmem:[%s501 + $0xa0] sm:$0xff] %vm1247, %v3885
      %4089 = vst [vmem:[%s501 + $0xa8] sm:$0xff] %v3887
      %4090 = vst [vmem:[%s501 + $0xb0] sm:$0xff] %v3889
      %4091 = vst [vmem:[%s501 + $0xb8] sm:$0xff] %v3891
      %4092 = vst [vmem:[%s501 + $0xc0] sm:$0xff] %v3893
      %4093 = vst [vmem:[%s501 + $0xc8] sm:$0xff] %v3895
      %4094 = vst [vmem:[%s501 + $0xd0] sm:$0xff] %v3897
      %4095 = vst.msk [vmem:[%s501 + $0xd8] sm:$0xff] %vm1247, %v3899
      %4096 = vst [vmem:[%s501 + $0xe0] sm:$0xff] %v3901
      %4097 = vst [vmem:[%s501 + $0xe8] sm:$0xff] %v3903
      %4098 = vst [vmem:[%s501 + $0xf0] sm:$0xff] %v3905
      %4099 = vst [vmem:[%s501 + $0xf8] sm:$0xff] %v3907
      %4100 = vst [vmem:[%s501 + $0x100] sm:$0xff] %v3909
      %4101 = vst [vmem:[%s501 + $0x108] sm:$0xff] %v3911
      %4102 = vst.msk [vmem:[%s501 + $0x110] sm:$0xff] %vm1247, %v3913
      %4103 = vst [vmem:[%s501 + $0x118] sm:$0xff] %v3915
      %4104 = vst [vmem:[%s501 + $0x120] sm:$0xff] %v3917
      %4105 = vst [vmem:[%s501 + $0x128] sm:$0xff] %v3919
      %4106 = vst [vmem:[%s501 + $0x130] sm:$0xff] %v3921
      %4107 = vst [vmem:[%s501 + $0x138] sm:$0xff] %v3923
      %4108 = vst [vmem:[%s501 + $0x140] sm:$0xff] %v3925
      %4109 = vst.msk [vmem:[%s501 + $0x148] sm:$0xff] %vm1247, %v3927
      %4110 = vst [vmem:[%s501 + $0x150] sm:$0xff] %v3929
      %4111 = vst [vmem:[%s501 + $0x158] sm:$0xff] %v3931
      %4112 = vst [vmem:[%s501 + $0x160] sm:$0xff] %v3933
      %4113 = vst [vmem:[%s501 + $0x168] sm:$0xff] %v3935
      %4114 = vst [vmem:[%s501 + $0x170] sm:$0xff] %v3937
      %4115 = vst [vmem:[%s501 + $0x178] sm:$0xff] %v3939
      %4116 = vst.msk [vmem:[%s501 + $0x180] sm:$0xff] %vm1247, %v3941
      %4117 = vst [vmem:[%s501 + $0x188] sm:$0xff] %v3943
      %4118 = vst [vmem:[%s501 + $0x190] sm:$0xff] %v3945
      %4119 = vst [vmem:[%s501 + $0x198] sm:$0xff] %v3947
      %4120 = vst [vmem:[%s501 + $0x1a0] sm:$0xff] %v3949
      %4121 = vst [vmem:[%s501 + $0x1a8] sm:$0xff] %v3951
      %4122 = vst [vmem:[%s501 + $0x1b0] sm:$0xff] %v3953
      %4123 = vst.msk [vmem:[%s501 + $0x1b8] sm:$0xff] %vm1247, %v3955
      %4124 = vst [vmem:[%s501 + $0x1c0] sm:$0xff] %v3957
      %4125 = vst [vmem:[%s501 + $0x1c8] sm:$0xff] %v3959
      %4126 = vst [vmem:[%s501 + $0x1d0] sm:$0xff] %v3961
      %4127 = vst [vmem:[%s501 + $0x1d8] sm:$0xff] %v3963
      %4128 = vst [vmem:[%s501 + $0x1e0] sm:$0xff] %v3965
      %4129 = vst [vmem:[%s501 + $0x1e8] sm:$0xff] %v3967
      %4130 = vst.msk [vmem:[%s501 + $0x1f0] sm:$0xff] %vm1247, %v3969
      %4131 = vst [vmem:[%s501 + $0x1f8] sm:$0xff] %v3971
      %4132 = vst [vmem:[%s501 + $0x200] sm:$0xff] %v3973
      %4133 = vst [vmem:[%s501 + $0x208] sm:$0xff] %v3975
      %4134 = vst [vmem:[%s501 + $0x210] sm:$0xff] %v3977
      %4135 = vst [vmem:[%s501 + $0x218] sm:$0xff] %v3979
      %4136 = vst [vmem:[%s501 + $0x220] sm:$0xff] %v3981
      %4137 = vst.msk [vmem:[%s501 + $0x228] sm:$0xff] %vm1247, %v3983
      %4138 = vst [vmem:[%s501 + $0x230] sm:$0xff] %v3985
      %4139 = vst [vmem:[%s501 + $0x238] sm:$0xff] %v3987
      %4140 = vst [vmem:[%s501 + $0x240] sm:$0xff] %v3989
      %4141 = vst [vmem:[%s501 + $0x248] sm:$0xff] %v3991
      %4142 = vst [vmem:[%s501 + $0x250] sm:$0xff] %v3993
      %4143 = vst [vmem:[%s501 + $0x258] sm:$0xff] %v3995
      %4144 = vst.msk [vmem:[%s501 + $0x260] sm:$0xff] %vm1247, %v3997
      %4145 = vst [vmem:[%s501 + $0x268] sm:$0xff] %v3999
      %4146 = vst [vmem:[%s501 + $0x270] sm:$0xff] %v4001
      %4147 = vst [vmem:[%s501 + $0x278] sm:$0xff] %v4003
      %4148 = vst [vmem:[%s501 + $0x280] sm:$0xff] %v4005
      %4149 = vst [vmem:[%s501 + $0x288] sm:$0xff] %v4007
      %4150 = vst [vmem:[%s501 + $0x290] sm:$0xff] %v4009
      %4151 = vst.msk [vmem:[%s501 + $0x298] sm:$0xff] %vm1247, %v4011
      %4152 = vst [vmem:[%s501 + $0x2a0] sm:$0xff] %v4013
      %4153 = vst [vmem:[%s501 + $0x2a8] sm:$0xff] %v4015
      %4154 = vst [vmem:[%s501 + $0x2b0] sm:$0xff] %v4017
      %4155 = vst [vmem:[%s501 + $0x2b8] sm:$0xff] %v4019
      %4156 = vst [vmem:[%s501 + $0x2c0] sm:$0xff] %v4021
      %4157 = vst [vmem:[%s501 + $0x2c8] sm:$0xff] %v4023
      %4158 = vst.msk [vmem:[%s501 + $0x2d0] sm:$0xff] %vm1247, %v4025
      %4159 = vst [vmem:[%s501 + $0x2d8] sm:$0xff] %v4027
      %4160 = vst [vmem:[%s501 + $0x2e0] sm:$0xff] %v4029
      %4161 = vst [vmem:[%s501 + $0x2e8] sm:$0xff] %v4031
      %4162 = vst [vmem:[%s501 + $0x2f0] sm:$0xff] %v4033
      %4163 = vst [vmem:[%s501 + $0x2f8] sm:$0xff] %v4035
      %4164 = vst [vmem:[%s501 + $0x300] sm:$0xff] %v4037
      %4165 = vst.msk [vmem:[%s501 + $0x308] sm:$0xff] %vm1247, %v4039
      %4166 = vst [vmem:[%s501 + $0x310] sm:$0xff] %v4041
      %4167 = vst [vmem:[%s501 + $0x318] sm:$0xff] %v4043
      %4168 = vst [vmem:[%s501 + $0x320] sm:$0xff] %v4045
      %4169 = vst [vmem:[%s501 + $0x328] sm:$0xff] %v4047
      %4170 = vst [vmem:[%s501 + $0x330] sm:$0xff] %v4049
      %4171 = vst [vmem:[%s501 + $0x338] sm:$0xff] %v4051
      %4172 = vst.msk [vmem:[%s501 + $0x340] sm:$0xff] %vm1247, %v4053
      %4173 = vst [vmem:[%s501 + $0x348] sm:$0xff] %v4055
      %4174 = vst [vmem:[%s501 + $0x350] sm:$0xff] %v4057
      %4175 = vst [vmem:[%s501 + $0x358] sm:$0xff] %v4059
      %4176 = vst [vmem:[%s501 + $0x360] sm:$0xff] %v4061
      %4177 = vst [vmem:[%s501 + $0x368] sm:$0xff] %v4063
      %4178 = vst [vmem:[%s501 + $0x370] sm:$0xff] %v4065
      %4179 = vst.msk [vmem:[%s501 + $0x378] sm:$0xff] %vm1247, %v4067
      %s4180 = smul.u32 16, %s26
      %p4181 = scmp.lt.s32.totalorder %s4180, 31
      %s4182 = scalar_select %p4181, %s4180, 31
      %s4183 = smul.addr %s4182, 7
      %s4184 = smul.addr %s4183, 8
      %s4185 = scalar_lea.vmem %s15, %s4184
      // Predicated region
      $region81: #{tpu_custom_call.1} parent=79 // pred_check
        %p4186 = pneg %p364
      $region82: #{tpu_custom_call.1} parent=79 // pred_check_branch
        %4188 = sbr.rel (%p4186) target = $region84
      $region83: #{tpu_custom_call.1} parent=79 // pred_region
        %s4189 = smul.u32 16, %s26
      $region84: #{tpu_custom_call.1} parent=79 // pred_fallthru
        _
    $region80: #{tpu_custom_call.1} parent=5 // pred_fallthru
      _
    %p4190 = scmp.le.s32.totalorder 2, %s21
    // Predicated region
    $region85: #{tpu_custom_call.1} parent=5 // pred_check
      %p4191 = pneg %p4190
    $region86: #{tpu_custom_call.1} parent=5 // pred_check_branch
      %4193 = sbr.rel (%p4191) target = $region88
    $region87: #{tpu_custom_call.1} parent=5 // pred_region
      %s4194 = ssub.s32 %s21, 2
      // Predicated region
      $region89: #{tpu_custom_call.1} parent=87 // pred_check
        %p4195 = pneg %p370
      $region90: #{tpu_custom_call.1} parent=87 // pred_check_branch
        %4197 = sbr.rel (%p4195) target = $region92
      $region91: #{tpu_custom_call.1} parent=87 // pred_region
        %s4198 = smul.u32 16, %s27
        %p4199 = scmp.lt.s32.totalorder %s4198, 31
        %s4200 = scalar_select %p4199, %s4198, 31
        %s4201 = smul.addr %s4200, 7
        %s4202 = smul.addr %s4201, 8
        %s4203 = scalar_lea.vmem %s15, %s4202
      $region92: #{tpu_custom_call.1} parent=87 // pred_fallthru
        _
    $region88: #{tpu_custom_call.1} parent=5 // pred_fallthru
      _
  $region6: #{tpu_custom_call.1} parent=0 // loop_footer
    %s25 = sadd.s32 1, %s21
  $region7: #{tpu_custom_call.1} parent=0 // loop_footer_branch
    %20 = sbr.rel target = $region3
  $region8: #{tpu_custom_call.1} parent=0 // loop_exit
    _

</llo_original>
